<compile_context>
chip_gen: v5e
topology: v5e:2x2
jax: 0.10.0
libtpu: 0.0.40
codegen_flags: <defaults>
</compile_context>

<pallas_src>
import functools

import numpy as np
import jax
import jax.numpy as jnp
from jax import lax
from jax.experimental import pallas as pl
from jax.experimental.pallas import tpu as pltpu

# norbert runs in complex128; keep its eps scale so we track the float64 reference,
# and guard the determinant against rounding to 0 in float32 instead of inflating eps.
_EPS = 2.220446049250313e-16                     # np.finfo(np.float64).eps
_SQRT_EPS = float(np.sqrt(_EPS))
_DET_FLOOR = float(np.finfo(np.float32).tiny)    # clamp: avoids 1/0 -> inf/nan in f32


def _round_up(x, m):
    return (x + m - 1) // m * m


def _cdiv(a, b):
    return (a + b - 1) // b


def _mwf_kernel(maxabs_ref, msk_ref, xr_ref, xi_ref, yr_ref, yi_ref, *,
                n_iter, n_src, t_valid):
    # maxabs_ref: (B,) f32 in SMEM   -- per-batch max_abs (hoisted out of the kernel)
    # msk_ref:    (1, S, C, ft, Tb)  -- mask block (F tiled on sublanes, T on lanes)
    # xr/xi_ref:  (1, C, ft, Tb)     -- mixture STFT real / imag block
    # yr/yi_ref:  (1, S, C, ft, Tb)  -- separated sources (output)
    # Ragged F rows past the array end are stale-but-independent (their writes are
    # dropped by the boundary DMA); the ragged T tail feeds the time reductions, so
    # it is zero-masked here with selects (stale VMEM may hold inf/nan, so a plain
    # multiply by zero would not sanitize it).
    S = n_src
    ft, Tb = xr_ref.shape[-2], xr_ref.shape[-1]
    ma = maxabs_ref[pl.program_id(0)]
    inv_ma = 1.0 / ma

    if Tb > t_valid:
        t_idx = lax.broadcasted_iota(jnp.int32, (ft, Tb), 1)
        t_mask = t_idx < t_valid
        mask = lambda p: jnp.where(t_mask, p, jnp.float32(0.0))
    else:
        mask = lambda p: p

    # scaled mixture channels (C == 2, analytic inverse path)
    x0r = mask(xr_ref[0, 0]) * inv_ma
    x0i = mask(xi_ref[0, 0]) * inv_ma
    x1r = mask(xr_ref[0, 1]) * inv_ma
    x1i = mask(xi_ref[0, 1]) * inv_ma

    # y0 = V * exp(i*angle(x)) / max_abs  ==  msk * x / max_abs  (V & phase fused)
    m_planes = [[mask(msk_ref[0, s, 0]), mask(msk_ref[0, s, 1])] for s in range(S)]
    yre = tuple((m_planes[s][0] * x0r, m_planes[s][1] * x1r) for s in range(S))
    yim = tuple((m_planes[s][0] * x0i, m_planes[s][1] * x1i) for s in range(S))

    def em_step(yre, yim):
        # --- statistics: per-source PSD v_s and weighted covariance W_s = v_s * R_s.
        # R entries live at (ft, 1); each is consumed exactly once here, so the lane
        # broadcast to (ft, Tb) happens once per entry (hoisted by construction).
        W00, W11, W01r, W01i = [], [], [], []
        for s in range(S):
            y0r, y1r = yre[s]
            y0i, y1i = yim[s]
            a0 = y0r * y0r + y0i * y0i
            a1 = y1r * y1r + y1i * y1i
            vps = 0.5 * (a0 + a1)                                  # (ft, Tb)
            n00 = jnp.sum(a0, axis=-1, keepdims=True)              # (ft, 1)
            n11 = jnp.sum(a1, axis=-1, keepdims=True)
            n01r = jnp.sum(y0r * y1r + y0i * y1i, axis=-1, keepdims=True)
            n01i = jnp.sum(y0i * y1r - y0r * y1i, axis=-1, keepdims=True)
            # w = eps + sum_t v_s = eps + (n00 + n11)/2  (tiny (ft,1) reciprocal)
            inv_w = pl.reciprocal(_EPS + 0.5 * (n00 + n11))
            W00.append(vps * (n00 * inv_w))
            W11.append(vps * (n11 * inv_w))
            W01r.append(vps * (n01r * inv_w))
            W01i.append(vps * (n01i * inv_w))

        # mixture covariance Cxx = sqrt(eps)*I + sum_s W_s (Hermitian)   -> (ft, Tb)
        C00 = _SQRT_EPS + W00[0]
        C11 = _SQRT_EPS + W11[0]
        C01r = W01r[0]
        C01i = W01i[0]
        for s in range(1, S):
            C00 = C00 + W00[s]
            C11 = C11 + W11[s]
            C01r = C01r + W01r[s]
            C01i = C01i + W01i[s]

        # Hermitian 2x2 inverse: det is real; approx reciprocal on the EUP slot plus
        # one Newton step keeps ~1e-7 relative error while freeing VALU slots.
        det = jnp.maximum(C00 * C11 - (C01r * C01r + C01i * C01i), _DET_FLOOR)
        idet = pl.reciprocal(det, approx=True)
        idet = idet * (2.0 - det * idet)
        I00 = idet * C11                      # real
        I11 = idet * C00                      # real
        I01r = -(idet * C01r)                 # I01 complex, I10 = conj(I01)
        I01i = -(idet * C01i)

        new_re, new_im = [], []
        for s in range(S):
            # G'_s = W_s @ Cxx^-1  (== v_s * R_s @ Cxx^-1; trailing v mult folded in)
            cross_r = W01r[s] * I01r + W01i[s] * I01i
            cross_i = W01i[s] * I01r - W01r[s] * I01i
            G00r = W00[s] * I00 + cross_r
            G00i = cross_i
            G11r = W11[s] * I11 + cross_r
            G11i = -cross_i
            G01r = W00[s] * I01r + W01r[s] * I11
            G01i = W00[s] * I01i + W01i[s] * I11
            G10r = W01r[s] * I00 + W11[s] * I01r
            G10i = -(W01i[s] * I00 + W11[s] * I01i)

            # y_s = G'_s @ x
            y0r = G00r * x0r - G00i * x0i + G01r * x1r - G01i * x1i
            y0i = G00r * x0i + G00i * x0r + G01r * x1i + G01i * x1r
            y1r = G10r * x0r - G10i * x0i + G11r * x1r - G11i * x1i
            y1i = G10r * x0i + G10i * x0r + G11r * x1i + G11i * x1r
            new_re.append((y0r, y1r))
            new_im.append((y0i, y1i))
        return tuple(new_re), tuple(new_im)

    if n_iter > 1:
        # carried-y loop bounds live ranges across EM iterations (no Python unroll)
        yre, yim = lax.fori_loop(0, n_iter - 1, lambda _, c: em_step(*c), (yre, yim))
    yre, yim = em_step(yre, yim)

    # unscale and write back (partial boundary blocks only store the valid region)
    for s in range(S):
        yr_ref[0, s, 0] = (yre[s][0] * ma).astype(yr_ref.dtype)
        yr_ref[0, s, 1] = (yre[s][1] * ma).astype(yr_ref.dtype)
        yi_ref[0, s, 0] = (yim[s][0] * ma).astype(yi_ref.dtype)
        yi_ref[0, s, 1] = (yim[s][1] * ma).astype(yi_ref.dtype)


class MWF:
    """JAX/Pallas port of aimless.utils.mwf.MWF (default configuration)."""

    def __init__(self, residual_model=False, softmask=False, alpha=1.0, n_iter=1,
                 f_tile=128):
        # TODO(synk): residual_model / softmask / alpha != 1 branches
        #             (norbert.residual_model, norbert.softmask) are not implemented.
        assert not residual_model and not softmask and alpha == 1.0
        self.n_iter = n_iter
        self.f_tile = f_tile           # upper bound on the frequency tile (sublanes)
        self._forward_jit = jax.jit(self._forward)

    def __call__(self, msk_hat, mix_spec):
        assert msk_hat.ndim > mix_spec.ndim
        if self.n_iter == 0:
            return msk_hat * mix_spec[:, None]       # module's early-return path
        return self._forward_jit(msk_hat, mix_spec)

    # -------- tile sizing: per-generation VMEM budget (v7x has 64 MiB vs 128 MiB) ----
    def _pick_tile(self, B, F, T_blk, S, C):
        try:
            info = pltpu.get_tpu_info()
            vmem_cap = int(getattr(info, "vmem_capacity_bytes", 128 * 1024 * 1024))
        except Exception:
            vmem_cap = 128 * 1024 * 1024
        # ~40% of VMEM: 48 MiB on v5e/v6e (128 MiB VMEM), ~25 MiB on v7x (64 MiB VMEM)
        vmem_limit = int(min(vmem_cap * 2 // 5, 48 * 1024 * 1024))
        io_planes = 2 * (3 * S * C + 2 * C)          # double-buffered msk / x / y blocks
        live_planes = 8 * S + 24                     # W + carried y + Cxx/inv/G/x + temps
        bytes_per_row = 4 * T_blk * (io_planes + live_planes)
        budget_rows = max(8, (vmem_limit // bytes_per_row) // 8 * 8)
        f_tile = max(8, min(self.f_tile, budget_rows, _round_up(F, 8)) // 8 * 8)
        # keep >= 2 grid steps so both TensorCores get work on dual-core chips (v7x)
        if B * _cdiv(F, f_tile) < 2 and F > 8:
            f_tile = max(8, _round_up(_cdiv(F, 2), 8))
        return f_tile, vmem_limit

    def _forward(self, msk_hat, mix_spec):
        # msk_hat:  (B, S, C, F, T) float32 real mask
        # mix_spec: (B, C, F, T)    complex64 mixture STFT
        B, S, C, F, T = msk_hat.shape
        assert mix_spec.shape == (B, C, F, T)
        assert C == 2   # TODO(synk): general C needs norbert._invert's pinv fallback
        assert S > 1    # TODO(synk): S == 1 goes through norbert.residual_model

        msk = msk_hat.astype(jnp.float32)
        xr = jnp.real(mix_spec).astype(jnp.float32)
        xi = jnp.imag(mix_spec).astype(jnp.float32)
        # max_abs = max(1, |mix|.max()/10) per batch -- the only cross-frequency
        # dependency; computed from the already-split planes (no extra complex pass).
        max_abs = jnp.maximum(
            jnp.float32(1.0),
            jnp.sqrt(jnp.max(xr * xr + xi * xi, axis=(1, 2, 3))) * jnp.float32(0.1),
        ).astype(jnp.float32)

        T_blk = _round_up(T, 128)          # lane-aligned VMEM block; HBM stays unpadded
        f_tile, vmem_limit = self._pick_tile(B, F, T_blk, S, C)
        nF = _cdiv(F, f_tile)

        kernel = functools.partial(_mwf_kernel, n_iter=self.n_iter, n_src=S, t_valid=T)
        cost = pl.CostEstimate(
            flops=int(self.n_iter * (70 * S + 25) * B * F * T),
            transcendentals=int(self.n_iter * B * F * T),
            bytes_accessed=int((12 * S * C + 8 * C) * B * F * T),
        )

        yr, yi = pl.pallas_call(
            kernel,
            grid=(B, nF),
            in_specs=[
                pl.BlockSpec(memory_space=pltpu.MemorySpace.SMEM),        # max_abs (B,)
                pl.BlockSpec((1, S, C, f_tile, T_blk), lambda b, f: (b, 0, 0, f, 0)),
                pl.BlockSpec((1, C, f_tile, T_blk), lambda b, f: (b, 0, f, 0)),
                pl.BlockSpec((1, C, f_tile, T_blk), lambda b, f: (b, 0, f, 0)),
            ],
            out_specs=[
                pl.BlockSpec((1, S, C, f_tile, T_blk), lambda b, f: (b, 0, 0, f, 0)),
                pl.BlockSpec((1, S, C, f_tile, T_blk), lambda b, f: (b, 0, 0, f, 0)),
            ],
            out_shape=[
                jax.ShapeDtypeStruct((B, S, C, F, T), jnp.float32),   # exact shape:
                jax.ShapeDtypeStruct((B, S, C, F, T), jnp.float32),   # no post-slice
            ],
            compiler_params=pltpu.CompilerParams(
                dimension_semantics=("parallel", "parallel"),
                vmem_limit_bytes=vmem_limit,
            ),
            cost_estimate=cost,
        )(max_abs, msk, xr, xi)

        # TODO(synk): expose a split real/imag return for callers (e.g. iSTFT) that
        #             immediately re-split, to skip this recombine HBM pass.
        return lax.complex(yr, yi)                    # (B, S, C, F, T) complex64


# ------------------- numpy reference (norbert semantics, float64) -------------------
def _invert2_np(M):
    det = M[..., 0, 0] * M[..., 1, 1] - M[..., 0, 1] * M[..., 1, 0]
    inv_det = 1.0 / det
    inv = np.empty_like(M)
    inv[..., 0, 0] = inv_det * M[..., 1, 1]
    inv[..., 1, 0] = -inv_det * M[..., 1, 0]
    inv[..., 0, 1] = -inv_det * M[..., 0, 1]
    inv[..., 1, 1] = inv_det * M[..., 0, 0]
    return inv


def mwf_reference(msk_hat, mix_spec, n_iter=1):
    msk = np.asarray(msk_hat, np.float64)
    mix = np.asarray(mix_spec, np.complex128)
    B, S, C, F, T = msk.shape
    V = msk * np.abs(mix)[:, None]
    X = np.transpose(mix, (0, 3, 2, 1))              # (B, T, F, C)
    Vp = np.transpose(V, (0, 4, 3, 2, 1))            # (B, T, F, C, S)
    eps = np.finfo(np.float64).eps
    out = np.zeros((B, T, F, C, S), np.complex128)
    for b in range(B):
        x = X[b]
        y = Vp[b] * np.exp(1j * np.angle(x[..., None]))
        max_abs = max(1.0, np.abs(x).max() / 10.0)
        x = x / max_abs
        y = y / max_abs
        for _ in range(n_iter):
            vps = np.mean(np.abs(y) ** 2, axis=2)    # (T, F, S)
            R = np.zeros((F, C, C, S), np.complex128)
            for j in range(S):
                num = np.einsum('tfa,tfb->fab', y[..., j], np.conj(y[..., j]))
                R[..., j] = num / (eps + vps[..., j].sum(axis=0)[..., None, None])
            reg = (np.sqrt(eps) * np.eye(C)[None]).astype(np.complex128)
            ynew = np.zeros_like(y)
            for t in range(T):
                Cxx = np.broadcast_to(reg, (F, C, C)).copy()
                for j in range(S):
                    Cxx = Cxx + vps[t, :, j, None, None] * R[..., j]
                inv = _invert2_np(Cxx)
                for j in range(S):
                    W = np.matmul(R[..., j], inv) * vps[t, :, j, None, None]
                    ynew[t, ..., j] = np.matmul(W, x[t, ..., None])[..., 0]
            y = ynew
        out[b] = y * max_abs
    return np.transpose(out, (0, 4, 3, 2, 1)).astype(np.complex64)   # (B, S, C, F, T)


if __name__ == "__main__":
    # ragged F (multiple frequency tiles + partial tail tile) and ragged T (< 128 lanes)
    B, S, C, F, T = 2, 3, 2, 72, 120
    key = jax.random.PRNGKey(0)
    k1, k2, k3 = jax.random.split(key, 3)
    msk_hat = jax.nn.softmax(jax.random.normal(k1, (B, S, C, F, T), jnp.float32), axis=1)
    mix_re = jax.random.normal(k2, (B, C, F, T), jnp.float32)
    mix_im = jax.random.normal(k3, (B, C, F, T), jnp.float32)
    mix_spec = 20.0 * lax.complex(mix_re, mix_im)   # scaled so max_abs > 1 is exercised

    mwf = MWF(n_iter=1, f_tile=32)          # small tile cap -> multi-tile (B, nF) grid
    Y = jax.block_until_ready(mwf(msk_hat, mix_spec))
    assert Y.shape == (B, S, C, F, T) and Y.dtype == jnp.complex64
    ref = mwf_reference(np.asarray(msk_hat), np.asarray(mix_spec), n_iter=1)
    np.testing.assert_allclose(np.asarray(Y), ref, rtol=1e-2, atol=1e-2)

    mwf2 = MWF(n_iter=2, f_tile=32)         # exercises the fori_loop carried-y path
    Y2 = jax.block_until_ready(mwf2(msk_hat, mix_spec))
    ref2 = mwf_reference(np.asarray(msk_hat), np.asarray(mix_spec), n_iter=2)
    np.testing.assert_allclose(np.asarray(Y2), ref2, rtol=1e-2, atol=1e-2)

    print("KERNEL_OK")
</pallas_src>

<mosaic_0001>
module attributes {stable_mosaic.version = 11 : i64} {
  func.func @_mwf_kernel(%arg0: i32, %arg1: i32, %arg2: memref<2xf32, #tpu.memory_space<smem>>, %arg3: memref<1x3x2x32x128xf32, #tpu.memory_space<vmem>>, %arg4: memref<1x2x32x128xf32, #tpu.memory_space<vmem>>, %arg5: memref<1x2x32x128xf32, #tpu.memory_space<vmem>>, %arg6: memref<1x3x2x32x128xf32, #tpu.memory_space<vmem>>, %arg7: memref<1x3x2x32x128xf32, #tpu.memory_space<vmem>>) attributes {dimension_semantics = [#tpu.dimension_semantics<parallel>, #tpu.dimension_semantics<parallel>], iteration_bounds = array<i64: 2, 3>, scalar_prefetch = 0 : i64, scratch_operands = 0 : i64, tpu.core_type = #tpu.core_type<tc>, window_params = [{transform_indices = @transform_0, window_bounds = array<i64: 2>}, {transform_indices = @transform_1, window_bounds = array<i64: 1, 3, 2, 32, 128>}, {transform_indices = @transform_2, window_bounds = array<i64: 1, 2, 32, 128>}, {transform_indices = @transform_3, window_bounds = array<i64: 1, 2, 32, 128>}, {transform_indices = @transform_4, window_bounds = array<i64: 1, 3, 2, 32, 128>}, {transform_indices = @transform_5, window_bounds = array<i64: 1, 3, 2, 32, 128>}]} {
    %0 = arith.index_cast %arg0 : i32 to index
    %1 = memref.load %arg2[%0] : memref<2xf32, #tpu.memory_space<smem>>
    %cst = arith.constant 1.000000e+00 : f32
    %2 = arith.divf %cst, %1 : f32
    %3 = tpu.iota {dimensions = array<i32: 1>} : vector<32x128xi32>
    %c120_i32 = arith.constant 120 : i32
    %4 = vector.broadcast %c120_i32 : i32 to vector<32x128xi32>
    %5 = arith.cmpi slt, %3, %4 : vector<32x128xi32>
    %c0 = arith.constant 0 : index
    %c0_0 = arith.constant 0 : index
    %c0_1 = arith.constant 0 : index
    %c0_2 = arith.constant 0 : index
    %6 = vector.load %arg4[%c0, %c0_0, %c0_1, %c0_2] : memref<1x2x32x128xf32, #tpu.memory_space<vmem>>, vector<1x1x32x128xf32>
    %7 = vector.shape_cast %6 : vector<1x1x32x128xf32> to vector<32x128xf32>
    %cst_3 = arith.constant 0.000000e+00 : f32
    %8 = vector.broadcast %cst_3 : f32 to vector<32x128xf32>
    %9 = arith.select %5, %7, %8 : vector<32x128xi1>, vector<32x128xf32>
    %10 = vector.broadcast %2 : f32 to vector<32x128xf32>
    %11 = arith.mulf %9, %10 : vector<32x128xf32>
    %c0_4 = arith.constant 0 : index
    %c0_5 = arith.constant 0 : index
    %c0_6 = arith.constant 0 : index
    %c0_7 = arith.constant 0 : index
    %12 = vector.load %arg5[%c0_4, %c0_5, %c0_6, %c0_7] : memref<1x2x32x128xf32, #tpu.memory_space<vmem>>, vector<1x1x32x128xf32>
    %13 = vector.shape_cast %12 : vector<1x1x32x128xf32> to vector<32x128xf32>
    %cst_8 = arith.constant 0.000000e+00 : f32
    %14 = vector.broadcast %cst_8 : f32 to vector<32x128xf32>
    %15 = arith.select %5, %13, %14 : vector<32x128xi1>, vector<32x128xf32>
    %16 = vector.broadcast %2 : f32 to vector<32x128xf32>
    %17 = arith.mulf %15, %16 : vector<32x128xf32>
    %c0_9 = arith.constant 0 : index
    %c1 = arith.constant 1 : index
    %c0_10 = arith.constant 0 : index
    %c0_11 = arith.constant 0 : index
    %18 = vector.load %arg4[%c0_9, %c1, %c0_10, %c0_11] : memref<1x2x32x128xf32, #tpu.memory_space<vmem>>, vector<1x1x32x128xf32>
    %19 = vector.shape_cast %18 : vector<1x1x32x128xf32> to vector<32x128xf32>
    %cst_12 = arith.constant 0.000000e+00 : f32
    %20 = vector.broadcast %cst_12 : f32 to vector<32x128xf32>
    %21 = arith.select %5, %19, %20 : vector<32x128xi1>, vector<32x128xf32>
    %22 = vector.broadcast %2 : f32 to vector<32x128xf32>
    %23 = arith.mulf %21, %22 : vector<32x128xf32>
    %c0_13 = arith.constant 0 : index
    %c1_14 = arith.constant 1 : index
    %c0_15 = arith.constant 0 : index
    %c0_16 = arith.constant 0 : index
    %24 = vector.load %arg5[%c0_13, %c1_14, %c0_15, %c0_16] : memref<1x2x32x128xf32, #tpu.memory_space<vmem>>, vector<1x1x32x128xf32>
    %25 = vector.shape_cast %24 : vector<1x1x32x128xf32> to vector<32x128xf32>
    %cst_17 = arith.constant 0.000000e+00 : f32
    %26 = vector.broadcast %cst_17 : f32 to vector<32x128xf32>
    %27 = arith.select %5, %25, %26 : vector<32x128xi1>, vector<32x128xf32>
    %28 = vector.broadcast %2 : f32 to vector<32x128xf32>
    %29 = arith.mulf %27, %28 : vector<32x128xf32>
    %c0_18 = arith.constant 0 : index
    %c0_19 = arith.constant 0 : index
    %c0_20 = arith.constant 0 : index
    %c0_21 = arith.constant 0 : index
    %c0_22 = arith.constant 0 : index
    %30 = vector.load %arg3[%c0_18, %c0_19, %c0_20, %c0_21, %c0_22] : memref<1x3x2x32x128xf32, #tpu.memory_space<vmem>>, vector<1x1x1x32x128xf32>
    %31 = vector.shape_cast %30 : vector<1x1x1x32x128xf32> to vector<32x128xf32>
    %cst_23 = arith.constant 0.000000e+00 : f32
    %32 = vector.broadcast %cst_23 : f32 to vector<32x128xf32>
    %33 = arith.select %5, %31, %32 : vector<32x128xi1>, vector<32x128xf32>
    %c0_24 = arith.constant 0 : index
    %c0_25 = arith.constant 0 : index
    %c1_26 = arith.constant 1 : index
    %c0_27 = arith.constant 0 : index
    %c0_28 = arith.constant 0 : index
    %34 = vector.load %arg3[%c0_24, %c0_25, %c1_26, %c0_27, %c0_28] : memref<1x3x2x32x128xf32, #tpu.memory_space<vmem>>, vector<1x1x1x32x128xf32>
    %35 = vector.shape_cast %34 : vector<1x1x1x32x128xf32> to vector<32x128xf32>
    %cst_29 = arith.constant 0.000000e+00 : f32
    %36 = vector.broadcast %cst_29 : f32 to vector<32x128xf32>
    %37 = arith.select %5, %35, %36 : vector<32x128xi1>, vector<32x128xf32>
    %c0_30 = arith.constant 0 : index
    %c1_31 = arith.constant 1 : index
    %c0_32 = arith.constant 0 : index
    %c0_33 = arith.constant 0 : index
    %c0_34 = arith.constant 0 : index
    %38 = vector.load %arg3[%c0_30, %c1_31, %c0_32, %c0_33, %c0_34] : memref<1x3x2x32x128xf32, #tpu.memory_space<vmem>>, vector<1x1x1x32x128xf32>
    %39 = vector.shape_cast %38 : vector<1x1x1x32x128xf32> to vector<32x128xf32>
    %cst_35 = arith.constant 0.000000e+00 : f32
    %40 = vector.broadcast %cst_35 : f32 to vector<32x128xf32>
    %41 = arith.select %5, %39, %40 : vector<32x128xi1>, vector<32x128xf32>
    %c0_36 = arith.constant 0 : index
    %c1_37 = arith.constant 1 : index
    %c1_38 = arith.constant 1 : index
    %c0_39 = arith.constant 0 : index
    %c0_40 = arith.constant 0 : index
    %42 = vector.load %arg3[%c0_36, %c1_37, %c1_38, %c0_39, %c0_40] : memref<1x3x2x32x128xf32, #tpu.memory_space<vmem>>, vector<1x1x1x32x128xf32>
    %43 = vector.shape_cast %42 : vector<1x1x1x32x128xf32> to vector<32x128xf32>
    %cst_41 = arith.constant 0.000000e+00 : f32
    %44 = vector.broadcast %cst_41 : f32 to vector<32x128xf32>
    %45 = arith.select %5, %43, %44 : vector<32x128xi1>, vector<32x128xf32>
    %c0_42 = arith.constant 0 : index
    %c2 = arith.constant 2 : index
    %c0_43 = arith.constant 0 : index
    %c0_44 = arith.constant 0 : index
    %c0_45 = arith.constant 0 : index
    %46 = vector.load %arg3[%c0_42, %c2, %c0_43, %c0_44, %c0_45] : memref<1x3x2x32x128xf32, #tpu.memory_space<vmem>>, vector<1x1x1x32x128xf32>
    %47 = vector.shape_cast %46 : vector<1x1x1x32x128xf32> to vector<32x128xf32>
    %cst_46 = arith.constant 0.000000e+00 : f32
    %48 = vector.broadcast %cst_46 : f32 to vector<32x128xf32>
    %49 = arith.select %5, %47, %48 : vector<32x128xi1>, vector<32x128xf32>
    %c0_47 = arith.constant 0 : index
    %c2_48 = arith.constant 2 : index
    %c1_49 = arith.constant 1 : index
    %c0_50 = arith.constant 0 : index
    %c0_51 = arith.constant 0 : index
    %50 = vector.load %arg3[%c0_47, %c2_48, %c1_49, %c0_50, %c0_51] : memref<1x3x2x32x128xf32, #tpu.memory_space<vmem>>, vector<1x1x1x32x128xf32>
    %51 = vector.shape_cast %50 : vector<1x1x1x32x128xf32> to vector<32x128xf32>
    %cst_52 = arith.constant 0.000000e+00 : f32
    %52 = vector.broadcast %cst_52 : f32 to vector<32x128xf32>
    %53 = arith.select %5, %51, %52 : vector<32x128xi1>, vector<32x128xf32>
    %54 = arith.mulf %33, %11 : vector<32x128xf32>
    %55 = arith.mulf %37, %23 : vector<32x128xf32>
    %56 = arith.mulf %41, %11 : vector<32x128xf32>
    %57 = arith.mulf %45, %23 : vector<32x128xf32>
    %58 = arith.mulf %49, %11 : vector<32x128xf32>
    %59 = arith.mulf %53, %23 : vector<32x128xf32>
    %60 = arith.mulf %33, %17 : vector<32x128xf32>
    %61 = arith.mulf %37, %29 : vector<32x128xf32>
    %62 = arith.mulf %41, %17 : vector<32x128xf32>
    %63 = arith.mulf %45, %29 : vector<32x128xf32>
    %64 = arith.mulf %49, %17 : vector<32x128xf32>
    %65 = arith.mulf %53, %29 : vector<32x128xf32>
    %66 = arith.mulf %54, %54 : vector<32x128xf32>
    %67 = arith.mulf %60, %60 : vector<32x128xf32>
    %68 = arith.addf %66, %67 : vector<32x128xf32>
    %69 = arith.mulf %55, %55 : vector<32x128xf32>
    %70 = arith.mulf %61, %61 : vector<32x128xf32>
    %71 = arith.addf %69, %70 : vector<32x128xf32>
    %72 = arith.addf %68, %71 : vector<32x128xf32>
    %cst_53 = arith.constant 5.000000e-01 : f32
    %73 = vector.broadcast %cst_53 : f32 to vector<32x128xf32>
    %74 = arith.mulf %73, %72 : vector<32x128xf32>
    %cst_54 = arith.constant dense<0.000000e+00> : vector<32xf32>
    %75 = vector.multi_reduction <add>, %68, %cst_54 [1] : vector<32x128xf32> to vector<32xf32>
    %76 = vector.shape_cast %75 : vector<32xf32> to vector<32x1xf32>
    %cst_55 = arith.constant dense<0.000000e+00> : vector<32xf32>
    %77 = vector.multi_reduction <add>, %71, %cst_55 [1] : vector<32x128xf32> to vector<32xf32>
    %78 = vector.shape_cast %77 : vector<32xf32> to vector<32x1xf32>
    %79 = arith.mulf %54, %55 : vector<32x128xf32>
    %80 = arith.mulf %60, %61 : vector<32x128xf32>
    %81 = arith.addf %79, %80 : vector<32x128xf32>
    %cst_56 = arith.constant dense<0.000000e+00> : vector<32xf32>
    %82 = vector.multi_reduction <add>, %81, %cst_56 [1] : vector<32x128xf32> to vector<32xf32>
    %83 = vector.shape_cast %82 : vector<32xf32> to vector<32x1xf32>
    %84 = arith.mulf %60, %55 : vector<32x128xf32>
    %85 = arith.mulf %54, %61 : vector<32x128xf32>
    %86 = arith.subf %84, %85 : vector<32x128xf32>
    %cst_57 = arith.constant dense<0.000000e+00> : vector<32xf32>
    %87 = vector.multi_reduction <add>, %86, %cst_57 [1] : vector<32x128xf32> to vector<32xf32>
    %88 = vector.shape_cast %87 : vector<32xf32> to vector<32x1xf32>
    %89 = arith.addf %76, %78 : vector<32x1xf32>
    %cst_58 = arith.constant 5.000000e-01 : f32
    %90 = vector.broadcast %cst_58 : f32 to vector<32x1xf32>
    %91 = arith.mulf %90, %89 : vector<32x1xf32>
    %cst_59 = arith.constant 2.22044605E-16 : f32
    %92 = vector.broadcast %cst_59 : f32 to vector<32x1xf32>
    %93 = arith.addf %92, %91 : vector<32x1xf32>
    %94 = tpu.reciprocal %93 : vector<32x1xf32> -> vector<32x1xf32>
    %95 = arith.mulf %76, %94 : vector<32x1xf32>
    %96 = vector.broadcast %95 : vector<32x1xf32> to vector<32x128xf32>
    %97 = arith.mulf %74, %96 : vector<32x128xf32>
    %98 = arith.mulf %78, %94 : vector<32x1xf32>
    %99 = vector.broadcast %98 : vector<32x1xf32> to vector<32x128xf32>
    %100 = arith.mulf %74, %99 : vector<32x128xf32>
    %101 = arith.mulf %83, %94 : vector<32x1xf32>
    %102 = vector.broadcast %101 : vector<32x1xf32> to vector<32x128xf32>
    %103 = arith.mulf %74, %102 : vector<32x128xf32>
    %104 = arith.mulf %88, %94 : vector<32x1xf32>
    %105 = vector.broadcast %104 : vector<32x1xf32> to vector<32x128xf32>
    %106 = arith.mulf %74, %105 : vector<32x128xf32>
    %107 = arith.mulf %56, %56 : vector<32x128xf32>
    %108 = arith.mulf %62, %62 : vector<32x128xf32>
    %109 = arith.addf %107, %108 : vector<32x128xf32>
    %110 = arith.mulf %57, %57 : vector<32x128xf32>
    %111 = arith.mulf %63, %63 : vector<32x128xf32>
    %112 = arith.addf %110, %111 : vector<32x128xf32>
    %113 = arith.addf %109, %112 : vector<32x128xf32>
    %cst_60 = arith.constant 5.000000e-01 : f32
    %114 = vector.broadcast %cst_60 : f32 to vector<32x128xf32>
    %115 = arith.mulf %114, %113 : vector<32x128xf32>
    %cst_61 = arith.constant dense<0.000000e+00> : vector<32xf32>
    %116 = vector.multi_reduction <add>, %109, %cst_61 [1] : vector<32x128xf32> to vector<32xf32>
    %117 = vector.shape_cast %116 : vector<32xf32> to vector<32x1xf32>
    %cst_62 = arith.constant dense<0.000000e+00> : vector<32xf32>
    %118 = vector.multi_reduction <add>, %112, %cst_62 [1] : vector<32x128xf32> to vector<32xf32>
    %119 = vector.shape_cast %118 : vector<32xf32> to vector<32x1xf32>
    %120 = arith.mulf %56, %57 : vector<32x128xf32>
    %121 = arith.mulf %62, %63 : vector<32x128xf32>
    %122 = arith.addf %120, %121 : vector<32x128xf32>
    %cst_63 = arith.constant dense<0.000000e+00> : vector<32xf32>
    %123 = vector.multi_reduction <add>, %122, %cst_63 [1] : vector<32x128xf32> to vector<32xf32>
    %124 = vector.shape_cast %123 : vector<32xf32> to vector<32x1xf32>
    %125 = arith.mulf %62, %57 : vector<32x128xf32>
    %126 = arith.mulf %56, %63 : vector<32x128xf32>
    %127 = arith.subf %125, %126 : vector<32x128xf32>
    %cst_64 = arith.constant dense<0.000000e+00> : vector<32xf32>
    %128 = vector.multi_reduction <add>, %127, %cst_64 [1] : vector<32x128xf32> to vector<32xf32>
    %129 = vector.shape_cast %128 : vector<32xf32> to vector<32x1xf32>
    %130 = arith.addf %117, %119 : vector<32x1xf32>
    %cst_65 = arith.constant 5.000000e-01 : f32
    %131 = vector.broadcast %cst_65 : f32 to vector<32x1xf32>
    %132 = arith.mulf %131, %130 : vector<32x1xf32>
    %cst_66 = arith.constant 2.22044605E-16 : f32
    %133 = vector.broadcast %cst_66 : f32 to vector<32x1xf32>
    %134 = arith.addf %133, %132 : vector<32x1xf32>
    %135 = tpu.reciprocal %134 : vector<32x1xf32> -> vector<32x1xf32>
    %136 = arith.mulf %117, %135 : vector<32x1xf32>
    %137 = vector.broadcast %136 : vector<32x1xf32> to vector<32x128xf32>
    %138 = arith.mulf %115, %137 : vector<32x128xf32>
    %139 = arith.mulf %119, %135 : vector<32x1xf32>
    %140 = vector.broadcast %139 : vector<32x1xf32> to vector<32x128xf32>
    %141 = arith.mulf %115, %140 : vector<32x128xf32>
    %142 = arith.mulf %124, %135 : vector<32x1xf32>
    %143 = vector.broadcast %142 : vector<32x1xf32> to vector<32x128xf32>
    %144 = arith.mulf %115, %143 : vector<32x128xf32>
    %145 = arith.mulf %129, %135 : vector<32x1xf32>
    %146 = vector.broadcast %145 : vector<32x1xf32> to vector<32x128xf32>
    %147 = arith.mulf %115, %146 : vector<32x128xf32>
    %148 = arith.mulf %58, %58 : vector<32x128xf32>
    %149 = arith.mulf %64, %64 : vector<32x128xf32>
    %150 = arith.addf %148, %149 : vector<32x128xf32>
    %151 = arith.mulf %59, %59 : vector<32x128xf32>
    %152 = arith.mulf %65, %65 : vector<32x128xf32>
    %153 = arith.addf %151, %152 : vector<32x128xf32>
    %154 = arith.addf %150, %153 : vector<32x128xf32>
    %cst_67 = arith.constant 5.000000e-01 : f32
    %155 = vector.broadcast %cst_67 : f32 to vector<32x128xf32>
    %156 = arith.mulf %155, %154 : vector<32x128xf32>
    %cst_68 = arith.constant dense<0.000000e+00> : vector<32xf32>
    %157 = vector.multi_reduction <add>, %150, %cst_68 [1] : vector<32x128xf32> to vector<32xf32>
    %158 = vector.shape_cast %157 : vector<32xf32> to vector<32x1xf32>
    %cst_69 = arith.constant dense<0.000000e+00> : vector<32xf32>
    %159 = vector.multi_reduction <add>, %153, %cst_69 [1] : vector<32x128xf32> to vector<32xf32>
    %160 = vector.shape_cast %159 : vector<32xf32> to vector<32x1xf32>
    %161 = arith.mulf %58, %59 : vector<32x128xf32>
    %162 = arith.mulf %64, %65 : vector<32x128xf32>
    %163 = arith.addf %161, %162 : vector<32x128xf32>
    %cst_70 = arith.constant dense<0.000000e+00> : vector<32xf32>
    %164 = vector.multi_reduction <add>, %163, %cst_70 [1] : vector<32x128xf32> to vector<32xf32>
    %165 = vector.shape_cast %164 : vector<32xf32> to vector<32x1xf32>
    %166 = arith.mulf %64, %59 : vector<32x128xf32>
    %167 = arith.mulf %58, %65 : vector<32x128xf32>
    %168 = arith.subf %166, %167 : vector<32x128xf32>
    %cst_71 = arith.constant dense<0.000000e+00> : vector<32xf32>
    %169 = vector.multi_reduction <add>, %168, %cst_71 [1] : vector<32x128xf32> to vector<32xf32>
    %170 = vector.shape_cast %169 : vector<32xf32> to vector<32x1xf32>
    %171 = arith.addf %158, %160 : vector<32x1xf32>
    %cst_72 = arith.constant 5.000000e-01 : f32
    %172 = vector.broadcast %cst_72 : f32 to vector<32x1xf32>
    %173 = arith.mulf %172, %171 : vector<32x1xf32>
    %cst_73 = arith.constant 2.22044605E-16 : f32
    %174 = vector.broadcast %cst_73 : f32 to vector<32x1xf32>
    %175 = arith.addf %174, %173 : vector<32x1xf32>
    %176 = tpu.reciprocal %175 : vector<32x1xf32> -> vector<32x1xf32>
    %177 = arith.mulf %158, %176 : vector<32x1xf32>
    %178 = vector.broadcast %177 : vector<32x1xf32> to vector<32x128xf32>
    %179 = arith.mulf %156, %178 : vector<32x128xf32>
    %180 = arith.mulf %160, %176 : vector<32x1xf32>
    %181 = vector.broadcast %180 : vector<32x1xf32> to vector<32x128xf32>
    %182 = arith.mulf %156, %181 : vector<32x128xf32>
    %183 = arith.mulf %165, %176 : vector<32x1xf32>
    %184 = vector.broadcast %183 : vector<32x1xf32> to vector<32x128xf32>
    %185 = arith.mulf %156, %184 : vector<32x128xf32>
    %186 = arith.mulf %170, %176 : vector<32x1xf32>
    %187 = vector.broadcast %186 : vector<32x1xf32> to vector<32x128xf32>
    %188 = arith.mulf %156, %187 : vector<32x128xf32>
    %cst_74 = arith.constant 1.49011612E-8 : f32
    %189 = vector.broadcast %cst_74 : f32 to vector<32x128xf32>
    %190 = arith.addf %189, %97 : vector<32x128xf32>
    %cst_75 = arith.constant 1.49011612E-8 : f32
    %191 = vector.broadcast %cst_75 : f32 to vector<32x128xf32>
    %192 = arith.addf %191, %100 : vector<32x128xf32>
    %193 = arith.addf %190, %138 : vector<32x128xf32>
    %194 = arith.addf %192, %141 : vector<32x128xf32>
    %195 = arith.addf %103, %144 : vector<32x128xf32>
    %196 = arith.addf %106, %147 : vector<32x128xf32>
    %197 = arith.addf %193, %179 : vector<32x128xf32>
    %198 = arith.addf %194, %182 : vector<32x128xf32>
    %199 = arith.addf %195, %185 : vector<32x128xf32>
    %200 = arith.addf %196, %188 : vector<32x128xf32>
    %201 = arith.mulf %197, %198 : vector<32x128xf32>
    %202 = arith.mulf %199, %199 : vector<32x128xf32>
    %203 = arith.mulf %200, %200 : vector<32x128xf32>
    %204 = arith.addf %202, %203 : vector<32x128xf32>
    %205 = arith.subf %201, %204 : vector<32x128xf32>
    %cst_76 = arith.constant 1.17549435E-38 : f32
    %206 = vector.broadcast %cst_76 : f32 to vector<32x128xf32>
    %207 = arith.maximumf %205, %206 : vector<32x128xf32>
    %208 = tpu.reciprocal %207 {approx = true} : vector<32x128xf32> -> vector<32x128xf32>
    %209 = arith.mulf %207, %208 : vector<32x128xf32>
    %cst_77 = arith.constant 2.000000e+00 : f32
    %210 = vector.broadcast %cst_77 : f32 to vector<32x128xf32>
    %211 = arith.subf %210, %209 : vector<32x128xf32>
    %212 = arith.mulf %208, %211 : vector<32x128xf32>
    %213 = arith.mulf %212, %198 : vector<32x128xf32>
    %214 = arith.mulf %212, %197 : vector<32x128xf32>
    %215 = arith.mulf %212, %199 : vector<32x128xf32>
    %cst_78 = arith.constant 0.000000e+00 : f32
    %216 = vector.broadcast %cst_78 : f32 to vector<32x128xf32>
    %217 = arith.subf %216, %215 : vector<32x128xf32>
    %218 = arith.mulf %212, %200 : vector<32x128xf32>
    %cst_79 = arith.constant 0.000000e+00 : f32
    %219 = vector.broadcast %cst_79 : f32 to vector<32x128xf32>
    %220 = arith.subf %219, %218 : vector<32x128xf32>
    %221 = arith.mulf %103, %217 : vector<32x128xf32>
    %222 = arith.mulf %106, %220 : vector<32x128xf32>
    %223 = arith.addf %221, %222 : vector<32x128xf32>
    %224 = arith.mulf %106, %217 : vector<32x128xf32>
    %225 = arith.mulf %103, %220 : vector<32x128xf32>
    %226 = arith.subf %224, %225 : vector<32x128xf32>
    %227 = arith.mulf %97, %213 : vector<32x128xf32>
    %228 = arith.addf %227, %223 : vector<32x128xf32>
    %229 = arith.mulf %100, %214 : vector<32x128xf32>
    %230 = arith.addf %229, %223 : vector<32x128xf32>
    %cst_80 = arith.constant 0.000000e+00 : f32
    %231 = vector.broadcast %cst_80 : f32 to vector<32x128xf32>
    %232 = arith.subf %231, %226 : vector<32x128xf32>
    %233 = arith.mulf %97, %217 : vector<32x128xf32>
    %234 = arith.mulf %103, %214 : vector<32x128xf32>
    %235 = arith.addf %233, %234 : vector<32x128xf32>
    %236 = arith.mulf %97, %220 : vector<32x128xf32>
    %237 = arith.mulf %106, %214 : vector<32x128xf32>
    %238 = arith.addf %236, %237 : vector<32x128xf32>
    %239 = arith.mulf %103, %213 : vector<32x128xf32>
    %240 = arith.mulf %100, %217 : vector<32x128xf32>
    %241 = arith.addf %239, %240 : vector<32x128xf32>
    %242 = arith.mulf %106, %213 : vector<32x128xf32>
    %243 = arith.mulf %100, %220 : vector<32x128xf32>
    %244 = arith.addf %242, %243 : vector<32x128xf32>
    %cst_81 = arith.constant 0.000000e+00 : f32
    %245 = vector.broadcast %cst_81 : f32 to vector<32x128xf32>
    %246 = arith.subf %245, %244 : vector<32x128xf32>
    %247 = arith.mulf %228, %11 : vector<32x128xf32>
    %248 = arith.mulf %226, %17 : vector<32x128xf32>
    %249 = arith.subf %247, %248 : vector<32x128xf32>
    %250 = arith.mulf %235, %23 : vector<32x128xf32>
    %251 = arith.addf %249, %250 : vector<32x128xf32>
    %252 = arith.mulf %238, %29 : vector<32x128xf32>
    %253 = arith.subf %251, %252 : vector<32x128xf32>
    %254 = arith.mulf %228, %17 : vector<32x128xf32>
    %255 = arith.mulf %226, %11 : vector<32x128xf32>
    %256 = arith.addf %254, %255 : vector<32x128xf32>
    %257 = arith.mulf %235, %29 : vector<32x128xf32>
    %258 = arith.addf %256, %257 : vector<32x128xf32>
    %259 = arith.mulf %238, %23 : vector<32x128xf32>
    %260 = arith.addf %258, %259 : vector<32x128xf32>
    %261 = arith.mulf %241, %11 : vector<32x128xf32>
    %262 = arith.mulf %246, %17 : vector<32x128xf32>
    %263 = arith.subf %261, %262 : vector<32x128xf32>
    %264 = arith.mulf %230, %23 : vector<32x128xf32>
    %265 = arith.addf %263, %264 : vector<32x128xf32>
    %266 = arith.mulf %232, %29 : vector<32x128xf32>
    %267 = arith.subf %265, %266 : vector<32x128xf32>
    %268 = arith.mulf %241, %17 : vector<32x128xf32>
    %269 = arith.mulf %246, %11 : vector<32x128xf32>
    %270 = arith.addf %268, %269 : vector<32x128xf32>
    %271 = arith.mulf %230, %29 : vector<32x128xf32>
    %272 = arith.addf %270, %271 : vector<32x128xf32>
    %273 = arith.mulf %232, %23 : vector<32x128xf32>
    %274 = arith.addf %272, %273 : vector<32x128xf32>
    %275 = arith.mulf %144, %217 : vector<32x128xf32>
    %276 = arith.mulf %147, %220 : vector<32x128xf32>
    %277 = arith.addf %275, %276 : vector<32x128xf32>
    %278 = arith.mulf %147, %217 : vector<32x128xf32>
    %279 = arith.mulf %144, %220 : vector<32x128xf32>
    %280 = arith.subf %278, %279 : vector<32x128xf32>
    %281 = arith.mulf %138, %213 : vector<32x128xf32>
    %282 = arith.addf %281, %277 : vector<32x128xf32>
    %283 = arith.mulf %141, %214 : vector<32x128xf32>
    %284 = arith.addf %283, %277 : vector<32x128xf32>
    %cst_82 = arith.constant 0.000000e+00 : f32
    %285 = vector.broadcast %cst_82 : f32 to vector<32x128xf32>
    %286 = arith.subf %285, %280 : vector<32x128xf32>
    %287 = arith.mulf %138, %217 : vector<32x128xf32>
    %288 = arith.mulf %144, %214 : vector<32x128xf32>
    %289 = arith.addf %287, %288 : vector<32x128xf32>
    %290 = arith.mulf %138, %220 : vector<32x128xf32>
    %291 = arith.mulf %147, %214 : vector<32x128xf32>
    %292 = arith.addf %290, %291 : vector<32x128xf32>
    %293 = arith.mulf %144, %213 : vector<32x128xf32>
    %294 = arith.mulf %141, %217 : vector<32x128xf32>
    %295 = arith.addf %293, %294 : vector<32x128xf32>
    %296 = arith.mulf %147, %213 : vector<32x128xf32>
    %297 = arith.mulf %141, %220 : vector<32x128xf32>
    %298 = arith.addf %296, %297 : vector<32x128xf32>
    %cst_83 = arith.constant 0.000000e+00 : f32
    %299 = vector.broadcast %cst_83 : f32 to vector<32x128xf32>
    %300 = arith.subf %299, %298 : vector<32x128xf32>
    %301 = arith.mulf %282, %11 : vector<32x128xf32>
    %302 = arith.mulf %280, %17 : vector<32x128xf32>
    %303 = arith.subf %301, %302 : vector<32x128xf32>
    %304 = arith.mulf %289, %23 : vector<32x128xf32>
    %305 = arith.addf %303, %304 : vector<32x128xf32>
    %306 = arith.mulf %292, %29 : vector<32x128xf32>
    %307 = arith.subf %305, %306 : vector<32x128xf32>
    %308 = arith.mulf %282, %17 : vector<32x128xf32>
    %309 = arith.mulf %280, %11 : vector<32x128xf32>
    %310 = arith.addf %308, %309 : vector<32x128xf32>
    %311 = arith.mulf %289, %29 : vector<32x128xf32>
    %312 = arith.addf %310, %311 : vector<32x128xf32>
    %313 = arith.mulf %292, %23 : vector<32x128xf32>
    %314 = arith.addf %312, %313 : vector<32x128xf32>
    %315 = arith.mulf %295, %11 : vector<32x128xf32>
    %316 = arith.mulf %300, %17 : vector<32x128xf32>
    %317 = arith.subf %315, %316 : vector<32x128xf32>
    %318 = arith.mulf %284, %23 : vector<32x128xf32>
    %319 = arith.addf %317, %318 : vector<32x128xf32>
    %320 = arith.mulf %286, %29 : vector<32x128xf32>
    %321 = arith.subf %319, %320 : vector<32x128xf32>
    %322 = arith.mulf %295, %17 : vector<32x128xf32>
    %323 = arith.mulf %300, %11 : vector<32x128xf32>
    %324 = arith.addf %322, %323 : vector<32x128xf32>
    %325 = arith.mulf %284, %29 : vector<32x128xf32>
    %326 = arith.addf %324, %325 : vector<32x128xf32>
    %327 = arith.mulf %286, %23 : vector<32x128xf32>
    %328 = arith.addf %326, %327 : vector<32x128xf32>
    %329 = arith.mulf %185, %217 : vector<32x128xf32>
    %330 = arith.mulf %188, %220 : vector<32x128xf32>
    %331 = arith.addf %329, %330 : vector<32x128xf32>
    %332 = arith.mulf %188, %217 : vector<32x128xf32>
    %333 = arith.mulf %185, %220 : vector<32x128xf32>
    %334 = arith.subf %332, %333 : vector<32x128xf32>
    %335 = arith.mulf %179, %213 : vector<32x128xf32>
    %336 = arith.addf %335, %331 : vector<32x128xf32>
    %337 = arith.mulf %182, %214 : vector<32x128xf32>
    %338 = arith.addf %337, %331 : vector<32x128xf32>
    %cst_84 = arith.constant 0.000000e+00 : f32
    %339 = vector.broadcast %cst_84 : f32 to vector<32x128xf32>
    %340 = arith.subf %339, %334 : vector<32x128xf32>
    %341 = arith.mulf %179, %217 : vector<32x128xf32>
    %342 = arith.mulf %185, %214 : vector<32x128xf32>
    %343 = arith.addf %341, %342 : vector<32x128xf32>
    %344 = arith.mulf %179, %220 : vector<32x128xf32>
    %345 = arith.mulf %188, %214 : vector<32x128xf32>
    %346 = arith.addf %344, %345 : vector<32x128xf32>
    %347 = arith.mulf %185, %213 : vector<32x128xf32>
    %348 = arith.mulf %182, %217 : vector<32x128xf32>
    %349 = arith.addf %347, %348 : vector<32x128xf32>
    %350 = arith.mulf %188, %213 : vector<32x128xf32>
    %351 = arith.mulf %182, %220 : vector<32x128xf32>
    %352 = arith.addf %350, %351 : vector<32x128xf32>
    %cst_85 = arith.constant 0.000000e+00 : f32
    %353 = vector.broadcast %cst_85 : f32 to vector<32x128xf32>
    %354 = arith.subf %353, %352 : vector<32x128xf32>
    %355 = arith.mulf %336, %11 : vector<32x128xf32>
    %356 = arith.mulf %334, %17 : vector<32x128xf32>
    %357 = arith.subf %355, %356 : vector<32x128xf32>
    %358 = arith.mulf %343, %23 : vector<32x128xf32>
    %359 = arith.addf %357, %358 : vector<32x128xf32>
    %360 = arith.mulf %346, %29 : vector<32x128xf32>
    %361 = arith.subf %359, %360 : vector<32x128xf32>
    %362 = arith.mulf %336, %17 : vector<32x128xf32>
    %363 = arith.mulf %334, %11 : vector<32x128xf32>
    %364 = arith.addf %362, %363 : vector<32x128xf32>
    %365 = arith.mulf %343, %29 : vector<32x128xf32>
    %366 = arith.addf %364, %365 : vector<32x128xf32>
    %367 = arith.mulf %346, %23 : vector<32x128xf32>
    %368 = arith.addf %366, %367 : vector<32x128xf32>
    %369 = arith.mulf %349, %11 : vector<32x128xf32>
    %370 = arith.mulf %354, %17 : vector<32x128xf32>
    %371 = arith.subf %369, %370 : vector<32x128xf32>
    %372 = arith.mulf %338, %23 : vector<32x128xf32>
    %373 = arith.addf %371, %372 : vector<32x128xf32>
    %374 = arith.mulf %340, %29 : vector<32x128xf32>
    %375 = arith.subf %373, %374 : vector<32x128xf32>
    %376 = arith.mulf %349, %17 : vector<32x128xf32>
    %377 = arith.mulf %354, %11 : vector<32x128xf32>
    %378 = arith.addf %376, %377 : vector<32x128xf32>
    %379 = arith.mulf %338, %29 : vector<32x128xf32>
    %380 = arith.addf %378, %379 : vector<32x128xf32>
    %381 = arith.mulf %340, %23 : vector<32x128xf32>
    %382 = arith.addf %380, %381 : vector<32x128xf32>
    %383 = vector.broadcast %1 : f32 to vector<32x128xf32>
    %384 = arith.mulf %253, %383 : vector<32x128xf32>
    %c0_86 = arith.constant 0 : index
    %c0_87 = arith.constant 0 : index
    %c0_88 = arith.constant 0 : index
    %c0_89 = arith.constant 0 : index
    %c0_90 = arith.constant 0 : index
    %385 = vector.load %arg6[%c0_86, %c0_87, %c0_88, %c0_89, %c0_90] : memref<1x3x2x32x128xf32, #tpu.memory_space<vmem>>, vector<1x1x1x32x128xf32>
    %386 = vector.shape_cast %385 : vector<1x1x1x32x128xf32> to vector<32x128xf32>
    %387 = vector.shape_cast %384 : vector<32x128xf32> to vector<1x1x1x32x128xf32>
    tpu.vector_store %arg6[%c0_86, %c0_87, %c0_88, %c0_89, %c0_90], %387 {strides = array<i32>} : memref<1x3x2x32x128xf32, #tpu.memory_space<vmem>>, vector<1x1x1x32x128xf32>,
    %388 = vector.broadcast %1 : f32 to vector<32x128xf32>
    %389 = arith.mulf %267, %388 : vector<32x128xf32>
    %c0_91 = arith.constant 0 : index
    %c0_92 = arith.constant 0 : index
    %c1_93 = arith.constant 1 : index
    %c0_94 = arith.constant 0 : index
    %c0_95 = arith.constant 0 : index
    %390 = vector.load %arg6[%c0_91, %c0_92, %c1_93, %c0_94, %c0_95] : memref<1x3x2x32x128xf32, #tpu.memory_space<vmem>>, vector<1x1x1x32x128xf32>
    %391 = vector.shape_cast %390 : vector<1x1x1x32x128xf32> to vector<32x128xf32>
    %392 = vector.shape_cast %389 : vector<32x128xf32> to vector<1x1x1x32x128xf32>
    tpu.vector_store %arg6[%c0_91, %c0_92, %c1_93, %c0_94, %c0_95], %392 {strides = array<i32>} : memref<1x3x2x32x128xf32, #tpu.memory_space<vmem>>, vector<1x1x1x32x128xf32>,
    %393 = vector.broadcast %1 : f32 to vector<32x128xf32>
    %394 = arith.mulf %260, %393 : vector<32x128xf32>
    %c0_96 = arith.constant 0 : index
    %c0_97 = arith.constant 0 : index
    %c0_98 = arith.constant 0 : index
    %c0_99 = arith.constant 0 : index
    %c0_100 = arith.constant 0 : index
    %395 = vector.load %arg7[%c0_96, %c0_97, %c0_98, %c0_99, %c0_100] : memref<1x3x2x32x128xf32, #tpu.memory_space<vmem>>, vector<1x1x1x32x128xf32>
    %396 = vector.shape_cast %395 : vector<1x1x1x32x128xf32> to vector<32x128xf32>
    %397 = vector.shape_cast %394 : vector<32x128xf32> to vector<1x1x1x32x128xf32>
    tpu.vector_store %arg7[%c0_96, %c0_97, %c0_98, %c0_99, %c0_100], %397 {strides = array<i32>} : memref<1x3x2x32x128xf32, #tpu.memory_space<vmem>>, vector<1x1x1x32x128xf32>,
    %398 = vector.broadcast %1 : f32 to vector<32x128xf32>
    %399 = arith.mulf %274, %398 : vector<32x128xf32>
    %c0_101 = arith.constant 0 : index
    %c0_102 = arith.constant 0 : index
    %c1_103 = arith.constant 1 : index
    %c0_104 = arith.constant 0 : index
    %c0_105 = arith.constant 0 : index
    %400 = vector.load %arg7[%c0_101, %c0_102, %c1_103, %c0_104, %c0_105] : memref<1x3x2x32x128xf32, #tpu.memory_space<vmem>>, vector<1x1x1x32x128xf32>
    %401 = vector.shape_cast %400 : vector<1x1x1x32x128xf32> to vector<32x128xf32>
    %402 = vector.shape_cast %399 : vector<32x128xf32> to vector<1x1x1x32x128xf32>
    tpu.vector_store %arg7[%c0_101, %c0_102, %c1_103, %c0_104, %c0_105], %402 {strides = array<i32>} : memref<1x3x2x32x128xf32, #tpu.memory_space<vmem>>, vector<1x1x1x32x128xf32>,
    %403 = vector.broadcast %1 : f32 to vector<32x128xf32>
    %404 = arith.mulf %307, %403 : vector<32x128xf32>
    %c0_106 = arith.constant 0 : index
    %c1_107 = arith.constant 1 : index
    %c0_108 = arith.constant 0 : index
    %c0_109 = arith.constant 0 : index
    %c0_110 = arith.constant 0 : index
    %405 = vector.load %arg6[%c0_106, %c1_107, %c0_108, %c0_109, %c0_110] : memref<1x3x2x32x128xf32, #tpu.memory_space<vmem>>, vector<1x1x1x32x128xf32>
    %406 = vector.shape_cast %405 : vector<1x1x1x32x128xf32> to vector<32x128xf32>
    %407 = vector.shape_cast %404 : vector<32x128xf32> to vector<1x1x1x32x128xf32>
    tpu.vector_store %arg6[%c0_106, %c1_107, %c0_108, %c0_109, %c0_110], %407 {strides = array<i32>} : memref<1x3x2x32x128xf32, #tpu.memory_space<vmem>>, vector<1x1x1x32x128xf32>,
    %408 = vector.broadcast %1 : f32 to vector<32x128xf32>
    %409 = arith.mulf %321, %408 : vector<32x128xf32>
    %c0_111 = arith.constant 0 : index
    %c1_112 = arith.constant 1 : index
    %c1_113 = arith.constant 1 : index
    %c0_114 = arith.constant 0 : index
    %c0_115 = arith.constant 0 : index
    %410 = vector.load %arg6[%c0_111, %c1_112, %c1_113, %c0_114, %c0_115] : memref<1x3x2x32x128xf32, #tpu.memory_space<vmem>>, vector<1x1x1x32x128xf32>
    %411 = vector.shape_cast %410 : vector<1x1x1x32x128xf32> to vector<32x128xf32>
    %412 = vector.shape_cast %409 : vector<32x128xf32> to vector<1x1x1x32x128xf32>
    tpu.vector_store %arg6[%c0_111, %c1_112, %c1_113, %c0_114, %c0_115], %412 {strides = array<i32>} : memref<1x3x2x32x128xf32, #tpu.memory_space<vmem>>, vector<1x1x1x32x128xf32>,
    %413 = vector.broadcast %1 : f32 to vector<32x128xf32>
    %414 = arith.mulf %314, %413 : vector<32x128xf32>
    %c0_116 = arith.constant 0 : index
    %c1_117 = arith.constant 1 : index
    %c0_118 = arith.constant 0 : index
    %c0_119 = arith.constant 0 : index
    %c0_120 = arith.constant 0 : index
    %415 = vector.load %arg7[%c0_116, %c1_117, %c0_118, %c0_119, %c0_120] : memref<1x3x2x32x128xf32, #tpu.memory_space<vmem>>, vector<1x1x1x32x128xf32>
    %416 = vector.shape_cast %415 : vector<1x1x1x32x128xf32> to vector<32x128xf32>
    %417 = vector.shape_cast %414 : vector<32x128xf32> to vector<1x1x1x32x128xf32>
    tpu.vector_store %arg7[%c0_116, %c1_117, %c0_118, %c0_119, %c0_120], %417 {strides = array<i32>} : memref<1x3x2x32x128xf32, #tpu.memory_space<vmem>>, vector<1x1x1x32x128xf32>,
    %418 = vector.broadcast %1 : f32 to vector<32x128xf32>
    %419 = arith.mulf %328, %418 : vector<32x128xf32>
    %c0_121 = arith.constant 0 : index
    %c1_122 = arith.constant 1 : index
    %c1_123 = arith.constant 1 : index
    %c0_124 = arith.constant 0 : index
    %c0_125 = arith.constant 0 : index
    %420 = vector.load %arg7[%c0_121, %c1_122, %c1_123, %c0_124, %c0_125] : memref<1x3x2x32x128xf32, #tpu.memory_space<vmem>>, vector<1x1x1x32x128xf32>
    %421 = vector.shape_cast %420 : vector<1x1x1x32x128xf32> to vector<32x128xf32>
    %422 = vector.shape_cast %419 : vector<32x128xf32> to vector<1x1x1x32x128xf32>
    tpu.vector_store %arg7[%c0_121, %c1_122, %c1_123, %c0_124, %c0_125], %422 {strides = array<i32>} : memref<1x3x2x32x128xf32, #tpu.memory_space<vmem>>, vector<1x1x1x32x128xf32>,
    %423 = vector.broadcast %1 : f32 to vector<32x128xf32>
    %424 = arith.mulf %361, %423 : vector<32x128xf32>
    %c0_126 = arith.constant 0 : index
    %c2_127 = arith.constant 2 : index
    %c0_128 = arith.constant 0 : index
    %c0_129 = arith.constant 0 : index
    %c0_130 = arith.constant 0 : index
    %425 = vector.load %arg6[%c0_126, %c2_127, %c0_128, %c0_129, %c0_130] : memref<1x3x2x32x128xf32, #tpu.memory_space<vmem>>, vector<1x1x1x32x128xf32>
    %426 = vector.shape_cast %425 : vector<1x1x1x32x128xf32> to vector<32x128xf32>
    %427 = vector.shape_cast %424 : vector<32x128xf32> to vector<1x1x1x32x128xf32>
    tpu.vector_store %arg6[%c0_126, %c2_127, %c0_128, %c0_129, %c0_130], %427 {strides = array<i32>} : memref<1x3x2x32x128xf32, #tpu.memory_space<vmem>>, vector<1x1x1x32x128xf32>,
    %428 = vector.broadcast %1 : f32 to vector<32x128xf32>
    %429 = arith.mulf %375, %428 : vector<32x128xf32>
    %c0_131 = arith.constant 0 : index
    %c2_132 = arith.constant 2 : index
    %c1_133 = arith.constant 1 : index
    %c0_134 = arith.constant 0 : index
    %c0_135 = arith.constant 0 : index
    %430 = vector.load %arg6[%c0_131, %c2_132, %c1_133, %c0_134, %c0_135] : memref<1x3x2x32x128xf32, #tpu.memory_space<vmem>>, vector<1x1x1x32x128xf32>
    %431 = vector.shape_cast %430 : vector<1x1x1x32x128xf32> to vector<32x128xf32>
    %432 = vector.shape_cast %429 : vector<32x128xf32> to vector<1x1x1x32x128xf32>
    tpu.vector_store %arg6[%c0_131, %c2_132, %c1_133, %c0_134, %c0_135], %432 {strides = array<i32>} : memref<1x3x2x32x128xf32, #tpu.memory_space<vmem>>, vector<1x1x1x32x128xf32>,
    %433 = vector.broadcast %1 : f32 to vector<32x128xf32>
    %434 = arith.mulf %368, %433 : vector<32x128xf32>
    %c0_136 = arith.constant 0 : index
    %c2_137 = arith.constant 2 : index
    %c0_138 = arith.constant 0 : index
    %c0_139 = arith.constant 0 : index
    %c0_140 = arith.constant 0 : index
    %435 = vector.load %arg7[%c0_136, %c2_137, %c0_138, %c0_139, %c0_140] : memref<1x3x2x32x128xf32, #tpu.memory_space<vmem>>, vector<1x1x1x32x128xf32>
    %436 = vector.shape_cast %435 : vector<1x1x1x32x128xf32> to vector<32x128xf32>
    %437 = vector.shape_cast %434 : vector<32x128xf32> to vector<1x1x1x32x128xf32>
    tpu.vector_store %arg7[%c0_136, %c2_137, %c0_138, %c0_139, %c0_140], %437 {strides = array<i32>} : memref<1x3x2x32x128xf32, #tpu.memory_space<vmem>>, vector<1x1x1x32x128xf32>,
    %438 = vector.broadcast %1 : f32 to vector<32x128xf32>
    %439 = arith.mulf %382, %438 : vector<32x128xf32>
    %c0_141 = arith.constant 0 : index
    %c2_142 = arith.constant 2 : index
    %c1_143 = arith.constant 1 : index
    %c0_144 = arith.constant 0 : index
    %c0_145 = arith.constant 0 : index
    %440 = vector.load %arg7[%c0_141, %c2_142, %c1_143, %c0_144, %c0_145] : memref<1x3x2x32x128xf32, #tpu.memory_space<vmem>>, vector<1x1x1x32x128xf32>
    %441 = vector.shape_cast %440 : vector<1x1x1x32x128xf32> to vector<32x128xf32>
    %442 = vector.shape_cast %439 : vector<32x128xf32> to vector<1x1x1x32x128xf32>
    tpu.vector_store %arg7[%c0_141, %c2_142, %c1_143, %c0_144, %c0_145], %442 {strides = array<i32>} : memref<1x3x2x32x128xf32, #tpu.memory_space<vmem>>, vector<1x1x1x32x128xf32>,
    return
  }
  func.func @transform_0(%arg0: i32, %arg1: i32) -> i32 {
    %c0_i32 = arith.constant 0 : i32
    %c0_i32_0 = arith.constant 0 : i32
    return %c0_i32 : i32
  }
  func.func @transform_1(%arg0: i32, %arg1: i32) -> (i32, i32, i32, i32, i32) {
    %c0_i32 = arith.constant 0 : i32
    %c0_i32_0 = arith.constant 0 : i32
    %c0_i32_1 = arith.constant 0 : i32
    %c0_i32_2 = arith.constant 0 : i32
    return %arg0, %c0_i32, %c0_i32_0, %arg1, %c0_i32_1 : i32, i32, i32, i32, i32
  }
  func.func @transform_2(%arg0: i32, %arg1: i32) -> (i32, i32, i32, i32) {
    %c0_i32 = arith.constant 0 : i32
    %c0_i32_0 = arith.constant 0 : i32
    %c0_i32_1 = arith.constant 0 : i32
    return %arg0, %c0_i32, %arg1, %c0_i32_0 : i32, i32, i32, i32
  }
  func.func @transform_3(%arg0: i32, %arg1: i32) -> (i32, i32, i32, i32) {
    %c0_i32 = arith.constant 0 : i32
    %c0_i32_0 = arith.constant 0 : i32
    %c0_i32_1 = arith.constant 0 : i32
    return %arg0, %c0_i32, %arg1, %c0_i32_0 : i32, i32, i32, i32
  }
  func.func @transform_4(%arg0: i32, %arg1: i32) -> (i32, i32, i32, i32, i32) {
    %c0_i32 = arith.constant 0 : i32
    %c0_i32_0 = arith.constant 0 : i32
    %c0_i32_1 = arith.constant 0 : i32
    %c0_i32_2 = arith.constant 0 : i32
    return %arg0, %c0_i32, %c0_i32_0, %arg1, %c0_i32_1 : i32, i32, i32, i32, i32
  }
  func.func @transform_5(%arg0: i32, %arg1: i32) -> (i32, i32, i32, i32, i32) {
    %c0_i32 = arith.constant 0 : i32
    %c0_i32_0 = arith.constant 0 : i32
    %c0_i32_1 = arith.constant 0 : i32
    %c0_i32_2 = arith.constant 0 : i32
    return %arg0, %c0_i32, %c0_i32_0, %arg1, %c0_i32_1 : i32, i32, i32, i32, i32
  }
}

</mosaic_0001>

<llo_original>
// kernel: custom-call.1
$region0: #{custom-call.1}
  %s0 = inlined_call_operand.hbm [shape: c64[2,2,72,120], index: 0, kind: input, shape index: {}]
  %s1 = inlined_call_operand.vmem [shape: f32[2,2,72,120], index: 1, kind: output, shape index: {}]
  %s2 = scalar_lea.hbm %s0, 288
  $region1: #{custom-call.1} parent=0
    #allocation0 [shape = 's32[1]{0}', space=sflag, size = 0x4, scoped, tag = 'scoped memory for custom-call.1']
    %3 = vsyncpa [#allocation0], 0
    %s5 = sshll.u32 %s2, 4
    %s6 = int_to_ptr.hbm [resolvable:$true] %s5
    %s7 = sshll.u32 %s1, 4
    %s8 = int_to_ptr.vmem [resolvable:$true] %s7
    %10 = dma.hbm_to_vmem [thread:$0]  %s6, 4608, %s8, [#allocation0]
    %12 = dma.done [#allocation0], 4608
    %13 = vsyncpa [#allocation0], 1

// kernel: custom-call
$region0: #{custom-call}
  %s0 = inlined_call_operand.hbm [shape: c64[2,2,72,120], index: 0, kind: input, shape index: {}]
  %s1 = inlined_call_operand.vmem [shape: f32[2,2,72,120], index: 1, kind: output, shape index: {}]
  $region1: #{custom-call} parent=0
    #allocation0 [shape = 's32[1]{0}', space=sflag, size = 0x4, scoped, tag = 'scoped memory for custom-call']
    %2 = vsyncpa [#allocation0], 0
    %s4 = sshll.u32 %s0, 4
    %s5 = int_to_ptr.hbm [resolvable:$true] %s4
    %s6 = sshll.u32 %s1, 4
    %s7 = int_to_ptr.vmem [resolvable:$true] %s6
    %9 = dma.hbm_to_vmem [thread:$0]  %s5, 4608, %s7, [#allocation0]
    %11 = dma.done [#allocation0], 4608
    %12 = vsyncpa [#allocation0], 1

// kernel: custom-call.2
$region0: #{custom-call.2}
  %s0 = inlined_call_operand.vmem [shape: f32[2,3,2,72,120], index: 0, kind: input, shape index: {}]
  %s1 = inlined_call_operand.vmem [shape: f32[2,3,2,72,120], index: 1, kind: input, shape index: {}]
  %s2 = inlined_call_operand.hbm [shape: c64[2,3,2,72,120], index: 2, kind: output, shape index: {}]
  %s3 = scalar_lea.hbm %s2, 864
  $region1: #{custom-call.2} parent=0
    #allocation0 [shape = 's32[1]{0}', space=sflag, size = 0x4, scoped, tag = 'scoped memory for custom-call.2']
    %4 = vsyncpa [#allocation0], 0
    %s6 = sshll.u32 %s0, 4
    %s7 = int_to_ptr.vmem [resolvable:$true] %s6
    %s8 = sshll.u32 %s2, 4
    %s9 = int_to_ptr.hbm [resolvable:$true] %s8
    %11 = dma.vmem_to_hbm [thread:$0]  %s7, 13824, %s9, [#allocation0]
    %13 = dma.done [#allocation0], 13824
    %14 = vsyncpa [#allocation0], 1
  $region2: #{custom-call.2} parent=0
    #allocation1 [shape = 's32[1]{0}', space=sflag, size = 0x4, scoped, tag = 'scoped memory for custom-call.2']
    %15 = vsyncpa [#allocation1], 0
    %s17 = sshll.u32 %s1, 4
    %s18 = int_to_ptr.vmem [resolvable:$true] %s17
    %s19 = sshll.u32 %s3, 4
    %s20 = int_to_ptr.hbm [resolvable:$true] %s19
    %22 = dma.vmem_to_hbm [thread:$0]  %s18, 13824, %s20, [#allocation1]
    %24 = dma.done [#allocation1], 13824
    %25 = vsyncpa [#allocation1], 1

// kernel: _forward.1
$region0: #{_forward.1}
  #allocation0 [shape = 'u32[]', space=smem, size = 0x4, offset = 0x4, fixed_abs, tag = 'smem constant byte address 0x4 - core index']
  #allocation1 [shape = 'u32[72,128]{1,0:T(1,128)}', space=vmem, size = 0x9000, scoped, tag = 'internal scratch']
  #allocation10 [shape = 's32[]', space=sflag, size = 0x4, offset = 0, fixed_abs, tag = 'sflag constant byte address 0x0 - dummy sync flag']
  %s0 = inlined_call_operand.vmem [shape: f32[2], index: 0, kind: input, shape index: {}]
  %s1 = inlined_call_operand.hbm [shape: f32[2,3,2,72,120], index: 1, kind: input, shape index: {}]
  %s2 = inlined_call_operand.vmem [shape: f32[2,2,72,120], index: 2, kind: input, shape index: {}]
  %s3 = inlined_call_operand.vmem [shape: f32[2,2,72,120], index: 3, kind: input, shape index: {}]
  %s4 = inlined_call_operand.vmem [shape: f32[2,3,2,72,120], index: 4, kind: output, shape index: {0}]
  %s5 = inlined_call_operand.vmem [shape: f32[2,3,2,72,120], index: 5, kind: output, shape index: {1}]
  %6 = xla_tuple %s4, %s5
  %s7 = sld [smem:[#allocation0]]
  $region265: #{_forward.1} parent=0
    _
  %s9 = ssub.s32 1, %s7
  %s10 = scalar_select 0, %s9, %s7
  $region1: #{_forward.1} parent=0
    #allocation2 [shape = 'u8[512]{0}', space=smem, size = 0x200, scoped, tag = 'input window, operand 0, single buffered']
    #allocation3 [shape = 's32[2]{0}', space=sflag, size = 0x8, scoped, tag = 'scoped memory for _forward.1']
    #allocation4 [shape = 's32[2]{0}', space=sflag, size = 0x8, scoped, tag = 'scoped memory for _forward.1']
    #allocation5 [shape = 'u8[196608]{0}', space=vmem, size = 0x30000, scoped, tag = 'input window, operand 1']
    #allocation6 [shape = 'u8[65536]{0}', space=vmem, size = 0x10000, scoped, tag = 'input window, operand 2']
    #allocation7 [shape = 'u8[65536]{0}', space=vmem, size = 0x10000, scoped, tag = 'input window, operand 3']
    #allocation8 [shape = 'u8[196608]{0}', space=vmem, size = 0x30000, scoped, tag = 'output window, operand 0']
    #allocation9 [shape = 'u8[196608]{0}', space=vmem, size = 0x30000, scoped, tag = 'output window, operand 1']
    %11 = vsyncpa [#allocation4], 0
    %12 = vsyncpa [#allocation3], 0
    %s13 = scalar_lea.sflag [#allocation3], 1
    %14 = vsyncpa %s13, 0
    loop: start=0, step=1, limit=8
    $region2: #{_forward.1} parent=1 // loop_pre_header
      _
    $region3: #{_forward.1} parent=1 // loop_header
      %s16 = sphi 0, %s20
      %p17 = scmp.ge.s32.totalorder %s16, 8
      %s23 = sphi 0, %s35
      %s24 = sphi 0, %s31
      %s25 = sphi 0, %s23
      %s26 = sphi 0, %s24
      %s27 = sphi 0, %s25
      %s28 = sphi 0, %s26
      %s36 = sphi 0, %s36
      %s38 = sphi 0, %s36
      %s39 = sphi 0, %s38
      %s53 = sphi 0, %s39
      %s61 = sphi 0, %s63
      %s64 = sphi 0, %s61
      %s65 = sphi 0, %s64
      %s81 = sphi 0, %s65
      %s89 = sphi 0, %s91
      %s92 = sphi 0, %s89
      %s93 = sphi 0, %s92
      %s109 = sphi 0, %s93
      %s117 = sphi 0, %s119
      %s120 = sphi 0, %s117
      %s121 = sphi 0, %s120
      %s137 = sphi 0, %s121
      %s145 = sphi 0, %s147
      %s148 = sphi 0, %s145
      %s149 = sphi 0, %s148
      %s165 = sphi 0, %s149
      %s173 = sphi 0, %s175
      %s176 = sphi 0, %s173
      %s177 = sphi 0, %s176
      %s193 = sphi 0, %s177
    $region4: #{_forward.1} parent=1 // loop_header_branch
      %19 = sbr.rel (%p17) target = $region8
    $region5: #{_forward.1} parent=1 // loop_body
      %s21 = ssub.s32 %s16, 1
      %s22 = ssub.s32 %s16, 2
      %s29 = sadd.s32 1, %s24
      %p30 = scmp.ge.s32.totalorder %s29, 3
      %s31 = scalar_select %p30, 0, %s29
      %s32 = sadd.s32 1, %s23
      %s33 = scalar_select %p30, %s32, %s23
      %p34 = scmp.ge.s32.totalorder %s33, 2
      %s35 = scalar_select %p34, 0, %s33
      %s37 = sadd.s32 %s36, 1
      %p40 = scmp.eq.s32.totalorder %s16, 5
      %p41 = scmp.ne.s32.totalorder %s36, %s38
      %p42 = scmp.eq.s32.totalorder %s16, 0
      %p43 = por %p41, %p42
      %p44 = scmp.ne.s32.totalorder %s36, %s38
      %p45 = scmp.eq.s32.totalorder %s21, 5
      %p46 = por %p44, %p45
      %p47 = scmp.ne.s32.totalorder %s38, %s39
      %p48 = scmp.eq.s32.totalorder %s21, 0
      %p49 = por %p47, %p48
      %p50 = scmp.ne.s32.totalorder %s38, %s39
      %p51 = scmp.eq.s32.totalorder %s22, 5
      %p52 = por %p50, %p51
      %p54 = scmp.ne.s32.totalorder %s39, %s53
      %p55 = scmp.eq.s32.totalorder %s22, 0
      %p56 = por %p54, %p55
      %s57 = ssub.s32 %s23, %s35
      %s58 = ssub.s32 %s24, %s31
      %s59 = sor.u32 %s57, %s58
      %p60 = scmp.eq.s32.totalorder %s59, 0
      %s62 = sadd.s32 %s61, 1
      %s63 = scalar_select %p60, %s61, %s62
      %p66 = pneg %p60
      %p67 = scmp.eq.s32.totalorder %s16, 5
      %p68 = por %p66, %p67
      %p69 = scmp.ne.s32.totalorder %s61, %s64
      %p70 = scmp.eq.s32.totalorder %s16, 0
      %p71 = por %p69, %p70
      %p72 = scmp.ne.s32.totalorder %s61, %s64
      %p73 = scmp.eq.s32.totalorder %s21, 5
      %p74 = por %p72, %p73
      %p75 = scmp.ne.s32.totalorder %s64, %s65
      %p76 = scmp.eq.s32.totalorder %s21, 0
      %p77 = por %p75, %p76
      %p78 = scmp.ne.s32.totalorder %s64, %s65
      %p79 = scmp.eq.s32.totalorder %s22, 5
      %p80 = por %p78, %p79
      %p82 = scmp.ne.s32.totalorder %s65, %s81
      %p83 = scmp.eq.s32.totalorder %s22, 0
      %p84 = por %p82, %p83
      %s85 = ssub.s32 %s23, %s35
      %s86 = ssub.s32 %s24, %s31
      %s87 = sor.u32 %s85, %s86
      %p88 = scmp.eq.s32.totalorder %s87, 0
      %s90 = sadd.s32 %s89, 1
      %s91 = scalar_select %p88, %s89, %s90
      %p94 = pneg %p88
      %p95 = scmp.eq.s32.totalorder %s16, 5
      %p96 = por %p94, %p95
      %p97 = scmp.ne.s32.totalorder %s89, %s92
      %p98 = scmp.eq.s32.totalorder %s16, 0
      %p99 = por %p97, %p98
      %p100 = scmp.ne.s32.totalorder %s89, %s92
      %p101 = scmp.eq.s32.totalorder %s21, 5
      %p102 = por %p100, %p101
      %p103 = scmp.ne.s32.totalorder %s92, %s93
      %p104 = scmp.eq.s32.totalorder %s21, 0
      %p105 = por %p103, %p104
      %p106 = scmp.ne.s32.totalorder %s92, %s93
      %p107 = scmp.eq.s32.totalorder %s22, 5
      %p108 = por %p106, %p107
      %p110 = scmp.ne.s32.totalorder %s93, %s109
      %p111 = scmp.eq.s32.totalorder %s22, 0
      %p112 = por %p110, %p111
      %s113 = ssub.s32 %s23, %s35
      %s114 = ssub.s32 %s24, %s31
      %s115 = sor.u32 %s113, %s114
      %p116 = scmp.eq.s32.totalorder %s115, 0
      %s118 = sadd.s32 %s117, 1
      %s119 = scalar_select %p116, %s117, %s118
      %p122 = pneg %p116
      %p123 = scmp.eq.s32.totalorder %s16, 5
      %p124 = por %p122, %p123
      %p125 = scmp.ne.s32.totalorder %s117, %s120
      %p126 = scmp.eq.s32.totalorder %s16, 0
      %p127 = por %p125, %p126
      %p128 = scmp.ne.s32.totalorder %s117, %s120
      %p129 = scmp.eq.s32.totalorder %s21, 5
      %p130 = por %p128, %p129
      %p131 = scmp.ne.s32.totalorder %s120, %s121
      %p132 = scmp.eq.s32.totalorder %s21, 0
      %p133 = por %p131, %p132
      %p134 = scmp.ne.s32.totalorder %s120, %s121
      %p135 = scmp.eq.s32.totalorder %s22, 5
      %p136 = por %p134, %p135
      %p138 = scmp.ne.s32.totalorder %s121, %s137
      %p139 = scmp.eq.s32.totalorder %s22, 0
      %p140 = por %p138, %p139
      %s141 = ssub.s32 %s23, %s35
      %s142 = ssub.s32 %s24, %s31
      %s143 = sor.u32 %s141, %s142
      %p144 = scmp.eq.s32.totalorder %s143, 0
      %s146 = sadd.s32 %s145, 1
      %s147 = scalar_select %p144, %s145, %s146
      %p150 = pneg %p144
      %p151 = scmp.eq.s32.totalorder %s16, 5
      %p152 = por %p150, %p151
      %p153 = scmp.ne.s32.totalorder %s145, %s148
      %p154 = scmp.eq.s32.totalorder %s16, 0
      %p155 = por %p153, %p154
      %p156 = scmp.ne.s32.totalorder %s145, %s148
      %p157 = scmp.eq.s32.totalorder %s21, 5
      %p158 = por %p156, %p157
      %p159 = scmp.ne.s32.totalorder %s148, %s149
      %p160 = scmp.eq.s32.totalorder %s21, 0
      %p161 = por %p159, %p160
      %p162 = scmp.ne.s32.totalorder %s148, %s149
      %p163 = scmp.eq.s32.totalorder %s22, 5
      %p164 = por %p162, %p163
      %p166 = scmp.ne.s32.totalorder %s149, %s165
      %p167 = scmp.eq.s32.totalorder %s22, 0
      %p168 = por %p166, %p167
      %s169 = ssub.s32 %s23, %s35
      %s170 = ssub.s32 %s24, %s31
      %s171 = sor.u32 %s169, %s170
      %p172 = scmp.eq.s32.totalorder %s171, 0
      %s174 = sadd.s32 %s173, 1
      %s175 = scalar_select %p172, %s173, %s174
      %p178 = pneg %p172
      %p179 = scmp.eq.s32.totalorder %s16, 5
      %p180 = por %p178, %p179
      %p181 = scmp.ne.s32.totalorder %s173, %s176
      %p182 = scmp.eq.s32.totalorder %s16, 0
      %p183 = por %p181, %p182
      %p184 = scmp.ne.s32.totalorder %s173, %s176
      %p185 = scmp.eq.s32.totalorder %s21, 5
      %p186 = por %p184, %p185
      %p187 = scmp.ne.s32.totalorder %s176, %s177
      %p188 = scmp.eq.s32.totalorder %s21, 0
      %p189 = por %p187, %p188
      %p190 = scmp.ne.s32.totalorder %s176, %s177
      %p191 = scmp.eq.s32.totalorder %s22, 5
      %p192 = por %p190, %p191
      %p194 = scmp.ne.s32.totalorder %s177, %s193
      %p195 = scmp.eq.s32.totalorder %s22, 0
      %p196 = por %p194, %p195
      %p197 = scmp.le.s32.totalorder 1, %s16
      %p198 = scmp.lt.s32.totalorder %s16, 7
      %p199 = pnand %p197, %p198
      %p200 = pneg %p199
      // Predicated region
      $region9: #{_forward.1} parent=5 // pred_check
        _
      $region10: #{_forward.1} parent=5 // pred_check_branch
        %202 = sbr.rel (%p199) target = $region12
      $region11: #{_forward.1} parent=5 // pred_region
        %s203 = ssub.s32 %s16, 1
        // Predicated region
        $region13: #{_forward.1} parent=11 // pred_check
          %p204 = pneg %p49
        $region14: #{_forward.1} parent=11 // pred_check_branch
          %206 = sbr.rel (%p204) target = $region16
        $region15: #{_forward.1} parent=11 // pred_region
          %208 = vsyncadd [#allocation4], 0
          %s210 = sshll.u32 %s0, 4
          %s211 = int_to_ptr.vmem [resolvable:$true] %s210
          %213 = dma.vmem_to_smem %s211, 16, [#allocation2], [#allocation4]
        $region16: #{_forward.1} parent=11 // pred_fallthru
          _
      $region12: #{_forward.1} parent=5 // pred_fallthru
        _
      %p214 = scmp.lt.s32.totalorder %s16, 6
      // Predicated region
      $region17: #{_forward.1} parent=5 // pred_check
        %p215 = pneg %p214
      $region18: #{_forward.1} parent=5 // pred_check_branch
        %217 = sbr.rel (%p215) target = $region20
      $region19: #{_forward.1} parent=5 // pred_region
        // Predicated region
        $region21: #{_forward.1} parent=19 // pred_check
          %p218 = pneg %p71
        $region22: #{_forward.1} parent=19 // pred_check_branch
          %220 = sbr.rel (%p218) target = $region24
        $region23: #{_forward.1} parent=19 // pred_region
          #allocation11 [shape = 'u32[6]{0}', space=smem, size = 0x18, scoped, tag = 'DMA stride descriptor']
          %s221 = sand.u32 %s61, 1
          %s222 = scalar_lea.sflag [#allocation3], %s221
          %s223 = sand.u32 %s61, 1
          %s224 = smul.addr %s223, 192
          %s225 = scalar_lea.vmem [#allocation5], %s224
          %s226 = smul.u32 4, %s24
          %s227 = ssub.s32 9, %s226
          %p228 = scmp.lt.s32.totalorder %s227, 4
          %s229 = scalar_select %p228, %s227, 4
          %s230 = smul.u32 48, %s229
          %s231 = ssub.s32 192, %s230
          %s232 = sshll.u32 %s231, 4
          %233 = vsyncadd %s222, %s232
          %p234 = scmp.ne.s32.totalorder 0, %s230
          %s235 = smul.addr %s23, 54
          %s236 = sadd.s32 %s226, %s235
          %s237 = smul.addr %s236, 8
          %s238 = scalar_lea.hbm %s1, %s237
          %s239 = smul.u32 8, %s229
          %s240 = smul.u32 %s239, 6
          %s242 = sshll.u32 1, 14
          %s243 = sxor.u32 4294967295, %s242
          %s245 = sld [smem:[#allocation0]]
          %s246 = sadd.s32 2, %s245
          %s248 = sshll.u32 7, 26
          %s249 = sxor.u32 4294967295, %s248
          %s250 = sand.u32 0, %s249
          %s251 = sshll.u32 %s246, 26
          %s252 = sor.u32 %s250, %s251
          %s253 = sshll.u32 %s238, 4
          %s254 = int_to_ptr.hbm [resolvable:$true] %s253
          %s255 = sshll.u32 %s225, 4
          %s256 = int_to_ptr.vmem [resolvable:$true] %s255
          %s257 = sshll.u32 %s240, 4
          %262 = sst [smem:[#allocation11]] 1152
          %s263 = scalar_lea.smem [#allocation11], 1
          %264 = sst [smem:[%s263]] 512
          %s265 = scalar_lea.smem [#allocation11], 2
          %266 = sst [smem:[%s265]] %s229
          %s267 = scalar_lea.smem [#allocation11], 3
          %268 = sst [smem:[%s267]] 128
          %s269 = scalar_lea.smem [#allocation11], 4
          %270 = sst [smem:[%s269]] 128
          %s271 = scalar_lea.smem [#allocation11], 5
          %272 = sst [smem:[%s271]] 8
          %274 = dma.general (%p234), %s254, %s257, %s256, %s222, [#allocation10], [#allocation11], %s252, 0
        $region24: #{_forward.1} parent=19 // pred_fallthru
          _
        // Predicated region
        $region25: #{_forward.1} parent=19 // pred_check
          %p275 = pneg %p99
        $region26: #{_forward.1} parent=19 // pred_check_branch
          %277 = sbr.rel (%p275) target = $region28
        $region27: #{_forward.1} parent=19 // pred_region
          %s278 = sand.u32 %s89, 1
          %s279 = sand.u32 %s89, 1
          %s280 = smul.addr %s279, 64
          %s281 = scalar_lea.vmem [#allocation6], %s280
          %s282 = smul.u32 4, %s24
          %s283 = ssub.s32 9, %s282
          %p284 = scmp.lt.s32.totalorder %s283, 4
          %s285 = scalar_select %p284, %s283, 4
          %s286 = smul.u32 16, %s285
          %p287 = scmp.ne.s32.totalorder 0, %s286
          %s288 = smul.addr %s23, 18
          %s289 = sadd.s32 %s282, %s288
          %s290 = smul.addr %s289, 8
          %s291 = scalar_lea.vmem %s2, %s290
          // Predicated region
          $region29: #{_forward.1} parent=27 // pred_check
            %p292 = pneg %p287
          $region30: #{_forward.1} parent=27 // pred_check_branch
            %294 = sbr.rel (%p292) target = $region32
          $region31: #{_forward.1} parent=27 // pred_region
            // Predicated region
            $region33: #{_forward.1} parent=31 // pred_check
              _
            $region34: #{_forward.1} parent=31 // pred_check_branch
              %296 = sbr.rel (0) target = $region36
            $region35: #{_forward.1} parent=31 // pred_region
              // Predicated region
              $region55: #{_forward.1} parent=35 // pred_check
                _
              $region56: #{_forward.1} parent=35 // pred_check_branch
                %362 = sbr.rel (0) target = $region58
              $region57: #{_forward.1} parent=35 // pred_region
                %s363 = sshrl.u32 %s285, 2
                // While loop
                $region59: #{_forward.1} parent=57 // loop_pre_header
                  _
                $region60: #{_forward.1} parent=57 // loop_header
                  %s365 = sphi 0, %s367
                  %p366 = scmp.ge.s32.totalorder %s365, %s363
                  %s370 = sphi 0, %s391
                  %s371 = sphi %s291, %s394
                  %s372 = sphi %s281, %s395
                $region61: #{_forward.1} parent=57 // loop_header_branch
                  %369 = sbr.rel (%p366) target = $region65
                $region62: #{_forward.1} parent=57 // loop_body
                  %v373 = vld [vmem:[%s371] sm:$0xff]
                  %374 = vst [vmem:[%s372] sm:$0xff] %v373
                  %v375 = vld [vmem:[%s371 + $0x8] sm:$0xff]
                  %376 = vst [vmem:[%s372 + $0x8] sm:$0xff] %v375
                  %v377 = vld [vmem:[%s371 + $0x10] sm:$0xff]
                  %378 = vst [vmem:[%s372 + $0x10] sm:$0xff] %v377
                  %v379 = vld [vmem:[%s371 + $0x18] sm:$0xff]
                  %380 = vst [vmem:[%s372 + $0x18] sm:$0xff] %v379
                  %v381 = vld [vmem:[%s371 + $0x48] sm:$0xff]
                  %382 = vst [vmem:[%s372 + $0x20] sm:$0xff] %v381
                  %v383 = vld [vmem:[%s371 + $0x50] sm:$0xff]
                  %384 = vst [vmem:[%s372 + $0x28] sm:$0xff] %v383
                  %v385 = vld [vmem:[%s371 + $0x58] sm:$0xff]
                  %386 = vst [vmem:[%s372 + $0x30] sm:$0xff] %v385
                  %v387 = vld [vmem:[%s371 + $0x60] sm:$0xff]
                  %388 = vst [vmem:[%s372 + $0x38] sm:$0xff] %v387
                  %s389 = sadd.s32 1, %s370
                  %p390 = scmp.ge.s32.totalorder %s389, %s363
                  %s391 = scalar_select %p390, 0, %s389
                  %s392 = smul.u32 %s391, 32
                  %s393 = smul.u32 %s391, 32
                  %s394 = scalar_lea.vmem %s291, %s392
                  %s395 = scalar_lea.vmem %s281, %s393 [#allocation6]
                $region63: #{_forward.1} parent=57 // loop_footer
                  %s367 = sadd.s32 %s365, 1
                $region64: #{_forward.1} parent=57 // loop_footer_branch
                  %364 = sbr.rel target = $region60
                $region65: #{_forward.1} parent=57 // loop_exit
                  _
                %s396 = sshrl.u32 %s285, 2
                %s397 = sand.u32 %s285, 3
                %s398 = smul.u32 %s396, 4
                %s399 = smul.u32 8, %s398
                %s400 = scalar_lea.vmem %s291, %s399
                %s401 = smul.u32 8, %s398
                %s402 = scalar_lea.vmem %s281, %s401 [#allocation6]
                // While loop
                $region66: #{_forward.1} parent=57 // loop_pre_header
                  _
                $region67: #{_forward.1} parent=57 // loop_header
                  %s404 = sphi 0, %s406
                  %p405 = scmp.ge.s32.totalorder %s404, %s397
                  %s409 = sphi 0, %s418
                  %s410 = sphi %s400, %s421
                  %s411 = sphi %s402, %s422
                $region68: #{_forward.1} parent=57 // loop_header_branch
                  %408 = sbr.rel (%p405) target = $region72
                $region69: #{_forward.1} parent=57 // loop_body
                  %v412 = vld [vmem:[%s410] sm:$0xff]
                  %413 = vst [vmem:[%s411] sm:$0xff] %v412
                  %v414 = vld [vmem:[%s410 + $0x48] sm:$0xff]
                  %415 = vst [vmem:[%s411 + $0x20] sm:$0xff] %v414
                  %s416 = sadd.s32 1, %s409
                  %p417 = scmp.ge.s32.totalorder %s416, %s397
                  %s418 = scalar_select %p417, 0, %s416
                  %s419 = smul.u32 %s418, 8
                  %s420 = smul.u32 %s418, 8
                  %s421 = scalar_lea.vmem %s400, %s419
                  %s422 = scalar_lea.vmem %s402, %s420 [#allocation6]
                $region70: #{_forward.1} parent=57 // loop_footer
                  %s406 = sadd.s32 %s404, 1
                $region71: #{_forward.1} parent=57 // loop_footer_branch
                  %403 = sbr.rel target = $region67
                $region72: #{_forward.1} parent=57 // loop_exit
                  _
              $region58: #{_forward.1} parent=35 // pred_fallthru
                _
              // Predicated region
              $region73: #{_forward.1} parent=35 // pred_check
                _
              $region74: #{_forward.1} parent=35 // pred_check_branch
                %424 = sbr.rel target = $region76
              $region75: #{_forward.1} parent=35 // pred_region
                _
              $region76: #{_forward.1} parent=35 // pred_fallthru
                _
            $region36: #{_forward.1} parent=31 // pred_fallthru
              _
            // Predicated region
            $region37: #{_forward.1} parent=31 // pred_check
              _
            $region38: #{_forward.1} parent=31 // pred_check_branch
              %298 = sbr.rel target = $region40
            $region39: #{_forward.1} parent=31 // pred_region
              %s300 = ssub.s32 256, 1
              %s301 = sshrl.u32 %s285, 2
              // While loop
              $region41: #{_forward.1} parent=39 // loop_pre_header
                _
              $region42: #{_forward.1} parent=39 // loop_header
                %s303 = sphi 0, %s305
                %p304 = scmp.ge.s32.totalorder %s303, %s301
                %s308 = sphi 0, %s329
                %s309 = sphi %s291, %s332
                %s310 = sphi %s281, %s333
              $region43: #{_forward.1} parent=39 // loop_header_branch
                %307 = sbr.rel (%p304) target = $region47
              $region44: #{_forward.1} parent=39 // loop_body
                %v311 = vld [vmem:[%s309] sm:%s300]
                %312 = vst [vmem:[%s310] sm:%s300] %v311
                %v313 = vld [vmem:[%s309 + $0x8] sm:%s300]
                %314 = vst [vmem:[%s310 + $0x8] sm:%s300] %v313
                %v315 = vld [vmem:[%s309 + $0x10] sm:%s300]
                %316 = vst [vmem:[%s310 + $0x10] sm:%s300] %v315
                %v317 = vld [vmem:[%s309 + $0x18] sm:%s300]
                %318 = vst [vmem:[%s310 + $0x18] sm:%s300] %v317
                %v319 = vld [vmem:[%s309 + $0x48] sm:%s300]
                %320 = vst [vmem:[%s310 + $0x20] sm:%s300] %v319
                %v321 = vld [vmem:[%s309 + $0x50] sm:%s300]
                %322 = vst [vmem:[%s310 + $0x28] sm:%s300] %v321
                %v323 = vld [vmem:[%s309 + $0x58] sm:%s300]
                %324 = vst [vmem:[%s310 + $0x30] sm:%s300] %v323
                %v325 = vld [vmem:[%s309 + $0x60] sm:%s300]
                %326 = vst [vmem:[%s310 + $0x38] sm:%s300] %v325
                %s327 = sadd.s32 1, %s308
                %p328 = scmp.ge.s32.totalorder %s327, %s301
                %s329 = scalar_select %p328, 0, %s327
                %s330 = smul.u32 %s329, 32
                %s331 = smul.u32 %s329, 32
                %s332 = scalar_lea.vmem %s291, %s330
                %s333 = scalar_lea.vmem %s281, %s331 [#allocation6]
              $region45: #{_forward.1} parent=39 // loop_footer
                %s305 = sadd.s32 %s303, 1
              $region46: #{_forward.1} parent=39 // loop_footer_branch
                %302 = sbr.rel target = $region42
              $region47: #{_forward.1} parent=39 // loop_exit
                _
              %s334 = sshrl.u32 %s285, 2
              %s335 = sand.u32 %s285, 3
              %s336 = smul.u32 %s334, 4
              %s337 = smul.u32 8, %s336
              %s338 = scalar_lea.vmem %s291, %s337
              %s339 = smul.u32 8, %s336
              %s340 = scalar_lea.vmem %s281, %s339 [#allocation6]
              // While loop
              $region48: #{_forward.1} parent=39 // loop_pre_header
                _
              $region49: #{_forward.1} parent=39 // loop_header
                %s342 = sphi 0, %s344
                %p343 = scmp.ge.s32.totalorder %s342, %s335
                %s347 = sphi 0, %s356
                %s348 = sphi %s338, %s359
                %s349 = sphi %s340, %s360
              $region50: #{_forward.1} parent=39 // loop_header_branch
                %346 = sbr.rel (%p343) target = $region54
              $region51: #{_forward.1} parent=39 // loop_body
                %v350 = vld [vmem:[%s348] sm:%s300]
                %351 = vst [vmem:[%s349] sm:%s300] %v350
                %v352 = vld [vmem:[%s348 + $0x48] sm:%s300]
                %353 = vst [vmem:[%s349 + $0x20] sm:%s300] %v352
                %s354 = sadd.s32 1, %s347
                %p355 = scmp.ge.s32.totalorder %s354, %s335
                %s356 = scalar_select %p355, 0, %s354
                %s357 = smul.u32 %s356, 8
                %s358 = smul.u32 %s356, 8
                %s359 = scalar_lea.vmem %s338, %s357
                %s360 = scalar_lea.vmem %s340, %s358 [#allocation6]
              $region52: #{_forward.1} parent=39 // loop_footer
                %s344 = sadd.s32 %s342, 1
              $region53: #{_forward.1} parent=39 // loop_footer_branch
                %341 = sbr.rel target = $region49
              $region54: #{_forward.1} parent=39 // loop_exit
                _
            $region40: #{_forward.1} parent=31 // pred_fallthru
              _
          $region32: #{_forward.1} parent=27 // pred_fallthru
            _
          %425 = vnop
        $region28: #{_forward.1} parent=19 // pred_fallthru
          _
        // Predicated region
        $region77: #{_forward.1} parent=19 // pred_check
          %p426 = pneg %p127
        $region78: #{_forward.1} parent=19 // pred_check_branch
          %428 = sbr.rel (%p426) target = $region80
        $region79: #{_forward.1} parent=19 // pred_region
          %s429 = sand.u32 %s117, 1
          %s430 = sand.u32 %s117, 1
          %s431 = smul.addr %s430, 64
          %s432 = scalar_lea.vmem [#allocation7], %s431
          %s433 = smul.u32 4, %s24
          %s434 = ssub.s32 9, %s433
          %p435 = scmp.lt.s32.totalorder %s434, 4
          %s436 = scalar_select %p435, %s434, 4
          %s437 = smul.u32 16, %s436
          %p438 = scmp.ne.s32.totalorder 0, %s437
          %s439 = smul.addr %s23, 18
          %s440 = sadd.s32 %s433, %s439
          %s441 = smul.addr %s440, 8
          %s442 = scalar_lea.vmem %s3, %s441
          // Predicated region
          $region81: #{_forward.1} parent=79 // pred_check
            %p443 = pneg %p438
          $region82: #{_forward.1} parent=79 // pred_check_branch
            %445 = sbr.rel (%p443) target = $region84
          $region83: #{_forward.1} parent=79 // pred_region
            // Predicated region
            $region85: #{_forward.1} parent=83 // pred_check
              _
            $region86: #{_forward.1} parent=83 // pred_check_branch
              %447 = sbr.rel (0) target = $region88
            $region87: #{_forward.1} parent=83 // pred_region
              // Predicated region
              $region107: #{_forward.1} parent=87 // pred_check
                _
              $region108: #{_forward.1} parent=87 // pred_check_branch
                %513 = sbr.rel (0) target = $region110
              $region109: #{_forward.1} parent=87 // pred_region
                %s514 = sshrl.u32 %s436, 2
                // While loop
                $region111: #{_forward.1} parent=109 // loop_pre_header
                  _
                $region112: #{_forward.1} parent=109 // loop_header
                  %s516 = sphi 0, %s518
                  %p517 = scmp.ge.s32.totalorder %s516, %s514
                  %s521 = sphi 0, %s542
                  %s522 = sphi %s442, %s545
                  %s523 = sphi %s432, %s546
                $region113: #{_forward.1} parent=109 // loop_header_branch
                  %520 = sbr.rel (%p517) target = $region117
                $region114: #{_forward.1} parent=109 // loop_body
                  %v524 = vld [vmem:[%s522] sm:$0xff]
                  %525 = vst [vmem:[%s523] sm:$0xff] %v524
                  %v526 = vld [vmem:[%s522 + $0x8] sm:$0xff]
                  %527 = vst [vmem:[%s523 + $0x8] sm:$0xff] %v526
                  %v528 = vld [vmem:[%s522 + $0x10] sm:$0xff]
                  %529 = vst [vmem:[%s523 + $0x10] sm:$0xff] %v528
                  %v530 = vld [vmem:[%s522 + $0x18] sm:$0xff]
                  %531 = vst [vmem:[%s523 + $0x18] sm:$0xff] %v530
                  %v532 = vld [vmem:[%s522 + $0x48] sm:$0xff]
                  %533 = vst [vmem:[%s523 + $0x20] sm:$0xff] %v532
                  %v534 = vld [vmem:[%s522 + $0x50] sm:$0xff]
                  %535 = vst [vmem:[%s523 + $0x28] sm:$0xff] %v534
                  %v536 = vld [vmem:[%s522 + $0x58] sm:$0xff]
                  %537 = vst [vmem:[%s523 + $0x30] sm:$0xff] %v536
                  %v538 = vld [vmem:[%s522 + $0x60] sm:$0xff]
                  %539 = vst [vmem:[%s523 + $0x38] sm:$0xff] %v538
                  %s540 = sadd.s32 1, %s521
                  %p541 = scmp.ge.s32.totalorder %s540, %s514
                  %s542 = scalar_select %p541, 0, %s540
                  %s543 = smul.u32 %s542, 32
                  %s544 = smul.u32 %s542, 32
                  %s545 = scalar_lea.vmem %s442, %s543
                  %s546 = scalar_lea.vmem %s432, %s544 [#allocation7]
                $region115: #{_forward.1} parent=109 // loop_footer
                  %s518 = sadd.s32 %s516, 1
                $region116: #{_forward.1} parent=109 // loop_footer_branch
                  %515 = sbr.rel target = $region112
                $region117: #{_forward.1} parent=109 // loop_exit
                  _
                %s547 = sshrl.u32 %s436, 2
                %s548 = sand.u32 %s436, 3
                %s549 = smul.u32 %s547, 4
                %s550 = smul.u32 8, %s549
                %s551 = scalar_lea.vmem %s442, %s550
                %s552 = smul.u32 8, %s549
                %s553 = scalar_lea.vmem %s432, %s552 [#allocation7]
                // While loop
                $region118: #{_forward.1} parent=109 // loop_pre_header
                  _
                $region119: #{_forward.1} parent=109 // loop_header
                  %s555 = sphi 0, %s557
                  %p556 = scmp.ge.s32.totalorder %s555, %s548
                  %s560 = sphi 0, %s569
                  %s561 = sphi %s551, %s572
                  %s562 = sphi %s553, %s573
                $region120: #{_forward.1} parent=109 // loop_header_branch
                  %559 = sbr.rel (%p556) target = $region124
                $region121: #{_forward.1} parent=109 // loop_body
                  %v563 = vld [vmem:[%s561] sm:$0xff]
                  %564 = vst [vmem:[%s562] sm:$0xff] %v563
                  %v565 = vld [vmem:[%s561 + $0x48] sm:$0xff]
                  %566 = vst [vmem:[%s562 + $0x20] sm:$0xff] %v565
                  %s567 = sadd.s32 1, %s560
                  %p568 = scmp.ge.s32.totalorder %s567, %s548
                  %s569 = scalar_select %p568, 0, %s567
                  %s570 = smul.u32 %s569, 8
                  %s571 = smul.u32 %s569, 8
                  %s572 = scalar_lea.vmem %s551, %s570
                  %s573 = scalar_lea.vmem %s553, %s571 [#allocation7]
                $region122: #{_forward.1} parent=109 // loop_footer
                  %s557 = sadd.s32 %s555, 1
                $region123: #{_forward.1} parent=109 // loop_footer_branch
                  %554 = sbr.rel target = $region119
                $region124: #{_forward.1} parent=109 // loop_exit
                  _
              $region110: #{_forward.1} parent=87 // pred_fallthru
                _
              // Predicated region
              $region125: #{_forward.1} parent=87 // pred_check
                _
              $region126: #{_forward.1} parent=87 // pred_check_branch
                %575 = sbr.rel target = $region128
              $region127: #{_forward.1} parent=87 // pred_region
                _
              $region128: #{_forward.1} parent=87 // pred_fallthru
                _
            $region88: #{_forward.1} parent=83 // pred_fallthru
              _
            // Predicated region
            $region89: #{_forward.1} parent=83 // pred_check
              _
            $region90: #{_forward.1} parent=83 // pred_check_branch
              %449 = sbr.rel target = $region92
            $region91: #{_forward.1} parent=83 // pred_region
              %s451 = ssub.s32 256, 1
              %s452 = sshrl.u32 %s436, 2
              // While loop
              $region93: #{_forward.1} parent=91 // loop_pre_header
                _
              $region94: #{_forward.1} parent=91 // loop_header
                %s454 = sphi 0, %s456
                %p455 = scmp.ge.s32.totalorder %s454, %s452
                %s459 = sphi 0, %s480
                %s460 = sphi %s442, %s483
                %s461 = sphi %s432, %s484
              $region95: #{_forward.1} parent=91 // loop_header_branch
                %458 = sbr.rel (%p455) target = $region99
              $region96: #{_forward.1} parent=91 // loop_body
                %v462 = vld [vmem:[%s460] sm:%s451]
                %463 = vst [vmem:[%s461] sm:%s451] %v462
                %v464 = vld [vmem:[%s460 + $0x8] sm:%s451]
                %465 = vst [vmem:[%s461 + $0x8] sm:%s451] %v464
                %v466 = vld [vmem:[%s460 + $0x10] sm:%s451]
                %467 = vst [vmem:[%s461 + $0x10] sm:%s451] %v466
                %v468 = vld [vmem:[%s460 + $0x18] sm:%s451]
                %469 = vst [vmem:[%s461 + $0x18] sm:%s451] %v468
                %v470 = vld [vmem:[%s460 + $0x48] sm:%s451]
                %471 = vst [vmem:[%s461 + $0x20] sm:%s451] %v470
                %v472 = vld [vmem:[%s460 + $0x50] sm:%s451]
                %473 = vst [vmem:[%s461 + $0x28] sm:%s451] %v472
                %v474 = vld [vmem:[%s460 + $0x58] sm:%s451]
                %475 = vst [vmem:[%s461 + $0x30] sm:%s451] %v474
                %v476 = vld [vmem:[%s460 + $0x60] sm:%s451]
                %477 = vst [vmem:[%s461 + $0x38] sm:%s451] %v476
                %s478 = sadd.s32 1, %s459
                %p479 = scmp.ge.s32.totalorder %s478, %s452
                %s480 = scalar_select %p479, 0, %s478
                %s481 = smul.u32 %s480, 32
                %s482 = smul.u32 %s480, 32
                %s483 = scalar_lea.vmem %s442, %s481
                %s484 = scalar_lea.vmem %s432, %s482 [#allocation7]
              $region97: #{_forward.1} parent=91 // loop_footer
                %s456 = sadd.s32 %s454, 1
              $region98: #{_forward.1} parent=91 // loop_footer_branch
                %453 = sbr.rel target = $region94
              $region99: #{_forward.1} parent=91 // loop_exit
                _
              %s485 = sshrl.u32 %s436, 2
              %s486 = sand.u32 %s436, 3
              %s487 = smul.u32 %s485, 4
              %s488 = smul.u32 8, %s487
              %s489 = scalar_lea.vmem %s442, %s488
              %s490 = smul.u32 8, %s487
              %s491 = scalar_lea.vmem %s432, %s490 [#allocation7]
              // While loop
              $region100: #{_forward.1} parent=91 // loop_pre_header
                _
              $region101: #{_forward.1} parent=91 // loop_header
                %s493 = sphi 0, %s495
                %p494 = scmp.ge.s32.totalorder %s493, %s486
                %s498 = sphi 0, %s507
                %s499 = sphi %s489, %s510
                %s500 = sphi %s491, %s511
              $region102: #{_forward.1} parent=91 // loop_header_branch
                %497 = sbr.rel (%p494) target = $region106
              $region103: #{_forward.1} parent=91 // loop_body
                %v501 = vld [vmem:[%s499] sm:%s451]
                %502 = vst [vmem:[%s500] sm:%s451] %v501
                %v503 = vld [vmem:[%s499 + $0x48] sm:%s451]
                %504 = vst [vmem:[%s500 + $0x20] sm:%s451] %v503
                %s505 = sadd.s32 1, %s498
                %p506 = scmp.ge.s32.totalorder %s505, %s486
                %s507 = scalar_select %p506, 0, %s505
                %s508 = smul.u32 %s507, 8
                %s509 = smul.u32 %s507, 8
                %s510 = scalar_lea.vmem %s489, %s508
                %s511 = scalar_lea.vmem %s491, %s509 [#allocation7]
              $region104: #{_forward.1} parent=91 // loop_footer
                %s495 = sadd.s32 %s493, 1
              $region105: #{_forward.1} parent=91 // loop_footer_branch
                %492 = sbr.rel target = $region101
              $region106: #{_forward.1} parent=91 // loop_exit
                _
            $region92: #{_forward.1} parent=83 // pred_fallthru
              _
          $region84: #{_forward.1} parent=79 // pred_fallthru
            _
          %576 = vnop
        $region80: #{_forward.1} parent=19 // pred_fallthru
          _
      $region20: #{_forward.1} parent=5 // pred_fallthru
        _
      %p577 = scmp.le.s32.totalorder 1, %s16
      %p578 = scmp.lt.s32.totalorder %s16, 7
      %p579 = pnand %p577, %p578
      %p580 = pneg %p579
      // Predicated region
      $region129: #{_forward.1} parent=5 // pred_check
        _
      $region130: #{_forward.1} parent=5 // pred_check_branch
        %582 = sbr.rel (%p579) target = $region132
      $region131: #{_forward.1} parent=5 // pred_region
        %s583 = ssub.s32 %s16, 1
        // Predicated region
        $region133: #{_forward.1} parent=131 // pred_check
          %p584 = pneg %p49
        $region134: #{_forward.1} parent=131 // pred_check_branch
          %586 = sbr.rel (%p584) target = $region136
        $region135: #{_forward.1} parent=131 // pred_region
          %588 = dma.done [#allocation4], 16
        $region136: #{_forward.1} parent=131 // pred_fallthru
          _
        %s589 = sand.u32 %s64, 1
        %s590 = scalar_lea.sflag [#allocation3], %s589
        %s591 = sand.u32 %s64, 1
        %s592 = smul.addr %s591, 192
        %s593 = scalar_lea.vmem [#allocation5], %s592
        // Predicated region
        $region137: #{_forward.1} parent=131 // pred_check
          %p594 = pneg %p77
        $region138: #{_forward.1} parent=131 // pred_check_branch
          %596 = sbr.rel (%p594) target = $region140
        $region139: #{_forward.1} parent=131 // pred_region
          %598 = dma.done %s590, 3072
        $region140: #{_forward.1} parent=131 // pred_fallthru
          _
        %s599 = sand.u32 %s92, 1
        %s600 = sand.u32 %s92, 1
        %s601 = smul.addr %s600, 64
        %s602 = scalar_lea.vmem [#allocation6], %s601
        // Predicated region
        $region141: #{_forward.1} parent=131 // pred_check
          %p603 = pneg %p105
        $region142: #{_forward.1} parent=131 // pred_check_branch
          %605 = sbr.rel (%p603) target = $region144
        $region143: #{_forward.1} parent=131 // pred_region
          _
        $region144: #{_forward.1} parent=131 // pred_fallthru
          _
        %s606 = sand.u32 %s120, 1
        %s607 = sand.u32 %s120, 1
        %s608 = smul.addr %s607, 64
        %s609 = scalar_lea.vmem [#allocation7], %s608
        // Predicated region
        $region145: #{_forward.1} parent=131 // pred_check
          %p610 = pneg %p133
        $region146: #{_forward.1} parent=131 // pred_check_branch
          %612 = sbr.rel (%p610) target = $region148
        $region147: #{_forward.1} parent=131 // pred_region
          _
        $region148: #{_forward.1} parent=131 // pred_fallthru
          _
        %613 = sfence
        %p614 = pneg %p49
        %p615 = pneg %p46
        %s616 = sand.u32 %s64, 1
        %s617 = scalar_lea.sflag [#allocation3], %s616
        %s618 = sand.u32 %s64, 1
        %s619 = smul.addr %s618, 192
        %s620 = scalar_lea.vmem [#allocation5], %s619
        %p621 = pneg %p77
        %p622 = pneg %p74
        %s623 = sand.u32 %s92, 1
        %s624 = sand.u32 %s92, 1
        %s625 = smul.addr %s624, 64
        %s626 = scalar_lea.vmem [#allocation6], %s625
        %p627 = pneg %p105
        %p628 = pneg %p102
        %s629 = sand.u32 %s120, 1
        %s630 = sand.u32 %s120, 1
        %s631 = smul.addr %s630, 64
        %s632 = scalar_lea.vmem [#allocation7], %s631
        %p633 = pneg %p133
        %p634 = pneg %p130
        %p635 = pneg %p161
        %p636 = pneg %p158
        %s637 = sand.u32 %s148, 1
        %s638 = sand.u32 %s148, 1
        %s639 = smul.addr %s638, 192
        %s640 = scalar_lea.vmem [#allocation8], %s639
        %p641 = pneg %p189
        %p642 = pneg %p186
        %s643 = sand.u32 %s176, 1
        %s644 = sand.u32 %s176, 1
        %s645 = smul.addr %s644, 192
        %s646 = scalar_lea.vmem [#allocation9], %s645
        %s647 = smul.u32 4, %s26
        %s648 = ssub.s32 9, %s647
        %p649 = scmp.lt.s32.totalorder %s648, 4
        %s650 = scalar_select %p649, %s648, 4
        %s651 = smul.u32 48, %s650
        %s652 = smul.u32 4, %s26
        %s653 = ssub.s32 9, %s652
        %p654 = scmp.lt.s32.totalorder %s653, 4
        %s655 = scalar_select %p654, %s653, 4
        %s656 = smul.u32 16, %s655
        %s657 = smul.u32 4, %s26
        %s658 = ssub.s32 9, %s657
        %p659 = scmp.lt.s32.totalorder %s658, 4
        %s660 = scalar_select %p659, %s658, 4
        %s661 = smul.u32 16, %s660
        %s662 = smul.u32 4, %s26
        %s663 = ssub.s32 9, %s662
        %p664 = scmp.lt.s32.totalorder %s663, 4
        %s665 = scalar_select %p664, %s663, 4
        %s666 = smul.u32 48, %s665
        %s667 = smul.u32 4, %s26
        %s668 = ssub.s32 9, %s667
        %p669 = scmp.lt.s32.totalorder %s668, 4
        %s670 = scalar_select %p669, %s668, 4
        %s671 = smul.u32 48, %s670
        %s672 = sld [smem:[#allocation2 + %s25]]
        %v673 = vstv %s672
        %v674 = vrcp.pop %v673
        %v675 = vmul.f32 %v673, %v674
        %v676 = vsub.f32 1.0, %v675
        %v677 = vmul.f32 %v674, %v676
        %v678 = vadd.f32 %v674, %v677
        %vm679 = vweird.f32 %v673
        %vm680 = vweird.f32 %v674
        %vm681 = vmor %vm679, %vm680
        %v682 = vsel %vm681, %v674, %v678
        %v683 = vand.u32 2147483647, %v673
        %vm684 = vcmp.eq.f32.partialorder %v683, 8.507059e+37
        %v685 = vand.u32 %v673, 2147483648
        %v686 = vor.u32 1.1754944e-38, %v685
        %v687 = vsel %vm684, %v686, %v682
        %s688 = vtos %v687
        %v689 = vlaneseq
        %v690 = vand.u32 %v689, 127
        %vm691 = vcmp.lt.s32.totalorder %v690, 120
        %v692 = vld [vmem:[%s602] sm:$0xff]
        %v693 = vld [vmem:[%s602 + $0x8] sm:$0xff]
        %v694 = vld [vmem:[%s602 + $0x10] sm:$0xff]
        %v695 = vld [vmem:[%s602 + $0x18] sm:$0xff]
        %v696 = vsel %vm691, %v692, 0.0
        %v697 = vsel %vm691, %v693, 0.0
        %v698 = vsel %vm691, %v694, 0.0
        %v699 = vsel %vm691, %v695, 0.0
        %v700 = vstv %s688
        %v701 = vmul.f32 %v696, %v700
        %v702 = vmul.f32 %v697, %v700
        %v703 = vmul.f32 %v698, %v700
        %v704 = vmul.f32 %v699, %v700
        %v705 = vld [vmem:[%s609] sm:$0xff]
        %v706 = vld [vmem:[%s609 + $0x8] sm:$0xff]
        %v707 = vld [vmem:[%s609 + $0x10] sm:$0xff]
        %v708 = vld [vmem:[%s609 + $0x18] sm:$0xff]
        %v709 = vsel %vm691, %v705, 0.0
        %v710 = vsel %vm691, %v706, 0.0
        %v711 = vsel %vm691, %v707, 0.0
        %v712 = vsel %vm691, %v708, 0.0
        %v713 = vmul.f32 %v709, %v700
        %v714 = vmul.f32 %v710, %v700
        %v715 = vmul.f32 %v711, %v700
        %v716 = vmul.f32 %v712, %v700
        %s717 = scalar_lea.vmem %s602, 32 [#allocation6]
        %v718 = vld [vmem:[%s717] sm:$0xff]
        %v719 = vld [vmem:[%s717 + $0x8] sm:$0xff]
        %v720 = vld [vmem:[%s717 + $0x10] sm:$0xff]
        %v721 = vld [vmem:[%s717 + $0x18] sm:$0xff]
        %v722 = vsel %vm691, %v718, 0.0
        %v723 = vsel %vm691, %v719, 0.0
        %v724 = vsel %vm691, %v720, 0.0
        %v725 = vsel %vm691, %v721, 0.0
        %v726 = vmul.f32 %v722, %v700
        %v727 = vmul.f32 %v723, %v700
        %v728 = vmul.f32 %v724, %v700
        %v729 = vmul.f32 %v725, %v700
        %s730 = scalar_lea.vmem %s609, 32 [#allocation7]
        %v731 = vld [vmem:[%s730] sm:$0xff]
        %v732 = vld [vmem:[%s730 + $0x8] sm:$0xff]
        %v733 = vld [vmem:[%s730 + $0x10] sm:$0xff]
        %v734 = vld [vmem:[%s730 + $0x18] sm:$0xff]
        %v735 = vsel %vm691, %v731, 0.0
        %v736 = vsel %vm691, %v732, 0.0
        %v737 = vsel %vm691, %v733, 0.0
        %v738 = vsel %vm691, %v734, 0.0
        %v739 = vmul.f32 %v735, %v700
        %v740 = vmul.f32 %v736, %v700
        %v741 = vmul.f32 %v737, %v700
        %v742 = vmul.f32 %v738, %v700
        %v743 = vld [vmem:[%s593] sm:$0xff]
        %v744 = vld [vmem:[%s593 + $0x8] sm:$0xff]
        %v745 = vld [vmem:[%s593 + $0x10] sm:$0xff]
        %v746 = vld [vmem:[%s593 + $0x18] sm:$0xff]
        %v747 = vsel %vm691, %v743, 0.0
        %v748 = vsel %vm691, %v744, 0.0
        %v749 = vsel %vm691, %v745, 0.0
        %v750 = vsel %vm691, %v746, 0.0
        %s751 = scalar_lea.vmem %s593, 32 [#allocation5]
        %v752 = vld [vmem:[%s751] sm:$0xff]
        %v753 = vld [vmem:[%s751 + $0x8] sm:$0xff]
        %v754 = vld [vmem:[%s751 + $0x10] sm:$0xff]
        %v755 = vld [vmem:[%s751 + $0x18] sm:$0xff]
        %v756 = vsel %vm691, %v752, 0.0
        %v757 = vsel %vm691, %v753, 0.0
        %v758 = vsel %vm691, %v754, 0.0
        %v759 = vsel %vm691, %v755, 0.0
        %s760 = scalar_lea.vmem %s593, 64 [#allocation5]
        %v761 = vld [vmem:[%s760] sm:$0xff]
        %v762 = vld [vmem:[%s760 + $0x8] sm:$0xff]
        %v763 = vld [vmem:[%s760 + $0x10] sm:$0xff]
        %v764 = vld [vmem:[%s760 + $0x18] sm:$0xff]
        %v765 = vsel %vm691, %v761, 0.0
        %v766 = vsel %vm691, %v762, 0.0
        %v767 = vsel %vm691, %v763, 0.0
        %v768 = vsel %vm691, %v764, 0.0
        %s769 = scalar_lea.vmem %s593, 96 [#allocation5]
        %v770 = vld [vmem:[%s769] sm:$0xff]
        %v771 = vld [vmem:[%s769 + $0x8] sm:$0xff]
        %v772 = vld [vmem:[%s769 + $0x10] sm:$0xff]
        %v773 = vld [vmem:[%s769 + $0x18] sm:$0xff]
        %v774 = vsel %vm691, %v770, 0.0
        %v775 = vsel %vm691, %v771, 0.0
        %v776 = vsel %vm691, %v772, 0.0
        %v777 = vsel %vm691, %v773, 0.0
        %s778 = scalar_lea.vmem %s593, 128 [#allocation5]
        %v779 = vld [vmem:[%s778] sm:$0xff]
        %v780 = vld [vmem:[%s778 + $0x8] sm:$0xff]
        %v781 = vld [vmem:[%s778 + $0x10] sm:$0xff]
        %v782 = vld [vmem:[%s778 + $0x18] sm:$0xff]
        %v783 = vsel %vm691, %v779, 0.0
        %v784 = vsel %vm691, %v780, 0.0
        %v785 = vsel %vm691, %v781, 0.0
        %v786 = vsel %vm691, %v782, 0.0
        %s787 = scalar_lea.vmem %s593, 160 [#allocation5]
        %v788 = vld [vmem:[%s787] sm:$0xff]
        %v789 = vld [vmem:[%s787 + $0x8] sm:$0xff]
        %v790 = vld [vmem:[%s787 + $0x10] sm:$0xff]
        %v791 = vld [vmem:[%s787 + $0x18] sm:$0xff]
        %v792 = vsel %vm691, %v788, 0.0
        %v793 = vsel %vm691, %v789, 0.0
        %v794 = vsel %vm691, %v790, 0.0
        %v795 = vsel %vm691, %v791, 0.0
        %v796 = vmul.f32 %v747, %v701
        %v797 = vmul.f32 %v748, %v702
        %v798 = vmul.f32 %v749, %v703
        %v799 = vmul.f32 %v750, %v704
        %v800 = vmul.f32 %v756, %v726
        %v801 = vmul.f32 %v757, %v727
        %v802 = vmul.f32 %v758, %v728
        %v803 = vmul.f32 %v759, %v729
        %v804 = vmul.f32 %v765, %v701
        %v805 = vmul.f32 %v766, %v702
        %v806 = vmul.f32 %v767, %v703
        %v807 = vmul.f32 %v768, %v704
        %v808 = vmul.f32 %v774, %v726
        %v809 = vmul.f32 %v775, %v727
        %v810 = vmul.f32 %v776, %v728
        %v811 = vmul.f32 %v777, %v729
        %v812 = vmul.f32 %v783, %v701
        %v813 = vmul.f32 %v784, %v702
        %v814 = vmul.f32 %v785, %v703
        %v815 = vmul.f32 %v786, %v704
        %v816 = vmul.f32 %v792, %v726
        %v817 = vmul.f32 %v793, %v727
        %v818 = vmul.f32 %v794, %v728
        %v819 = vmul.f32 %v795, %v729
        %v820 = vmul.f32 %v747, %v713
        %v821 = vmul.f32 %v748, %v714
        %v822 = vmul.f32 %v749, %v715
        %v823 = vmul.f32 %v750, %v716
        %v824 = vmul.f32 %v756, %v739
        %v825 = vmul.f32 %v757, %v740
        %v826 = vmul.f32 %v758, %v741
        %v827 = vmul.f32 %v759, %v742
        %v828 = vmul.f32 %v765, %v713
        %v829 = vmul.f32 %v766, %v714
        %v830 = vmul.f32 %v767, %v715
        %v831 = vmul.f32 %v768, %v716
        %v832 = vmul.f32 %v774, %v739
        %v833 = vmul.f32 %v775, %v740
        %v834 = vmul.f32 %v776, %v741
        %v835 = vmul.f32 %v777, %v742
        %v836 = vmul.f32 %v783, %v713
        %v837 = vmul.f32 %v784, %v714
        %v838 = vmul.f32 %v785, %v715
        %v839 = vmul.f32 %v786, %v716
        %v840 = vmul.f32 %v792, %v739
        %v841 = vmul.f32 %v793, %v740
        %v842 = vmul.f32 %v794, %v741
        %v843 = vmul.f32 %v795, %v742
        %v844 = vmul.f32 %v796, %v796
        %v845 = vmul.f32 %v797, %v797
        %v846 = vmul.f32 %v798, %v798
        %v847 = vmul.f32 %v799, %v799
        %v848 = vmul.f32 %v820, %v820
        %v849 = vmul.f32 %v821, %v821
        %v850 = vmul.f32 %v822, %v822
        %v851 = vmul.f32 %v823, %v823
        %v852 = vadd.f32 %v844, %v848
        %v853 = vadd.f32 %v845, %v849
        %v854 = vadd.f32 %v846, %v850
        %v855 = vadd.f32 %v847, %v851
        %v856 = vmul.f32 %v800, %v800
        %v857 = vmul.f32 %v801, %v801
        %v858 = vmul.f32 %v802, %v802
        %v859 = vmul.f32 %v803, %v803
        %v860 = vmul.f32 %v824, %v824
        %v861 = vmul.f32 %v825, %v825
        %v862 = vmul.f32 %v826, %v826
        %v863 = vmul.f32 %v827, %v827
        %v864 = vadd.f32 %v856, %v860
        %v865 = vadd.f32 %v857, %v861
        %v866 = vadd.f32 %v858, %v862
        %v867 = vadd.f32 %v859, %v863
        %v868 = vadd.f32 %v852, %v864
        %v869 = vadd.f32 %v853, %v865
        %v870 = vadd.f32 %v854, %v866
        %v871 = vadd.f32 %v855, %v867
        %v872 = vmul.f32 %v868, 0.5
        %v873 = vmul.f32 %v869, 0.5
        %v874 = vmul.f32 %v870, 0.5
        %v875 = vmul.f32 %v871, 0.5
        %876 = vadd.xlane.f32.xlu0 %v852
        %v877 = vpop.xlane.xlu0 %876
        %878 = vadd.xlane.f32.xlu0 %v853
        %v879 = vpop.xlane.xlu0 %878
        %880 = vadd.xlane.f32.xlu0 %v854
        %v881 = vpop.xlane.xlu0 %880
        %882 = vadd.xlane.f32.xlu0 %v855
        %v883 = vpop.xlane.xlu0 %882
        %884 = vadd.xlane.f32.xlu0 %v864
        %v885 = vpop.xlane.xlu0 %884
        %886 = vadd.xlane.f32.xlu0 %v865
        %v887 = vpop.xlane.xlu0 %886
        %888 = vadd.xlane.f32.xlu0 %v866
        %v889 = vpop.xlane.xlu0 %888
        %890 = vadd.xlane.f32.xlu0 %v867
        %v891 = vpop.xlane.xlu0 %890
        %v892 = vmul.f32 %v796, %v800
        %v893 = vmul.f32 %v797, %v801
        %v894 = vmul.f32 %v798, %v802
        %v895 = vmul.f32 %v799, %v803
        %v896 = vmul.f32 %v820, %v824
        %v897 = vmul.f32 %v821, %v825
        %v898 = vmul.f32 %v822, %v826
        %v899 = vmul.f32 %v823, %v827
        %v900 = vadd.f32 %v892, %v896
        %v901 = vadd.f32 %v893, %v897
        %v902 = vadd.f32 %v894, %v898
        %v903 = vadd.f32 %v895, %v899
        %904 = vadd.xlane.f32.xlu0 %v900
        %v905 = vpop.xlane.xlu0 %904
        %906 = vadd.xlane.f32.xlu0 %v901
        %v907 = vpop.xlane.xlu0 %906
        %908 = vadd.xlane.f32.xlu0 %v902
        %v909 = vpop.xlane.xlu0 %908
        %910 = vadd.xlane.f32.xlu0 %v903
        %v911 = vpop.xlane.xlu0 %910
        %v912 = vmul.f32 %v820, %v800
        %v913 = vmul.f32 %v821, %v801
        %v914 = vmul.f32 %v822, %v802
        %v915 = vmul.f32 %v823, %v803
        %v916 = vmul.f32 %v796, %v824
        %v917 = vmul.f32 %v797, %v825
        %v918 = vmul.f32 %v798, %v826
        %v919 = vmul.f32 %v799, %v827
        %v920 = vsub.f32 %v912, %v916
        %v921 = vsub.f32 %v913, %v917
        %v922 = vsub.f32 %v914, %v918
        %v923 = vsub.f32 %v915, %v919
        %924 = vadd.xlane.f32.xlu0 %v920
        %v925 = vpop.xlane.xlu0 %924
        %926 = vadd.xlane.f32.xlu0 %v921
        %v927 = vpop.xlane.xlu0 %926
        %928 = vadd.xlane.f32.xlu0 %v922
        %v929 = vpop.xlane.xlu0 %928
        %930 = vadd.xlane.f32.xlu0 %v923
        %v931 = vpop.xlane.xlu0 %930
        %v932 = vadd.f32 %v877, %v885
        %v933 = vadd.f32 %v879, %v887
        %v934 = vadd.f32 %v881, %v889
        %v935 = vadd.f32 %v883, %v891
        %v936 = vmul.f32 %v932, 0.5
        %v937 = vmul.f32 %v933, 0.5
        %v938 = vmul.f32 %v934, 0.5
        %v939 = vmul.f32 %v935, 0.5
        %v940 = vadd.f32 %v936, 2.220446e-16
        %v941 = vadd.f32 %v937, 2.220446e-16
        %v942 = vadd.f32 %v938, 2.220446e-16
        %v943 = vadd.f32 %v939, 2.220446e-16
        %v944 = vrcp.pop %v940
        %v945 = vmul.f32 %v940, %v944
        %v946 = vsub.f32 1.0, %v945
        %v947 = vmul.f32 %v944, %v946
        %v948 = vadd.f32 %v944, %v947
        %vm949 = vweird.f32 %v940
        %vm950 = vweird.f32 %v944
        %vm951 = vmor %vm949, %vm950
        %v952 = vsel %vm951, %v944, %v948
        %v953 = vand.u32 2147483647, %v940
        %vm954 = vcmp.eq.f32.partialorder %v953, 8.507059e+37
        %v955 = vand.u32 %v940, 2147483648
        %v956 = vor.u32 1.1754944e-38, %v955
        %v957 = vsel %vm954, %v956, %v952
        %v958 = vrcp.pop %v941
        %v959 = vmul.f32 %v941, %v958
        %v960 = vsub.f32 1.0, %v959
        %v961 = vmul.f32 %v958, %v960
        %v962 = vadd.f32 %v958, %v961
        %vm963 = vweird.f32 %v941
        %vm964 = vweird.f32 %v958
        %vm965 = vmor %vm963, %vm964
        %v966 = vsel %vm965, %v958, %v962
        %v967 = vand.u32 2147483647, %v941
        %vm968 = vcmp.eq.f32.partialorder %v967, 8.507059e+37
        %v969 = vand.u32 %v941, 2147483648
        %v970 = vor.u32 1.1754944e-38, %v969
        %v971 = vsel %vm968, %v970, %v966
        %v972 = vrcp.pop %v942
        %v973 = vmul.f32 %v942, %v972
        %v974 = vsub.f32 1.0, %v973
        %v975 = vmul.f32 %v972, %v974
        %v976 = vadd.f32 %v972, %v975
        %vm977 = vweird.f32 %v942
        %vm978 = vweird.f32 %v972
        %vm979 = vmor %vm977, %vm978
        %v980 = vsel %vm979, %v972, %v976
        %v981 = vand.u32 2147483647, %v942
        %vm982 = vcmp.eq.f32.partialorder %v981, 8.507059e+37
        %v983 = vand.u32 %v942, 2147483648
        %v984 = vor.u32 1.1754944e-38, %v983
        %v985 = vsel %vm982, %v984, %v980
        %v986 = vrcp.pop %v943
        %v987 = vmul.f32 %v943, %v986
        %v988 = vsub.f32 1.0, %v987
        %v989 = vmul.f32 %v986, %v988
        %v990 = vadd.f32 %v986, %v989
        %vm991 = vweird.f32 %v943
        %vm992 = vweird.f32 %v986
        %vm993 = vmor %vm991, %vm992
        %v994 = vsel %vm993, %v986, %v990
        %v995 = vand.u32 2147483647, %v943
        %vm996 = vcmp.eq.f32.partialorder %v995, 8.507059e+37
        %v997 = vand.u32 %v943, 2147483648
        %v998 = vor.u32 1.1754944e-38, %v997
        %v999 = vsel %vm996, %v998, %v994
        %v1000 = vmul.f32 %v877, %v957
        %v1001 = vmul.f32 %v879, %v971
        %v1002 = vmul.f32 %v881, %v985
        %v1003 = vmul.f32 %v883, %v999
        %v1004 = vmul.f32 %v872, %v1000
        %v1005 = vmul.f32 %v873, %v1001
        %v1006 = vmul.f32 %v874, %v1002
        %v1007 = vmul.f32 %v875, %v1003
        %v1008 = vmul.f32 %v885, %v957
        %v1009 = vmul.f32 %v887, %v971
        %v1010 = vmul.f32 %v889, %v985
        %v1011 = vmul.f32 %v891, %v999
        %v1012 = vmul.f32 %v872, %v1008
        %v1013 = vmul.f32 %v873, %v1009
        %v1014 = vmul.f32 %v874, %v1010
        %v1015 = vmul.f32 %v875, %v1011
        %v1016 = vmul.f32 %v905, %v957
        %v1017 = vmul.f32 %v907, %v971
        %v1018 = vmul.f32 %v909, %v985
        %v1019 = vmul.f32 %v911, %v999
        %v1020 = vmul.f32 %v872, %v1016
        %v1021 = vmul.f32 %v873, %v1017
        %v1022 = vmul.f32 %v874, %v1018
        %v1023 = vmul.f32 %v875, %v1019
        %v1024 = vmul.f32 %v925, %v957
        %v1025 = vmul.f32 %v927, %v971
        %v1026 = vmul.f32 %v929, %v985
        %v1027 = vmul.f32 %v931, %v999
        %v1028 = vmul.f32 %v872, %v1024
        %v1029 = vmul.f32 %v873, %v1025
        %v1030 = vmul.f32 %v874, %v1026
        %v1031 = vmul.f32 %v875, %v1027
        %v1032 = vmul.f32 %v804, %v804
        %v1033 = vmul.f32 %v805, %v805
        %v1034 = vmul.f32 %v806, %v806
        %v1035 = vmul.f32 %v807, %v807
        %v1036 = vmul.f32 %v828, %v828
        %v1037 = vmul.f32 %v829, %v829
        %v1038 = vmul.f32 %v830, %v830
        %v1039 = vmul.f32 %v831, %v831
        %v1040 = vadd.f32 %v1032, %v1036
        %v1041 = vadd.f32 %v1033, %v1037
        %v1042 = vadd.f32 %v1034, %v1038
        %v1043 = vadd.f32 %v1035, %v1039
        %v1044 = vmul.f32 %v808, %v808
        %v1045 = vmul.f32 %v809, %v809
        %v1046 = vmul.f32 %v810, %v810
        %v1047 = vmul.f32 %v811, %v811
        %v1048 = vmul.f32 %v832, %v832
        %v1049 = vmul.f32 %v833, %v833
        %v1050 = vmul.f32 %v834, %v834
        %v1051 = vmul.f32 %v835, %v835
        %v1052 = vadd.f32 %v1044, %v1048
        %v1053 = vadd.f32 %v1045, %v1049
        %v1054 = vadd.f32 %v1046, %v1050
        %v1055 = vadd.f32 %v1047, %v1051
        %v1056 = vadd.f32 %v1040, %v1052
        %v1057 = vadd.f32 %v1041, %v1053
        %v1058 = vadd.f32 %v1042, %v1054
        %v1059 = vadd.f32 %v1043, %v1055
        %v1060 = vmul.f32 %v1056, 0.5
        %v1061 = vmul.f32 %v1057, 0.5
        %v1062 = vmul.f32 %v1058, 0.5
        %v1063 = vmul.f32 %v1059, 0.5
        %1064 = vadd.xlane.f32.xlu0 %v1040
        %v1065 = vpop.xlane.xlu0 %1064
        %1066 = vadd.xlane.f32.xlu0 %v1041
        %v1067 = vpop.xlane.xlu0 %1066
        %1068 = vadd.xlane.f32.xlu0 %v1042
        %v1069 = vpop.xlane.xlu0 %1068
        %1070 = vadd.xlane.f32.xlu0 %v1043
        %v1071 = vpop.xlane.xlu0 %1070
        %1072 = vadd.xlane.f32.xlu0 %v1052
        %v1073 = vpop.xlane.xlu0 %1072
        %1074 = vadd.xlane.f32.xlu0 %v1053
        %v1075 = vpop.xlane.xlu0 %1074
        %1076 = vadd.xlane.f32.xlu0 %v1054
        %v1077 = vpop.xlane.xlu0 %1076
        %1078 = vadd.xlane.f32.xlu0 %v1055
        %v1079 = vpop.xlane.xlu0 %1078
        %v1080 = vmul.f32 %v804, %v808
        %v1081 = vmul.f32 %v805, %v809
        %v1082 = vmul.f32 %v806, %v810
        %v1083 = vmul.f32 %v807, %v811
        %v1084 = vmul.f32 %v828, %v832
        %v1085 = vmul.f32 %v829, %v833
        %v1086 = vmul.f32 %v830, %v834
        %v1087 = vmul.f32 %v831, %v835
        %v1088 = vadd.f32 %v1080, %v1084
        %v1089 = vadd.f32 %v1081, %v1085
        %v1090 = vadd.f32 %v1082, %v1086
        %v1091 = vadd.f32 %v1083, %v1087
        %1092 = vadd.xlane.f32.xlu0 %v1088
        %v1093 = vpop.xlane.xlu0 %1092
        %1094 = vadd.xlane.f32.xlu0 %v1089
        %v1095 = vpop.xlane.xlu0 %1094
        %1096 = vadd.xlane.f32.xlu0 %v1090
        %v1097 = vpop.xlane.xlu0 %1096
        %1098 = vadd.xlane.f32.xlu0 %v1091
        %v1099 = vpop.xlane.xlu0 %1098
        %v1100 = vmul.f32 %v828, %v808
        %v1101 = vmul.f32 %v829, %v809
        %v1102 = vmul.f32 %v830, %v810
        %v1103 = vmul.f32 %v831, %v811
        %v1104 = vmul.f32 %v804, %v832
        %v1105 = vmul.f32 %v805, %v833
        %v1106 = vmul.f32 %v806, %v834
        %v1107 = vmul.f32 %v807, %v835
        %v1108 = vsub.f32 %v1100, %v1104
        %v1109 = vsub.f32 %v1101, %v1105
        %v1110 = vsub.f32 %v1102, %v1106
        %v1111 = vsub.f32 %v1103, %v1107
        %1112 = vadd.xlane.f32.xlu0 %v1108
        %v1113 = vpop.xlane.xlu0 %1112
        %1114 = vadd.xlane.f32.xlu0 %v1109
        %v1115 = vpop.xlane.xlu0 %1114
        %1116 = vadd.xlane.f32.xlu0 %v1110
        %v1117 = vpop.xlane.xlu0 %1116
        %1118 = vadd.xlane.f32.xlu0 %v1111
        %v1119 = vpop.xlane.xlu0 %1118
        %v1120 = vadd.f32 %v1065, %v1073
        %v1121 = vadd.f32 %v1067, %v1075
        %v1122 = vadd.f32 %v1069, %v1077
        %v1123 = vadd.f32 %v1071, %v1079
        %v1124 = vmul.f32 %v1120, 0.5
        %v1125 = vmul.f32 %v1121, 0.5
        %v1126 = vmul.f32 %v1122, 0.5
        %v1127 = vmul.f32 %v1123, 0.5
        %v1128 = vadd.f32 %v1124, 2.220446e-16
        %v1129 = vadd.f32 %v1125, 2.220446e-16
        %v1130 = vadd.f32 %v1126, 2.220446e-16
        %v1131 = vadd.f32 %v1127, 2.220446e-16
        %v1132 = vrcp.pop %v1128
        %v1133 = vmul.f32 %v1128, %v1132
        %v1134 = vsub.f32 1.0, %v1133
        %v1135 = vmul.f32 %v1132, %v1134
        %v1136 = vadd.f32 %v1132, %v1135
        %vm1137 = vweird.f32 %v1128
        %vm1138 = vweird.f32 %v1132
        %vm1139 = vmor %vm1137, %vm1138
        %v1140 = vsel %vm1139, %v1132, %v1136
        %v1141 = vand.u32 2147483647, %v1128
        %vm1142 = vcmp.eq.f32.partialorder %v1141, 8.507059e+37
        %v1143 = vand.u32 %v1128, 2147483648
        %v1144 = vor.u32 1.1754944e-38, %v1143
        %v1145 = vsel %vm1142, %v1144, %v1140
        %v1146 = vrcp.pop %v1129
        %v1147 = vmul.f32 %v1129, %v1146
        %v1148 = vsub.f32 1.0, %v1147
        %v1149 = vmul.f32 %v1146, %v1148
        %v1150 = vadd.f32 %v1146, %v1149
        %vm1151 = vweird.f32 %v1129
        %vm1152 = vweird.f32 %v1146
        %vm1153 = vmor %vm1151, %vm1152
        %v1154 = vsel %vm1153, %v1146, %v1150
        %v1155 = vand.u32 2147483647, %v1129
        %vm1156 = vcmp.eq.f32.partialorder %v1155, 8.507059e+37
        %v1157 = vand.u32 %v1129, 2147483648
        %v1158 = vor.u32 1.1754944e-38, %v1157
        %v1159 = vsel %vm1156, %v1158, %v1154
        %v1160 = vrcp.pop %v1130
        %v1161 = vmul.f32 %v1130, %v1160
        %v1162 = vsub.f32 1.0, %v1161
        %v1163 = vmul.f32 %v1160, %v1162
        %v1164 = vadd.f32 %v1160, %v1163
        %vm1165 = vweird.f32 %v1130
        %vm1166 = vweird.f32 %v1160
        %vm1167 = vmor %vm1165, %vm1166
        %v1168 = vsel %vm1167, %v1160, %v1164
        %v1169 = vand.u32 2147483647, %v1130
        %vm1170 = vcmp.eq.f32.partialorder %v1169, 8.507059e+37
        %v1171 = vand.u32 %v1130, 2147483648
        %v1172 = vor.u32 1.1754944e-38, %v1171
        %v1173 = vsel %vm1170, %v1172, %v1168
        %v1174 = vrcp.pop %v1131
        %v1175 = vmul.f32 %v1131, %v1174
        %v1176 = vsub.f32 1.0, %v1175
        %v1177 = vmul.f32 %v1174, %v1176
        %v1178 = vadd.f32 %v1174, %v1177
        %vm1179 = vweird.f32 %v1131
        %vm1180 = vweird.f32 %v1174
        %vm1181 = vmor %vm1179, %vm1180
        %v1182 = vsel %vm1181, %v1174, %v1178
        %v1183 = vand.u32 2147483647, %v1131
        %vm1184 = vcmp.eq.f32.partialorder %v1183, 8.507059e+37
        %v1185 = vand.u32 %v1131, 2147483648
        %v1186 = vor.u32 1.1754944e-38, %v1185
        %v1187 = vsel %vm1184, %v1186, %v1182
        %v1188 = vmul.f32 %v1065, %v1145
        %v1189 = vmul.f32 %v1067, %v1159
        %v1190 = vmul.f32 %v1069, %v1173
        %v1191 = vmul.f32 %v1071, %v1187
        %v1192 = vmul.f32 %v1060, %v1188
        %v1193 = vmul.f32 %v1061, %v1189
        %v1194 = vmul.f32 %v1062, %v1190
        %v1195 = vmul.f32 %v1063, %v1191
        %v1196 = vmul.f32 %v1073, %v1145
        %v1197 = vmul.f32 %v1075, %v1159
        %v1198 = vmul.f32 %v1077, %v1173
        %v1199 = vmul.f32 %v1079, %v1187
        %v1200 = vmul.f32 %v1060, %v1196
        %v1201 = vmul.f32 %v1061, %v1197
        %v1202 = vmul.f32 %v1062, %v1198
        %v1203 = vmul.f32 %v1063, %v1199
        %v1204 = vmul.f32 %v1093, %v1145
        %v1205 = vmul.f32 %v1095, %v1159
        %v1206 = vmul.f32 %v1097, %v1173
        %v1207 = vmul.f32 %v1099, %v1187
        %v1208 = vmul.f32 %v1060, %v1204
        %v1209 = vmul.f32 %v1061, %v1205
        %v1210 = vmul.f32 %v1062, %v1206
        %v1211 = vmul.f32 %v1063, %v1207
        %v1212 = vmul.f32 %v1113, %v1145
        %v1213 = vmul.f32 %v1115, %v1159
        %v1214 = vmul.f32 %v1117, %v1173
        %v1215 = vmul.f32 %v1119, %v1187
        %v1216 = vmul.f32 %v1060, %v1212
        %v1217 = vmul.f32 %v1061, %v1213
        %v1218 = vmul.f32 %v1062, %v1214
        %v1219 = vmul.f32 %v1063, %v1215
        %v1220 = vmul.f32 %v812, %v812
        %v1221 = vmul.f32 %v813, %v813
        %v1222 = vmul.f32 %v814, %v814
        %v1223 = vmul.f32 %v815, %v815
        %v1224 = vmul.f32 %v836, %v836
        %v1225 = vmul.f32 %v837, %v837
        %v1226 = vmul.f32 %v838, %v838
        %v1227 = vmul.f32 %v839, %v839
        %v1228 = vadd.f32 %v1220, %v1224
        %v1229 = vadd.f32 %v1221, %v1225
        %v1230 = vadd.f32 %v1222, %v1226
        %v1231 = vadd.f32 %v1223, %v1227
        %v1232 = vmul.f32 %v816, %v816
        %v1233 = vmul.f32 %v817, %v817
        %v1234 = vmul.f32 %v818, %v818
        %v1235 = vmul.f32 %v819, %v819
        %v1236 = vmul.f32 %v840, %v840
        %v1237 = vmul.f32 %v841, %v841
        %v1238 = vmul.f32 %v842, %v842
        %v1239 = vmul.f32 %v843, %v843
        %v1240 = vadd.f32 %v1232, %v1236
        %v1241 = vadd.f32 %v1233, %v1237
        %v1242 = vadd.f32 %v1234, %v1238
        %v1243 = vadd.f32 %v1235, %v1239
        %v1244 = vadd.f32 %v1228, %v1240
        %v1245 = vadd.f32 %v1229, %v1241
        %v1246 = vadd.f32 %v1230, %v1242
        %v1247 = vadd.f32 %v1231, %v1243
        %v1248 = vmul.f32 %v1244, 0.5
        %v1249 = vmul.f32 %v1245, 0.5
        %v1250 = vmul.f32 %v1246, 0.5
        %v1251 = vmul.f32 %v1247, 0.5
        %1252 = vadd.xlane.f32.xlu0 %v1228
        %v1253 = vpop.xlane.xlu0 %1252
        %1254 = vadd.xlane.f32.xlu0 %v1229
        %v1255 = vpop.xlane.xlu0 %1254
        %1256 = vadd.xlane.f32.xlu0 %v1230
        %v1257 = vpop.xlane.xlu0 %1256
        %1258 = vadd.xlane.f32.xlu0 %v1231
        %v1259 = vpop.xlane.xlu0 %1258
        %1260 = vadd.xlane.f32.xlu0 %v1240
        %v1261 = vpop.xlane.xlu0 %1260
        %1262 = vadd.xlane.f32.xlu0 %v1241
        %v1263 = vpop.xlane.xlu0 %1262
        %1264 = vadd.xlane.f32.xlu0 %v1242
        %v1265 = vpop.xlane.xlu0 %1264
        %1266 = vadd.xlane.f32.xlu0 %v1243
        %v1267 = vpop.xlane.xlu0 %1266
        %v1268 = vmul.f32 %v812, %v816
        %v1269 = vmul.f32 %v813, %v817
        %v1270 = vmul.f32 %v814, %v818
        %v1271 = vmul.f32 %v815, %v819
        %v1272 = vmul.f32 %v836, %v840
        %v1273 = vmul.f32 %v837, %v841
        %v1274 = vmul.f32 %v838, %v842
        %v1275 = vmul.f32 %v839, %v843
        %v1276 = vadd.f32 %v1268, %v1272
        %v1277 = vadd.f32 %v1269, %v1273
        %v1278 = vadd.f32 %v1270, %v1274
        %v1279 = vadd.f32 %v1271, %v1275
        %1280 = vadd.xlane.f32.xlu0 %v1276
        %v1281 = vpop.xlane.xlu0 %1280
        %1282 = vadd.xlane.f32.xlu0 %v1277
        %v1283 = vpop.xlane.xlu0 %1282
        %1284 = vadd.xlane.f32.xlu0 %v1278
        %v1285 = vpop.xlane.xlu0 %1284
        %1286 = vadd.xlane.f32.xlu0 %v1279
        %v1287 = vpop.xlane.xlu0 %1286
        %v1288 = vmul.f32 %v836, %v816
        %v1289 = vmul.f32 %v837, %v817
        %v1290 = vmul.f32 %v838, %v818
        %v1291 = vmul.f32 %v839, %v819
        %v1292 = vmul.f32 %v812, %v840
        %v1293 = vmul.f32 %v813, %v841
        %v1294 = vmul.f32 %v814, %v842
        %v1295 = vmul.f32 %v815, %v843
        %v1296 = vsub.f32 %v1288, %v1292
        %v1297 = vsub.f32 %v1289, %v1293
        %v1298 = vsub.f32 %v1290, %v1294
        %v1299 = vsub.f32 %v1291, %v1295
        %1300 = vadd.xlane.f32.xlu0 %v1296
        %v1301 = vpop.xlane.xlu0 %1300
        %1302 = vadd.xlane.f32.xlu0 %v1297
        %v1303 = vpop.xlane.xlu0 %1302
        %1304 = vadd.xlane.f32.xlu0 %v1298
        %v1305 = vpop.xlane.xlu0 %1304
        %1306 = vadd.xlane.f32.xlu0 %v1299
        %v1307 = vpop.xlane.xlu0 %1306
        %v1308 = vadd.f32 %v1253, %v1261
        %v1309 = vadd.f32 %v1255, %v1263
        %v1310 = vadd.f32 %v1257, %v1265
        %v1311 = vadd.f32 %v1259, %v1267
        %v1312 = vmul.f32 %v1308, 0.5
        %v1313 = vmul.f32 %v1309, 0.5
        %v1314 = vmul.f32 %v1310, 0.5
        %v1315 = vmul.f32 %v1311, 0.5
        %v1316 = vadd.f32 %v1312, 2.220446e-16
        %v1317 = vadd.f32 %v1313, 2.220446e-16
        %v1318 = vadd.f32 %v1314, 2.220446e-16
        %v1319 = vadd.f32 %v1315, 2.220446e-16
        %v1320 = vrcp.pop %v1316
        %v1321 = vmul.f32 %v1316, %v1320
        %v1322 = vsub.f32 1.0, %v1321
        %v1323 = vmul.f32 %v1320, %v1322
        %v1324 = vadd.f32 %v1320, %v1323
        %vm1325 = vweird.f32 %v1316
        %vm1326 = vweird.f32 %v1320
        %vm1327 = vmor %vm1325, %vm1326
        %v1328 = vsel %vm1327, %v1320, %v1324
        %v1329 = vand.u32 2147483647, %v1316
        %vm1330 = vcmp.eq.f32.partialorder %v1329, 8.507059e+37
        %v1331 = vand.u32 %v1316, 2147483648
        %v1332 = vor.u32 1.1754944e-38, %v1331
        %v1333 = vsel %vm1330, %v1332, %v1328
        %v1334 = vrcp.pop %v1317
        %v1335 = vmul.f32 %v1317, %v1334
        %v1336 = vsub.f32 1.0, %v1335
        %v1337 = vmul.f32 %v1334, %v1336
        %v1338 = vadd.f32 %v1334, %v1337
        %vm1339 = vweird.f32 %v1317
        %vm1340 = vweird.f32 %v1334
        %vm1341 = vmor %vm1339, %vm1340
        %v1342 = vsel %vm1341, %v1334, %v1338
        %v1343 = vand.u32 2147483647, %v1317
        %vm1344 = vcmp.eq.f32.partialorder %v1343, 8.507059e+37
        %v1345 = vand.u32 %v1317, 2147483648
        %v1346 = vor.u32 1.1754944e-38, %v1345
        %v1347 = vsel %vm1344, %v1346, %v1342
        %v1348 = vrcp.pop %v1318
        %v1349 = vmul.f32 %v1318, %v1348
        %v1350 = vsub.f32 1.0, %v1349
        %v1351 = vmul.f32 %v1348, %v1350
        %v1352 = vadd.f32 %v1348, %v1351
        %vm1353 = vweird.f32 %v1318
        %vm1354 = vweird.f32 %v1348
        %vm1355 = vmor %vm1353, %vm1354
        %v1356 = vsel %vm1355, %v1348, %v1352
        %v1357 = vand.u32 2147483647, %v1318
        %vm1358 = vcmp.eq.f32.partialorder %v1357, 8.507059e+37
        %v1359 = vand.u32 %v1318, 2147483648
        %v1360 = vor.u32 1.1754944e-38, %v1359
        %v1361 = vsel %vm1358, %v1360, %v1356
        %v1362 = vrcp.pop %v1319
        %v1363 = vmul.f32 %v1319, %v1362
        %v1364 = vsub.f32 1.0, %v1363
        %v1365 = vmul.f32 %v1362, %v1364
        %v1366 = vadd.f32 %v1362, %v1365
        %vm1367 = vweird.f32 %v1319
        %vm1368 = vweird.f32 %v1362
        %vm1369 = vmor %vm1367, %vm1368
        %v1370 = vsel %vm1369, %v1362, %v1366
        %v1371 = vand.u32 2147483647, %v1319
        %vm1372 = vcmp.eq.f32.partialorder %v1371, 8.507059e+37
        %v1373 = vand.u32 %v1319, 2147483648
        %v1374 = vor.u32 1.1754944e-38, %v1373
        %v1375 = vsel %vm1372, %v1374, %v1370
        %v1376 = vmul.f32 %v1253, %v1333
        %v1377 = vmul.f32 %v1255, %v1347
        %v1378 = vmul.f32 %v1257, %v1361
        %v1379 = vmul.f32 %v1259, %v1375
        %v1380 = vmul.f32 %v1248, %v1376
        %v1381 = vmul.f32 %v1249, %v1377
        %v1382 = vmul.f32 %v1250, %v1378
        %v1383 = vmul.f32 %v1251, %v1379
        %v1384 = vmul.f32 %v1261, %v1333
        %v1385 = vmul.f32 %v1263, %v1347
        %v1386 = vmul.f32 %v1265, %v1361
        %v1387 = vmul.f32 %v1267, %v1375
        %v1388 = vmul.f32 %v1248, %v1384
        %v1389 = vmul.f32 %v1249, %v1385
        %v1390 = vmul.f32 %v1250, %v1386
        %v1391 = vmul.f32 %v1251, %v1387
        %v1392 = vmul.f32 %v1281, %v1333
        %v1393 = vmul.f32 %v1283, %v1347
        %v1394 = vmul.f32 %v1285, %v1361
        %v1395 = vmul.f32 %v1287, %v1375
        %v1396 = vmul.f32 %v1248, %v1392
        %v1397 = vmul.f32 %v1249, %v1393
        %v1398 = vmul.f32 %v1250, %v1394
        %v1399 = vmul.f32 %v1251, %v1395
        %v1400 = vmul.f32 %v1301, %v1333
        %v1401 = vmul.f32 %v1303, %v1347
        %v1402 = vmul.f32 %v1305, %v1361
        %v1403 = vmul.f32 %v1307, %v1375
        %v1404 = vmul.f32 %v1248, %v1400
        %v1405 = vmul.f32 %v1249, %v1401
        %v1406 = vmul.f32 %v1250, %v1402
        %v1407 = vmul.f32 %v1251, %v1403
        %v1408 = vadd.f32 %v1004, 1.4901161e-08
        %v1409 = vadd.f32 %v1005, 1.4901161e-08
        %v1410 = vadd.f32 %v1006, 1.4901161e-08
        %v1411 = vadd.f32 %v1007, 1.4901161e-08
        %v1412 = vadd.f32 %v1012, 1.4901161e-08
        %v1413 = vadd.f32 %v1013, 1.4901161e-08
        %v1414 = vadd.f32 %v1014, 1.4901161e-08
        %v1415 = vadd.f32 %v1015, 1.4901161e-08
        %v1416 = vadd.f32 %v1408, %v1192
        %v1417 = vadd.f32 %v1409, %v1193
        %v1418 = vadd.f32 %v1410, %v1194
        %v1419 = vadd.f32 %v1411, %v1195
        %v1420 = vadd.f32 %v1412, %v1200
        %v1421 = vadd.f32 %v1413, %v1201
        %v1422 = vadd.f32 %v1414, %v1202
        %v1423 = vadd.f32 %v1415, %v1203
        %v1424 = vadd.f32 %v1020, %v1208
        %v1425 = vadd.f32 %v1021, %v1209
        %v1426 = vadd.f32 %v1022, %v1210
        %v1427 = vadd.f32 %v1023, %v1211
        %v1428 = vadd.f32 %v1028, %v1216
        %v1429 = vadd.f32 %v1029, %v1217
        %v1430 = vadd.f32 %v1030, %v1218
        %v1431 = vadd.f32 %v1031, %v1219
        %v1432 = vadd.f32 %v1416, %v1380
        %v1433 = vadd.f32 %v1417, %v1381
        %v1434 = vadd.f32 %v1418, %v1382
        %v1435 = vadd.f32 %v1419, %v1383
        %v1436 = vadd.f32 %v1420, %v1388
        %v1437 = vadd.f32 %v1421, %v1389
        %v1438 = vadd.f32 %v1422, %v1390
        %v1439 = vadd.f32 %v1423, %v1391
        %v1440 = vadd.f32 %v1424, %v1396
        %v1441 = vadd.f32 %v1425, %v1397
        %v1442 = vadd.f32 %v1426, %v1398
        %v1443 = vadd.f32 %v1427, %v1399
        %v1444 = vadd.f32 %v1428, %v1404
        %v1445 = vadd.f32 %v1429, %v1405
        %v1446 = vadd.f32 %v1430, %v1406
        %v1447 = vadd.f32 %v1431, %v1407
        %v1448 = vmul.f32 %v1432, %v1436
        %v1449 = vmul.f32 %v1433, %v1437
        %v1450 = vmul.f32 %v1434, %v1438
        %v1451 = vmul.f32 %v1435, %v1439
        %v1452 = vmul.f32 %v1440, %v1440
        %v1453 = vmul.f32 %v1441, %v1441
        %v1454 = vmul.f32 %v1442, %v1442
        %v1455 = vmul.f32 %v1443, %v1443
        %v1456 = vmul.f32 %v1444, %v1444
        %v1457 = vmul.f32 %v1445, %v1445
        %v1458 = vmul.f32 %v1446, %v1446
        %v1459 = vmul.f32 %v1447, %v1447
        %v1460 = vadd.f32 %v1452, %v1456
        %v1461 = vadd.f32 %v1453, %v1457
        %v1462 = vadd.f32 %v1454, %v1458
        %v1463 = vadd.f32 %v1455, %v1459
        %v1464 = vsub.f32 %v1448, %v1460
        %v1465 = vsub.f32 %v1449, %v1461
        %v1466 = vsub.f32 %v1450, %v1462
        %v1467 = vsub.f32 %v1451, %v1463
        %v1468 = vmax.f32 %v1464, 1.1754944e-38
        %v1469 = vmax.f32 %v1465, 1.1754944e-38
        %v1470 = vmax.f32 %v1466, 1.1754944e-38
        %v1471 = vmax.f32 %v1467, 1.1754944e-38
        %v1472 = vrcp.pop %v1468
        %v1473 = vrcp.pop %v1469
        %v1474 = vrcp.pop %v1470
        %v1475 = vrcp.pop %v1471
        %v1476 = vmul.f32 %v1468, %v1472
        %v1477 = vmul.f32 %v1469, %v1473
        %v1478 = vmul.f32 %v1470, %v1474
        %v1479 = vmul.f32 %v1471, %v1475
        %v1480 = vsub.f32 2.0, %v1476
        %v1481 = vsub.f32 2.0, %v1477
        %v1482 = vsub.f32 2.0, %v1478
        %v1483 = vsub.f32 2.0, %v1479
        %v1484 = vmul.f32 %v1472, %v1480
        %v1485 = vmul.f32 %v1473, %v1481
        %v1486 = vmul.f32 %v1474, %v1482
        %v1487 = vmul.f32 %v1475, %v1483
        %v1488 = vmul.f32 %v1484, %v1436
        %v1489 = vmul.f32 %v1485, %v1437
        %v1490 = vmul.f32 %v1486, %v1438
        %v1491 = vmul.f32 %v1487, %v1439
        %v1492 = vmul.f32 %v1484, %v1432
        %v1493 = vmul.f32 %v1485, %v1433
        %v1494 = vmul.f32 %v1486, %v1434
        %v1495 = vmul.f32 %v1487, %v1435
        %v1496 = vmul.f32 %v1484, %v1440
        %v1497 = vmul.f32 %v1485, %v1441
        %v1498 = vmul.f32 %v1486, %v1442
        %v1499 = vmul.f32 %v1487, %v1443
        %v1500 = vsub.f32 0.0, %v1496
        %v1501 = vsub.f32 0.0, %v1497
        %v1502 = vsub.f32 0.0, %v1498
        %v1503 = vsub.f32 0.0, %v1499
        %v1504 = vmul.f32 %v1484, %v1444
        %v1505 = vmul.f32 %v1485, %v1445
        %v1506 = vmul.f32 %v1486, %v1446
        %v1507 = vmul.f32 %v1487, %v1447
        %v1508 = vsub.f32 0.0, %v1504
        %v1509 = vsub.f32 0.0, %v1505
        %v1510 = vsub.f32 0.0, %v1506
        %v1511 = vsub.f32 0.0, %v1507
        %v1512 = vmul.f32 %v1020, %v1500
        %v1513 = vmul.f32 %v1021, %v1501
        %v1514 = vmul.f32 %v1022, %v1502
        %v1515 = vmul.f32 %v1023, %v1503
        %v1516 = vmul.f32 %v1028, %v1508
        %v1517 = vmul.f32 %v1029, %v1509
        %v1518 = vmul.f32 %v1030, %v1510
        %v1519 = vmul.f32 %v1031, %v1511
        %v1520 = vadd.f32 %v1512, %v1516
        %v1521 = vadd.f32 %v1513, %v1517
        %v1522 = vadd.f32 %v1514, %v1518
        %v1523 = vadd.f32 %v1515, %v1519
        %v1524 = vmul.f32 %v1028, %v1500
        %v1525 = vmul.f32 %v1029, %v1501
        %v1526 = vmul.f32 %v1030, %v1502
        %v1527 = vmul.f32 %v1031, %v1503
        %v1528 = vmul.f32 %v1020, %v1508
        %v1529 = vmul.f32 %v1021, %v1509
        %v1530 = vmul.f32 %v1022, %v1510
        %v1531 = vmul.f32 %v1023, %v1511
        %v1532 = vsub.f32 %v1524, %v1528
        %v1533 = vsub.f32 %v1525, %v1529
        %v1534 = vsub.f32 %v1526, %v1530
        %v1535 = vsub.f32 %v1527, %v1531
        %v1536 = vmul.f32 %v1004, %v1488
        %v1537 = vmul.f32 %v1005, %v1489
        %v1538 = vmul.f32 %v1006, %v1490
        %v1539 = vmul.f32 %v1007, %v1491
        %v1540 = vadd.f32 %v1536, %v1520
        %v1541 = vadd.f32 %v1537, %v1521
        %v1542 = vadd.f32 %v1538, %v1522
        %v1543 = vadd.f32 %v1539, %v1523
        %v1544 = vmul.f32 %v1012, %v1492
        %v1545 = vmul.f32 %v1013, %v1493
        %v1546 = vmul.f32 %v1014, %v1494
        %v1547 = vmul.f32 %v1015, %v1495
        %v1548 = vadd.f32 %v1544, %v1520
        %v1549 = vadd.f32 %v1545, %v1521
        %v1550 = vadd.f32 %v1546, %v1522
        %v1551 = vadd.f32 %v1547, %v1523
        %v1552 = vsub.f32 0.0, %v1532
        %v1553 = vsub.f32 0.0, %v1533
        %v1554 = vsub.f32 0.0, %v1534
        %v1555 = vsub.f32 0.0, %v1535
        %v1556 = vmul.f32 %v1004, %v1500
        %v1557 = vmul.f32 %v1005, %v1501
        %v1558 = vmul.f32 %v1006, %v1502
        %v1559 = vmul.f32 %v1007, %v1503
        %v1560 = vmul.f32 %v1020, %v1492
        %v1561 = vmul.f32 %v1021, %v1493
        %v1562 = vmul.f32 %v1022, %v1494
        %v1563 = vmul.f32 %v1023, %v1495
        %v1564 = vadd.f32 %v1556, %v1560
        %v1565 = vadd.f32 %v1557, %v1561
        %v1566 = vadd.f32 %v1558, %v1562
        %v1567 = vadd.f32 %v1559, %v1563
        %v1568 = vmul.f32 %v1004, %v1508
        %v1569 = vmul.f32 %v1005, %v1509
        %v1570 = vmul.f32 %v1006, %v1510
        %v1571 = vmul.f32 %v1007, %v1511
        %v1572 = vmul.f32 %v1028, %v1492
        %v1573 = vmul.f32 %v1029, %v1493
        %v1574 = vmul.f32 %v1030, %v1494
        %v1575 = vmul.f32 %v1031, %v1495
        %v1576 = vadd.f32 %v1568, %v1572
        %v1577 = vadd.f32 %v1569, %v1573
        %v1578 = vadd.f32 %v1570, %v1574
        %v1579 = vadd.f32 %v1571, %v1575
        %v1580 = vmul.f32 %v1020, %v1488
        %v1581 = vmul.f32 %v1021, %v1489
        %v1582 = vmul.f32 %v1022, %v1490
        %v1583 = vmul.f32 %v1023, %v1491
        %v1584 = vmul.f32 %v1012, %v1500
        %v1585 = vmul.f32 %v1013, %v1501
        %v1586 = vmul.f32 %v1014, %v1502
        %v1587 = vmul.f32 %v1015, %v1503
        %v1588 = vadd.f32 %v1580, %v1584
        %v1589 = vadd.f32 %v1581, %v1585
        %v1590 = vadd.f32 %v1582, %v1586
        %v1591 = vadd.f32 %v1583, %v1587
        %v1592 = vmul.f32 %v1028, %v1488
        %v1593 = vmul.f32 %v1029, %v1489
        %v1594 = vmul.f32 %v1030, %v1490
        %v1595 = vmul.f32 %v1031, %v1491
        %v1596 = vmul.f32 %v1012, %v1508
        %v1597 = vmul.f32 %v1013, %v1509
        %v1598 = vmul.f32 %v1014, %v1510
        %v1599 = vmul.f32 %v1015, %v1511
        %v1600 = vadd.f32 %v1592, %v1596
        %v1601 = vadd.f32 %v1593, %v1597
        %v1602 = vadd.f32 %v1594, %v1598
        %v1603 = vadd.f32 %v1595, %v1599
        %v1604 = vsub.f32 0.0, %v1600
        %v1605 = vsub.f32 0.0, %v1601
        %v1606 = vsub.f32 0.0, %v1602
        %v1607 = vsub.f32 0.0, %v1603
        %v1608 = vmul.f32 %v1540, %v701
        %v1609 = vmul.f32 %v1541, %v702
        %v1610 = vmul.f32 %v1542, %v703
        %v1611 = vmul.f32 %v1543, %v704
        %v1612 = vmul.f32 %v1532, %v713
        %v1613 = vmul.f32 %v1533, %v714
        %v1614 = vmul.f32 %v1534, %v715
        %v1615 = vmul.f32 %v1535, %v716
        %v1616 = vsub.f32 %v1608, %v1612
        %v1617 = vsub.f32 %v1609, %v1613
        %v1618 = vsub.f32 %v1610, %v1614
        %v1619 = vsub.f32 %v1611, %v1615
        %v1620 = vmul.f32 %v1564, %v726
        %v1621 = vmul.f32 %v1565, %v727
        %v1622 = vmul.f32 %v1566, %v728
        %v1623 = vmul.f32 %v1567, %v729
        %v1624 = vadd.f32 %v1616, %v1620
        %v1625 = vadd.f32 %v1617, %v1621
        %v1626 = vadd.f32 %v1618, %v1622
        %v1627 = vadd.f32 %v1619, %v1623
        %v1628 = vmul.f32 %v1576, %v739
        %v1629 = vmul.f32 %v1577, %v740
        %v1630 = vmul.f32 %v1578, %v741
        %v1631 = vmul.f32 %v1579, %v742
        %v1632 = vsub.f32 %v1624, %v1628
        %v1633 = vsub.f32 %v1625, %v1629
        %v1634 = vsub.f32 %v1626, %v1630
        %v1635 = vsub.f32 %v1627, %v1631
        %v1636 = vmul.f32 %v1540, %v713
        %v1637 = vmul.f32 %v1541, %v714
        %v1638 = vmul.f32 %v1542, %v715
        %v1639 = vmul.f32 %v1543, %v716
        %v1640 = vmul.f32 %v1532, %v701
        %v1641 = vmul.f32 %v1533, %v702
        %v1642 = vmul.f32 %v1534, %v703
        %v1643 = vmul.f32 %v1535, %v704
        %v1644 = vadd.f32 %v1636, %v1640
        %v1645 = vadd.f32 %v1637, %v1641
        %v1646 = vadd.f32 %v1638, %v1642
        %v1647 = vadd.f32 %v1639, %v1643
        %v1648 = vmul.f32 %v1564, %v739
        %v1649 = vmul.f32 %v1565, %v740
        %v1650 = vmul.f32 %v1566, %v741
        %v1651 = vmul.f32 %v1567, %v742
        %v1652 = vadd.f32 %v1644, %v1648
        %v1653 = vadd.f32 %v1645, %v1649
        %v1654 = vadd.f32 %v1646, %v1650
        %v1655 = vadd.f32 %v1647, %v1651
        %v1656 = vmul.f32 %v1576, %v726
        %v1657 = vmul.f32 %v1577, %v727
        %v1658 = vmul.f32 %v1578, %v728
        %v1659 = vmul.f32 %v1579, %v729
        %v1660 = vadd.f32 %v1652, %v1656
        %v1661 = vadd.f32 %v1653, %v1657
        %v1662 = vadd.f32 %v1654, %v1658
        %v1663 = vadd.f32 %v1655, %v1659
        %v1664 = vmul.f32 %v1588, %v701
        %v1665 = vmul.f32 %v1589, %v702
        %v1666 = vmul.f32 %v1590, %v703
        %v1667 = vmul.f32 %v1591, %v704
        %v1668 = vmul.f32 %v1604, %v713
        %v1669 = vmul.f32 %v1605, %v714
        %v1670 = vmul.f32 %v1606, %v715
        %v1671 = vmul.f32 %v1607, %v716
        %v1672 = vsub.f32 %v1664, %v1668
        %v1673 = vsub.f32 %v1665, %v1669
        %v1674 = vsub.f32 %v1666, %v1670
        %v1675 = vsub.f32 %v1667, %v1671
        %v1676 = vmul.f32 %v1548, %v726
        %v1677 = vmul.f32 %v1549, %v727
        %v1678 = vmul.f32 %v1550, %v728
        %v1679 = vmul.f32 %v1551, %v729
        %v1680 = vadd.f32 %v1672, %v1676
        %v1681 = vadd.f32 %v1673, %v1677
        %v1682 = vadd.f32 %v1674, %v1678
        %v1683 = vadd.f32 %v1675, %v1679
        %v1684 = vmul.f32 %v1552, %v739
        %v1685 = vmul.f32 %v1553, %v740
        %v1686 = vmul.f32 %v1554, %v741
        %v1687 = vmul.f32 %v1555, %v742
        %v1688 = vsub.f32 %v1680, %v1684
        %v1689 = vsub.f32 %v1681, %v1685
        %v1690 = vsub.f32 %v1682, %v1686
        %v1691 = vsub.f32 %v1683, %v1687
        %v1692 = vmul.f32 %v1588, %v713
        %v1693 = vmul.f32 %v1589, %v714
        %v1694 = vmul.f32 %v1590, %v715
        %v1695 = vmul.f32 %v1591, %v716
        %v1696 = vmul.f32 %v1604, %v701
        %v1697 = vmul.f32 %v1605, %v702
        %v1698 = vmul.f32 %v1606, %v703
        %v1699 = vmul.f32 %v1607, %v704
        %v1700 = vadd.f32 %v1692, %v1696
        %v1701 = vadd.f32 %v1693, %v1697
        %v1702 = vadd.f32 %v1694, %v1698
        %v1703 = vadd.f32 %v1695, %v1699
        %v1704 = vmul.f32 %v1548, %v739
        %v1705 = vmul.f32 %v1549, %v740
        %v1706 = vmul.f32 %v1550, %v741
        %v1707 = vmul.f32 %v1551, %v742
        %v1708 = vadd.f32 %v1700, %v1704
        %v1709 = vadd.f32 %v1701, %v1705
        %v1710 = vadd.f32 %v1702, %v1706
        %v1711 = vadd.f32 %v1703, %v1707
        %v1712 = vmul.f32 %v1552, %v726
        %v1713 = vmul.f32 %v1553, %v727
        %v1714 = vmul.f32 %v1554, %v728
        %v1715 = vmul.f32 %v1555, %v729
        %v1716 = vadd.f32 %v1708, %v1712
        %v1717 = vadd.f32 %v1709, %v1713
        %v1718 = vadd.f32 %v1710, %v1714
        %v1719 = vadd.f32 %v1711, %v1715
        %v1720 = vmul.f32 %v1208, %v1500
        %v1721 = vmul.f32 %v1209, %v1501
        %v1722 = vmul.f32 %v1210, %v1502
        %v1723 = vmul.f32 %v1211, %v1503
        %v1724 = vmul.f32 %v1216, %v1508
        %v1725 = vmul.f32 %v1217, %v1509
        %v1726 = vmul.f32 %v1218, %v1510
        %v1727 = vmul.f32 %v1219, %v1511
        %v1728 = vadd.f32 %v1720, %v1724
        %v1729 = vadd.f32 %v1721, %v1725
        %v1730 = vadd.f32 %v1722, %v1726
        %v1731 = vadd.f32 %v1723, %v1727
        %v1732 = vmul.f32 %v1216, %v1500
        %v1733 = vmul.f32 %v1217, %v1501
        %v1734 = vmul.f32 %v1218, %v1502
        %v1735 = vmul.f32 %v1219, %v1503
        %v1736 = vmul.f32 %v1208, %v1508
        %v1737 = vmul.f32 %v1209, %v1509
        %v1738 = vmul.f32 %v1210, %v1510
        %v1739 = vmul.f32 %v1211, %v1511
        %v1740 = vsub.f32 %v1732, %v1736
        %v1741 = vsub.f32 %v1733, %v1737
        %v1742 = vsub.f32 %v1734, %v1738
        %v1743 = vsub.f32 %v1735, %v1739
        %v1744 = vmul.f32 %v1192, %v1488
        %v1745 = vmul.f32 %v1193, %v1489
        %v1746 = vmul.f32 %v1194, %v1490
        %v1747 = vmul.f32 %v1195, %v1491
        %v1748 = vadd.f32 %v1744, %v1728
        %v1749 = vadd.f32 %v1745, %v1729
        %v1750 = vadd.f32 %v1746, %v1730
        %v1751 = vadd.f32 %v1747, %v1731
        %v1752 = vmul.f32 %v1200, %v1492
        %v1753 = vmul.f32 %v1201, %v1493
        %v1754 = vmul.f32 %v1202, %v1494
        %v1755 = vmul.f32 %v1203, %v1495
        %v1756 = vadd.f32 %v1752, %v1728
        %v1757 = vadd.f32 %v1753, %v1729
        %v1758 = vadd.f32 %v1754, %v1730
        %v1759 = vadd.f32 %v1755, %v1731
        %v1760 = vsub.f32 0.0, %v1740
        %v1761 = vsub.f32 0.0, %v1741
        %v1762 = vsub.f32 0.0, %v1742
        %v1763 = vsub.f32 0.0, %v1743
        %v1764 = vmul.f32 %v1192, %v1500
        %v1765 = vmul.f32 %v1193, %v1501
        %v1766 = vmul.f32 %v1194, %v1502
        %v1767 = vmul.f32 %v1195, %v1503
        %v1768 = vmul.f32 %v1208, %v1492
        %v1769 = vmul.f32 %v1209, %v1493
        %v1770 = vmul.f32 %v1210, %v1494
        %v1771 = vmul.f32 %v1211, %v1495
        %v1772 = vadd.f32 %v1764, %v1768
        %v1773 = vadd.f32 %v1765, %v1769
        %v1774 = vadd.f32 %v1766, %v1770
        %v1775 = vadd.f32 %v1767, %v1771
        %v1776 = vmul.f32 %v1192, %v1508
        %v1777 = vmul.f32 %v1193, %v1509
        %v1778 = vmul.f32 %v1194, %v1510
        %v1779 = vmul.f32 %v1195, %v1511
        %v1780 = vmul.f32 %v1216, %v1492
        %v1781 = vmul.f32 %v1217, %v1493
        %v1782 = vmul.f32 %v1218, %v1494
        %v1783 = vmul.f32 %v1219, %v1495
        %v1784 = vadd.f32 %v1776, %v1780
        %v1785 = vadd.f32 %v1777, %v1781
        %v1786 = vadd.f32 %v1778, %v1782
        %v1787 = vadd.f32 %v1779, %v1783
        %v1788 = vmul.f32 %v1208, %v1488
        %v1789 = vmul.f32 %v1209, %v1489
        %v1790 = vmul.f32 %v1210, %v1490
        %v1791 = vmul.f32 %v1211, %v1491
        %v1792 = vmul.f32 %v1200, %v1500
        %v1793 = vmul.f32 %v1201, %v1501
        %v1794 = vmul.f32 %v1202, %v1502
        %v1795 = vmul.f32 %v1203, %v1503
        %v1796 = vadd.f32 %v1788, %v1792
        %v1797 = vadd.f32 %v1789, %v1793
        %v1798 = vadd.f32 %v1790, %v1794
        %v1799 = vadd.f32 %v1791, %v1795
        %v1800 = vmul.f32 %v1216, %v1488
        %v1801 = vmul.f32 %v1217, %v1489
        %v1802 = vmul.f32 %v1218, %v1490
        %v1803 = vmul.f32 %v1219, %v1491
        %v1804 = vmul.f32 %v1200, %v1508
        %v1805 = vmul.f32 %v1201, %v1509
        %v1806 = vmul.f32 %v1202, %v1510
        %v1807 = vmul.f32 %v1203, %v1511
        %v1808 = vadd.f32 %v1800, %v1804
        %v1809 = vadd.f32 %v1801, %v1805
        %v1810 = vadd.f32 %v1802, %v1806
        %v1811 = vadd.f32 %v1803, %v1807
        %v1812 = vsub.f32 0.0, %v1808
        %v1813 = vsub.f32 0.0, %v1809
        %v1814 = vsub.f32 0.0, %v1810
        %v1815 = vsub.f32 0.0, %v1811
        %v1816 = vmul.f32 %v1748, %v701
        %v1817 = vmul.f32 %v1749, %v702
        %v1818 = vmul.f32 %v1750, %v703
        %v1819 = vmul.f32 %v1751, %v704
        %v1820 = vmul.f32 %v1740, %v713
        %v1821 = vmul.f32 %v1741, %v714
        %v1822 = vmul.f32 %v1742, %v715
        %v1823 = vmul.f32 %v1743, %v716
        %v1824 = vsub.f32 %v1816, %v1820
        %v1825 = vsub.f32 %v1817, %v1821
        %v1826 = vsub.f32 %v1818, %v1822
        %v1827 = vsub.f32 %v1819, %v1823
        %v1828 = vmul.f32 %v1772, %v726
        %v1829 = vmul.f32 %v1773, %v727
        %v1830 = vmul.f32 %v1774, %v728
        %v1831 = vmul.f32 %v1775, %v729
        %v1832 = vadd.f32 %v1824, %v1828
        %v1833 = vadd.f32 %v1825, %v1829
        %v1834 = vadd.f32 %v1826, %v1830
        %v1835 = vadd.f32 %v1827, %v1831
        %v1836 = vmul.f32 %v1784, %v739
        %v1837 = vmul.f32 %v1785, %v740
        %v1838 = vmul.f32 %v1786, %v741
        %v1839 = vmul.f32 %v1787, %v742
        %v1840 = vsub.f32 %v1832, %v1836
        %v1841 = vsub.f32 %v1833, %v1837
        %v1842 = vsub.f32 %v1834, %v1838
        %v1843 = vsub.f32 %v1835, %v1839
        %v1844 = vmul.f32 %v1748, %v713
        %v1845 = vmul.f32 %v1749, %v714
        %v1846 = vmul.f32 %v1750, %v715
        %v1847 = vmul.f32 %v1751, %v716
        %v1848 = vmul.f32 %v1740, %v701
        %v1849 = vmul.f32 %v1741, %v702
        %v1850 = vmul.f32 %v1742, %v703
        %v1851 = vmul.f32 %v1743, %v704
        %v1852 = vadd.f32 %v1844, %v1848
        %v1853 = vadd.f32 %v1845, %v1849
        %v1854 = vadd.f32 %v1846, %v1850
        %v1855 = vadd.f32 %v1847, %v1851
        %v1856 = vmul.f32 %v1772, %v739
        %v1857 = vmul.f32 %v1773, %v740
        %v1858 = vmul.f32 %v1774, %v741
        %v1859 = vmul.f32 %v1775, %v742
        %v1860 = vadd.f32 %v1852, %v1856
        %v1861 = vadd.f32 %v1853, %v1857
        %v1862 = vadd.f32 %v1854, %v1858
        %v1863 = vadd.f32 %v1855, %v1859
        %v1864 = vmul.f32 %v1784, %v726
        %v1865 = vmul.f32 %v1785, %v727
        %v1866 = vmul.f32 %v1786, %v728
        %v1867 = vmul.f32 %v1787, %v729
        %v1868 = vadd.f32 %v1860, %v1864
        %v1869 = vadd.f32 %v1861, %v1865
        %v1870 = vadd.f32 %v1862, %v1866
        %v1871 = vadd.f32 %v1863, %v1867
        %v1872 = vmul.f32 %v1796, %v701
        %v1873 = vmul.f32 %v1797, %v702
        %v1874 = vmul.f32 %v1798, %v703
        %v1875 = vmul.f32 %v1799, %v704
        %v1876 = vmul.f32 %v1812, %v713
        %v1877 = vmul.f32 %v1813, %v714
        %v1878 = vmul.f32 %v1814, %v715
        %v1879 = vmul.f32 %v1815, %v716
        %v1880 = vsub.f32 %v1872, %v1876
        %v1881 = vsub.f32 %v1873, %v1877
        %v1882 = vsub.f32 %v1874, %v1878
        %v1883 = vsub.f32 %v1875, %v1879
        %v1884 = vmul.f32 %v1756, %v726
        %v1885 = vmul.f32 %v1757, %v727
        %v1886 = vmul.f32 %v1758, %v728
        %v1887 = vmul.f32 %v1759, %v729
        %v1888 = vadd.f32 %v1880, %v1884
        %v1889 = vadd.f32 %v1881, %v1885
        %v1890 = vadd.f32 %v1882, %v1886
        %v1891 = vadd.f32 %v1883, %v1887
        %v1892 = vmul.f32 %v1760, %v739
        %v1893 = vmul.f32 %v1761, %v740
        %v1894 = vmul.f32 %v1762, %v741
        %v1895 = vmul.f32 %v1763, %v742
        %v1896 = vsub.f32 %v1888, %v1892
        %v1897 = vsub.f32 %v1889, %v1893
        %v1898 = vsub.f32 %v1890, %v1894
        %v1899 = vsub.f32 %v1891, %v1895
        %v1900 = vmul.f32 %v1796, %v713
        %v1901 = vmul.f32 %v1797, %v714
        %v1902 = vmul.f32 %v1798, %v715
        %v1903 = vmul.f32 %v1799, %v716
        %v1904 = vmul.f32 %v1812, %v701
        %v1905 = vmul.f32 %v1813, %v702
        %v1906 = vmul.f32 %v1814, %v703
        %v1907 = vmul.f32 %v1815, %v704
        %v1908 = vadd.f32 %v1900, %v1904
        %v1909 = vadd.f32 %v1901, %v1905
        %v1910 = vadd.f32 %v1902, %v1906
        %v1911 = vadd.f32 %v1903, %v1907
        %v1912 = vmul.f32 %v1756, %v739
        %v1913 = vmul.f32 %v1757, %v740
        %v1914 = vmul.f32 %v1758, %v741
        %v1915 = vmul.f32 %v1759, %v742
        %v1916 = vadd.f32 %v1908, %v1912
        %v1917 = vadd.f32 %v1909, %v1913
        %v1918 = vadd.f32 %v1910, %v1914
        %v1919 = vadd.f32 %v1911, %v1915
        %v1920 = vmul.f32 %v1760, %v726
        %v1921 = vmul.f32 %v1761, %v727
        %v1922 = vmul.f32 %v1762, %v728
        %v1923 = vmul.f32 %v1763, %v729
        %v1924 = vadd.f32 %v1916, %v1920
        %v1925 = vadd.f32 %v1917, %v1921
        %v1926 = vadd.f32 %v1918, %v1922
        %v1927 = vadd.f32 %v1919, %v1923
        %v1928 = vmul.f32 %v1396, %v1500
        %v1929 = vmul.f32 %v1397, %v1501
        %v1930 = vmul.f32 %v1398, %v1502
        %v1931 = vmul.f32 %v1399, %v1503
        %v1932 = vmul.f32 %v1404, %v1508
        %v1933 = vmul.f32 %v1405, %v1509
        %v1934 = vmul.f32 %v1406, %v1510
        %v1935 = vmul.f32 %v1407, %v1511
        %v1936 = vadd.f32 %v1928, %v1932
        %v1937 = vadd.f32 %v1929, %v1933
        %v1938 = vadd.f32 %v1930, %v1934
        %v1939 = vadd.f32 %v1931, %v1935
        %v1940 = vmul.f32 %v1404, %v1500
        %v1941 = vmul.f32 %v1405, %v1501
        %v1942 = vmul.f32 %v1406, %v1502
        %v1943 = vmul.f32 %v1407, %v1503
        %v1944 = vmul.f32 %v1396, %v1508
        %v1945 = vmul.f32 %v1397, %v1509
        %v1946 = vmul.f32 %v1398, %v1510
        %v1947 = vmul.f32 %v1399, %v1511
        %v1948 = vsub.f32 %v1940, %v1944
        %v1949 = vsub.f32 %v1941, %v1945
        %v1950 = vsub.f32 %v1942, %v1946
        %v1951 = vsub.f32 %v1943, %v1947
        %v1952 = vmul.f32 %v1380, %v1488
        %v1953 = vmul.f32 %v1381, %v1489
        %v1954 = vmul.f32 %v1382, %v1490
        %v1955 = vmul.f32 %v1383, %v1491
        %v1956 = vadd.f32 %v1952, %v1936
        %v1957 = vadd.f32 %v1953, %v1937
        %v1958 = vadd.f32 %v1954, %v1938
        %v1959 = vadd.f32 %v1955, %v1939
        %v1960 = vmul.f32 %v1388, %v1492
        %v1961 = vmul.f32 %v1389, %v1493
        %v1962 = vmul.f32 %v1390, %v1494
        %v1963 = vmul.f32 %v1391, %v1495
        %v1964 = vadd.f32 %v1960, %v1936
        %v1965 = vadd.f32 %v1961, %v1937
        %v1966 = vadd.f32 %v1962, %v1938
        %v1967 = vadd.f32 %v1963, %v1939
        %v1968 = vsub.f32 0.0, %v1948
        %v1969 = vsub.f32 0.0, %v1949
        %v1970 = vsub.f32 0.0, %v1950
        %v1971 = vsub.f32 0.0, %v1951
        %v1972 = vmul.f32 %v1380, %v1500
        %v1973 = vmul.f32 %v1381, %v1501
        %v1974 = vmul.f32 %v1382, %v1502
        %v1975 = vmul.f32 %v1383, %v1503
        %v1976 = vmul.f32 %v1396, %v1492
        %v1977 = vmul.f32 %v1397, %v1493
        %v1978 = vmul.f32 %v1398, %v1494
        %v1979 = vmul.f32 %v1399, %v1495
        %v1980 = vadd.f32 %v1972, %v1976
        %v1981 = vadd.f32 %v1973, %v1977
        %v1982 = vadd.f32 %v1974, %v1978
        %v1983 = vadd.f32 %v1975, %v1979
        %v1984 = vmul.f32 %v1380, %v1508
        %v1985 = vmul.f32 %v1381, %v1509
        %v1986 = vmul.f32 %v1382, %v1510
        %v1987 = vmul.f32 %v1383, %v1511
        %v1988 = vmul.f32 %v1404, %v1492
        %v1989 = vmul.f32 %v1405, %v1493
        %v1990 = vmul.f32 %v1406, %v1494
        %v1991 = vmul.f32 %v1407, %v1495
        %v1992 = vadd.f32 %v1984, %v1988
        %v1993 = vadd.f32 %v1985, %v1989
        %v1994 = vadd.f32 %v1986, %v1990
        %v1995 = vadd.f32 %v1987, %v1991
        %v1996 = vmul.f32 %v1396, %v1488
        %v1997 = vmul.f32 %v1397, %v1489
        %v1998 = vmul.f32 %v1398, %v1490
        %v1999 = vmul.f32 %v1399, %v1491
        %v2000 = vmul.f32 %v1388, %v1500
        %v2001 = vmul.f32 %v1389, %v1501
        %v2002 = vmul.f32 %v1390, %v1502
        %v2003 = vmul.f32 %v1391, %v1503
        %v2004 = vadd.f32 %v1996, %v2000
        %v2005 = vadd.f32 %v1997, %v2001
        %v2006 = vadd.f32 %v1998, %v2002
        %v2007 = vadd.f32 %v1999, %v2003
        %v2008 = vmul.f32 %v1404, %v1488
        %v2009 = vmul.f32 %v1405, %v1489
        %v2010 = vmul.f32 %v1406, %v1490
        %v2011 = vmul.f32 %v1407, %v1491
        %v2012 = vmul.f32 %v1388, %v1508
        %v2013 = vmul.f32 %v1389, %v1509
        %v2014 = vmul.f32 %v1390, %v1510
        %v2015 = vmul.f32 %v1391, %v1511
        %v2016 = vadd.f32 %v2008, %v2012
        %v2017 = vadd.f32 %v2009, %v2013
        %v2018 = vadd.f32 %v2010, %v2014
        %v2019 = vadd.f32 %v2011, %v2015
        %v2020 = vsub.f32 0.0, %v2016
        %v2021 = vsub.f32 0.0, %v2017
        %v2022 = vsub.f32 0.0, %v2018
        %v2023 = vsub.f32 0.0, %v2019
        %v2024 = vmul.f32 %v1956, %v701
        %v2025 = vmul.f32 %v1957, %v702
        %v2026 = vmul.f32 %v1958, %v703
        %v2027 = vmul.f32 %v1959, %v704
        %v2028 = vmul.f32 %v1948, %v713
        %v2029 = vmul.f32 %v1949, %v714
        %v2030 = vmul.f32 %v1950, %v715
        %v2031 = vmul.f32 %v1951, %v716
        %v2032 = vsub.f32 %v2024, %v2028
        %v2033 = vsub.f32 %v2025, %v2029
        %v2034 = vsub.f32 %v2026, %v2030
        %v2035 = vsub.f32 %v2027, %v2031
        %v2036 = vmul.f32 %v1980, %v726
        %v2037 = vmul.f32 %v1981, %v727
        %v2038 = vmul.f32 %v1982, %v728
        %v2039 = vmul.f32 %v1983, %v729
        %v2040 = vadd.f32 %v2032, %v2036
        %v2041 = vadd.f32 %v2033, %v2037
        %v2042 = vadd.f32 %v2034, %v2038
        %v2043 = vadd.f32 %v2035, %v2039
        %v2044 = vmul.f32 %v1992, %v739
        %v2045 = vmul.f32 %v1993, %v740
        %v2046 = vmul.f32 %v1994, %v741
        %v2047 = vmul.f32 %v1995, %v742
        %v2048 = vsub.f32 %v2040, %v2044
        %v2049 = vsub.f32 %v2041, %v2045
        %v2050 = vsub.f32 %v2042, %v2046
        %v2051 = vsub.f32 %v2043, %v2047
        %v2052 = vmul.f32 %v1956, %v713
        %v2053 = vmul.f32 %v1957, %v714
        %v2054 = vmul.f32 %v1958, %v715
        %v2055 = vmul.f32 %v1959, %v716
        %v2056 = vmul.f32 %v1948, %v701
        %v2057 = vmul.f32 %v1949, %v702
        %v2058 = vmul.f32 %v1950, %v703
        %v2059 = vmul.f32 %v1951, %v704
        %v2060 = vadd.f32 %v2052, %v2056
        %v2061 = vadd.f32 %v2053, %v2057
        %v2062 = vadd.f32 %v2054, %v2058
        %v2063 = vadd.f32 %v2055, %v2059
        %v2064 = vmul.f32 %v1980, %v739
        %v2065 = vmul.f32 %v1981, %v740
        %v2066 = vmul.f32 %v1982, %v741
        %v2067 = vmul.f32 %v1983, %v742
        %v2068 = vadd.f32 %v2060, %v2064
        %v2069 = vadd.f32 %v2061, %v2065
        %v2070 = vadd.f32 %v2062, %v2066
        %v2071 = vadd.f32 %v2063, %v2067
        %v2072 = vmul.f32 %v1992, %v726
        %v2073 = vmul.f32 %v1993, %v727
        %v2074 = vmul.f32 %v1994, %v728
        %v2075 = vmul.f32 %v1995, %v729
        %v2076 = vadd.f32 %v2068, %v2072
        %v2077 = vadd.f32 %v2069, %v2073
        %v2078 = vadd.f32 %v2070, %v2074
        %v2079 = vadd.f32 %v2071, %v2075
        %v2080 = vmul.f32 %v2004, %v701
        %v2081 = vmul.f32 %v2005, %v702
        %v2082 = vmul.f32 %v2006, %v703
        %v2083 = vmul.f32 %v2007, %v704
        %v2084 = vmul.f32 %v2020, %v713
        %v2085 = vmul.f32 %v2021, %v714
        %v2086 = vmul.f32 %v2022, %v715
        %v2087 = vmul.f32 %v2023, %v716
        %v2088 = vsub.f32 %v2080, %v2084
        %v2089 = vsub.f32 %v2081, %v2085
        %v2090 = vsub.f32 %v2082, %v2086
        %v2091 = vsub.f32 %v2083, %v2087
        %v2092 = vmul.f32 %v1964, %v726
        %v2093 = vmul.f32 %v1965, %v727
        %v2094 = vmul.f32 %v1966, %v728
        %v2095 = vmul.f32 %v1967, %v729
        %v2096 = vadd.f32 %v2088, %v2092
        %v2097 = vadd.f32 %v2089, %v2093
        %v2098 = vadd.f32 %v2090, %v2094
        %v2099 = vadd.f32 %v2091, %v2095
        %v2100 = vmul.f32 %v1968, %v739
        %v2101 = vmul.f32 %v1969, %v740
        %v2102 = vmul.f32 %v1970, %v741
        %v2103 = vmul.f32 %v1971, %v742
        %v2104 = vsub.f32 %v2096, %v2100
        %v2105 = vsub.f32 %v2097, %v2101
        %v2106 = vsub.f32 %v2098, %v2102
        %v2107 = vsub.f32 %v2099, %v2103
        %v2108 = vmul.f32 %v2004, %v713
        %v2109 = vmul.f32 %v2005, %v714
        %v2110 = vmul.f32 %v2006, %v715
        %v2111 = vmul.f32 %v2007, %v716
        %v2112 = vmul.f32 %v2020, %v701
        %v2113 = vmul.f32 %v2021, %v702
        %v2114 = vmul.f32 %v2022, %v703
        %v2115 = vmul.f32 %v2023, %v704
        %v2116 = vadd.f32 %v2108, %v2112
        %v2117 = vadd.f32 %v2109, %v2113
        %v2118 = vadd.f32 %v2110, %v2114
        %v2119 = vadd.f32 %v2111, %v2115
        %v2120 = vmul.f32 %v1964, %v739
        %v2121 = vmul.f32 %v1965, %v740
        %v2122 = vmul.f32 %v1966, %v741
        %v2123 = vmul.f32 %v1967, %v742
        %v2124 = vadd.f32 %v2116, %v2120
        %v2125 = vadd.f32 %v2117, %v2121
        %v2126 = vadd.f32 %v2118, %v2122
        %v2127 = vadd.f32 %v2119, %v2123
        %v2128 = vmul.f32 %v1968, %v726
        %v2129 = vmul.f32 %v1969, %v727
        %v2130 = vmul.f32 %v1970, %v728
        %v2131 = vmul.f32 %v1971, %v729
        %v2132 = vadd.f32 %v2124, %v2128
        %v2133 = vadd.f32 %v2125, %v2129
        %v2134 = vadd.f32 %v2126, %v2130
        %v2135 = vadd.f32 %v2127, %v2131
        %v2136 = vstv %s672
        %v2137 = vmul.f32 %v1632, %v2136
        %v2138 = vmul.f32 %v1633, %v2136
        %v2139 = vmul.f32 %v1634, %v2136
        %v2140 = vmul.f32 %v1635, %v2136
        %2141 = vst [vmem:[%s640] sm:$0xff] %v2137
        %2142 = vst [vmem:[%s640 + $0x8] sm:$0xff] %v2138
        %2143 = vst [vmem:[%s640 + $0x10] sm:$0xff] %v2139
        %2144 = vst [vmem:[%s640 + $0x18] sm:$0xff] %v2140
        %v2145 = vmul.f32 %v1688, %v2136
        %v2146 = vmul.f32 %v1689, %v2136
        %v2147 = vmul.f32 %v1690, %v2136
        %v2148 = vmul.f32 %v1691, %v2136
        %s2149 = scalar_lea.vmem %s640, 32 [#allocation8]
        %2150 = vst [vmem:[%s2149] sm:$0xff] %v2145
        %2151 = vst [vmem:[%s2149 + $0x8] sm:$0xff] %v2146
        %2152 = vst [vmem:[%s2149 + $0x10] sm:$0xff] %v2147
        %2153 = vst [vmem:[%s2149 + $0x18] sm:$0xff] %v2148
        %v2154 = vmul.f32 %v1660, %v2136
        %v2155 = vmul.f32 %v1661, %v2136
        %v2156 = vmul.f32 %v1662, %v2136
        %v2157 = vmul.f32 %v1663, %v2136
        %2158 = vst [vmem:[%s646] sm:$0xff] %v2154
        %2159 = vst [vmem:[%s646 + $0x8] sm:$0xff] %v2155
        %2160 = vst [vmem:[%s646 + $0x10] sm:$0xff] %v2156
        %2161 = vst [vmem:[%s646 + $0x18] sm:$0xff] %v2157
        %v2162 = vmul.f32 %v1716, %v2136
        %v2163 = vmul.f32 %v1717, %v2136
        %v2164 = vmul.f32 %v1718, %v2136
        %v2165 = vmul.f32 %v1719, %v2136
        %s2166 = scalar_lea.vmem %s646, 32 [#allocation9]
        %2167 = vst [vmem:[%s2166] sm:$0xff] %v2162
        %2168 = vst [vmem:[%s2166 + $0x8] sm:$0xff] %v2163
        %2169 = vst [vmem:[%s2166 + $0x10] sm:$0xff] %v2164
        %2170 = vst [vmem:[%s2166 + $0x18] sm:$0xff] %v2165
        %v2171 = vmul.f32 %v1840, %v2136
        %v2172 = vmul.f32 %v1841, %v2136
        %v2173 = vmul.f32 %v1842, %v2136
        %v2174 = vmul.f32 %v1843, %v2136
        %s2175 = scalar_lea.vmem %s640, 64 [#allocation8]
        %2176 = vst [vmem:[%s2175] sm:$0xff] %v2171
        %2177 = vst [vmem:[%s2175 + $0x8] sm:$0xff] %v2172
        %2178 = vst [vmem:[%s2175 + $0x10] sm:$0xff] %v2173
        %2179 = vst [vmem:[%s2175 + $0x18] sm:$0xff] %v2174
        %v2180 = vmul.f32 %v1896, %v2136
        %v2181 = vmul.f32 %v1897, %v2136
        %v2182 = vmul.f32 %v1898, %v2136
        %v2183 = vmul.f32 %v1899, %v2136
        %s2184 = scalar_lea.vmem %s640, 96 [#allocation8]
        %2185 = vst [vmem:[%s2184] sm:$0xff] %v2180
        %2186 = vst [vmem:[%s2184 + $0x8] sm:$0xff] %v2181
        %2187 = vst [vmem:[%s2184 + $0x10] sm:$0xff] %v2182
        %2188 = vst [vmem:[%s2184 + $0x18] sm:$0xff] %v2183
        %v2189 = vmul.f32 %v1868, %v2136
        %v2190 = vmul.f32 %v1869, %v2136
        %v2191 = vmul.f32 %v1870, %v2136
        %v2192 = vmul.f32 %v1871, %v2136
        %s2193 = scalar_lea.vmem %s646, 64 [#allocation9]
        %2194 = vst [vmem:[%s2193] sm:$0xff] %v2189
        %2195 = vst [vmem:[%s2193 + $0x8] sm:$0xff] %v2190
        %2196 = vst [vmem:[%s2193 + $0x10] sm:$0xff] %v2191
        %2197 = vst [vmem:[%s2193 + $0x18] sm:$0xff] %v2192
        %v2198 = vmul.f32 %v1924, %v2136
        %v2199 = vmul.f32 %v1925, %v2136
        %v2200 = vmul.f32 %v1926, %v2136
        %v2201 = vmul.f32 %v1927, %v2136
        %s2202 = scalar_lea.vmem %s646, 96 [#allocation9]
        %2203 = vst [vmem:[%s2202] sm:$0xff] %v2198
        %2204 = vst [vmem:[%s2202 + $0x8] sm:$0xff] %v2199
        %2205 = vst [vmem:[%s2202 + $0x10] sm:$0xff] %v2200
        %2206 = vst [vmem:[%s2202 + $0x18] sm:$0xff] %v2201
        %v2207 = vmul.f32 %v2048, %v2136
        %v2208 = vmul.f32 %v2049, %v2136
        %v2209 = vmul.f32 %v2050, %v2136
        %v2210 = vmul.f32 %v2051, %v2136
        %s2211 = scalar_lea.vmem %s640, 128 [#allocation8]
        %2212 = vst [vmem:[%s2211] sm:$0xff] %v2207
        %2213 = vst [vmem:[%s2211 + $0x8] sm:$0xff] %v2208
        %2214 = vst [vmem:[%s2211 + $0x10] sm:$0xff] %v2209
        %2215 = vst [vmem:[%s2211 + $0x18] sm:$0xff] %v2210
        %v2216 = vmul.f32 %v2104, %v2136
        %v2217 = vmul.f32 %v2105, %v2136
        %v2218 = vmul.f32 %v2106, %v2136
        %v2219 = vmul.f32 %v2107, %v2136
        %s2220 = scalar_lea.vmem %s640, 160 [#allocation8]
        %2221 = vst [vmem:[%s2220] sm:$0xff] %v2216
        %2222 = vst [vmem:[%s2220 + $0x8] sm:$0xff] %v2217
        %2223 = vst [vmem:[%s2220 + $0x10] sm:$0xff] %v2218
        %2224 = vst [vmem:[%s2220 + $0x18] sm:$0xff] %v2219
        %v2225 = vmul.f32 %v2076, %v2136
        %v2226 = vmul.f32 %v2077, %v2136
        %v2227 = vmul.f32 %v2078, %v2136
        %v2228 = vmul.f32 %v2079, %v2136
        %s2229 = scalar_lea.vmem %s646, 128 [#allocation9]
        %2230 = vst [vmem:[%s2229] sm:$0xff] %v2225
        %2231 = vst [vmem:[%s2229 + $0x8] sm:$0xff] %v2226
        %2232 = vst [vmem:[%s2229 + $0x10] sm:$0xff] %v2227
        %2233 = vst [vmem:[%s2229 + $0x18] sm:$0xff] %v2228
        %v2234 = vmul.f32 %v2132, %v2136
        %v2235 = vmul.f32 %v2133, %v2136
        %v2236 = vmul.f32 %v2134, %v2136
        %v2237 = vmul.f32 %v2135, %v2136
        %s2238 = scalar_lea.vmem %s646, 160 [#allocation9]
        %2239 = vst [vmem:[%s2238] sm:$0xff] %v2234
        %2240 = vst [vmem:[%s2238 + $0x8] sm:$0xff] %v2235
        %2241 = vst [vmem:[%s2238 + $0x10] sm:$0xff] %v2236
        %2242 = vst [vmem:[%s2238 + $0x18] sm:$0xff] %v2237
        %s2243 = sand.u32 %s148, 1
        %s2244 = sand.u32 %s148, 1
        %s2245 = smul.addr %s2244, 192
        %s2246 = scalar_lea.vmem [#allocation8], %s2245
        %s2247 = sand.u32 %s176, 1
        %s2248 = sand.u32 %s176, 1
        %s2249 = smul.addr %s2248, 192
        %s2250 = scalar_lea.vmem [#allocation9], %s2249
        // Predicated region
        $region149: #{_forward.1} parent=131 // pred_check
          %p2251 = pneg %p158
        $region150: #{_forward.1} parent=131 // pred_check_branch
          %2253 = sbr.rel (%p2251) target = $region152
        $region151: #{_forward.1} parent=131 // pred_region
          %s2254 = smul.u32 4, %s26
          %s2255 = ssub.s32 9, %s2254
          %p2256 = scmp.lt.s32.totalorder %s2255, 4
          %s2257 = scalar_select %p2256, %s2255, 4
          %s2258 = smul.u32 48, %s2257
          %p2259 = scmp.ne.s32.totalorder 0, %s2258
          %s2260 = smul.addr %s25, 54
          %s2261 = sadd.s32 %s2254, %s2260
          %s2262 = smul.addr %s2261, 8
          %s2263 = scalar_lea.vmem %s4, %s2262
          // Predicated region
          $region153: #{_forward.1} parent=151 // pred_check
            %p2264 = pneg %p2259
          $region154: #{_forward.1} parent=151 // pred_check_branch
            %2266 = sbr.rel (%p2264) target = $region156
          $region155: #{_forward.1} parent=151 // pred_region
            // Predicated region
            $region157: #{_forward.1} parent=155 // pred_check
              _
            $region158: #{_forward.1} parent=155 // pred_check_branch
              %2268 = sbr.rel (0) target = $region160
            $region159: #{_forward.1} parent=155 // pred_region
              // Predicated region
              $region179: #{_forward.1} parent=159 // pred_check
                _
              $region180: #{_forward.1} parent=159 // pred_check_branch
                %2374 = sbr.rel (0) target = $region182
              $region181: #{_forward.1} parent=159 // pred_region
                %s2375 = sshrl.u32 %s2257, 2
                // While loop
                $region183: #{_forward.1} parent=181 // loop_pre_header
                  _
                $region184: #{_forward.1} parent=181 // loop_header
                  %s2377 = sphi 0, %s2379
                  %p2378 = scmp.ge.s32.totalorder %s2377, %s2375
                  %s2382 = sphi 0, %s2435
                  %s2383 = sphi %s2246, %s2438
                  %s2384 = sphi %s2263, %s2439
                $region185: #{_forward.1} parent=181 // loop_header_branch
                  %2381 = sbr.rel (%p2378) target = $region189
                $region186: #{_forward.1} parent=181 // loop_body
                  %v2385 = vld [vmem:[%s2383] sm:$0xff]
                  %2386 = vst [vmem:[%s2384] sm:$0xff] %v2385
                  %v2387 = vld [vmem:[%s2383 + $0x8] sm:$0xff]
                  %2388 = vst [vmem:[%s2384 + $0x8] sm:$0xff] %v2387
                  %v2389 = vld [vmem:[%s2383 + $0x10] sm:$0xff]
                  %2390 = vst [vmem:[%s2384 + $0x10] sm:$0xff] %v2389
                  %v2391 = vld [vmem:[%s2383 + $0x18] sm:$0xff]
                  %2392 = vst [vmem:[%s2384 + $0x18] sm:$0xff] %v2391
                  %v2393 = vld [vmem:[%s2383 + $0x20] sm:$0xff]
                  %2394 = vst [vmem:[%s2384 + $0x48] sm:$0xff] %v2393
                  %v2395 = vld [vmem:[%s2383 + $0x28] sm:$0xff]
                  %2396 = vst [vmem:[%s2384 + $0x50] sm:$0xff] %v2395
                  %v2397 = vld [vmem:[%s2383 + $0x30] sm:$0xff]
                  %2398 = vst [vmem:[%s2384 + $0x58] sm:$0xff] %v2397
                  %v2399 = vld [vmem:[%s2383 + $0x38] sm:$0xff]
                  %2400 = vst [vmem:[%s2384 + $0x60] sm:$0xff] %v2399
                  %v2401 = vld [vmem:[%s2383 + $0x40] sm:$0xff]
                  %2402 = vst [vmem:[%s2384 + $0x90] sm:$0xff] %v2401
                  %v2403 = vld [vmem:[%s2383 + $0x48] sm:$0xff]
                  %2404 = vst [vmem:[%s2384 + $0x98] sm:$0xff] %v2403
                  %v2405 = vld [vmem:[%s2383 + $0x50] sm:$0xff]
                  %2406 = vst [vmem:[%s2384 + $0xa0] sm:$0xff] %v2405
                  %v2407 = vld [vmem:[%s2383 + $0x58] sm:$0xff]
                  %2408 = vst [vmem:[%s2384 + $0xa8] sm:$0xff] %v2407
                  %v2409 = vld [vmem:[%s2383 + $0x60] sm:$0xff]
                  %2410 = vst [vmem:[%s2384 + $0xd8] sm:$0xff] %v2409
                  %v2411 = vld [vmem:[%s2383 + $0x68] sm:$0xff]
                  %2412 = vst [vmem:[%s2384 + $0xe0] sm:$0xff] %v2411
                  %v2413 = vld [vmem:[%s2383 + $0x70] sm:$0xff]
                  %2414 = vst [vmem:[%s2384 + $0xe8] sm:$0xff] %v2413
                  %v2415 = vld [vmem:[%s2383 + $0x78] sm:$0xff]
                  %2416 = vst [vmem:[%s2384 + $0xf0] sm:$0xff] %v2415
                  %v2417 = vld [vmem:[%s2383 + $0x80] sm:$0xff]
                  %2418 = vst [vmem:[%s2384 + $0x120] sm:$0xff] %v2417
                  %v2419 = vld [vmem:[%s2383 + $0x88] sm:$0xff]
                  %2420 = vst [vmem:[%s2384 + $0x128] sm:$0xff] %v2419
                  %v2421 = vld [vmem:[%s2383 + $0x90] sm:$0xff]
                  %2422 = vst [vmem:[%s2384 + $0x130] sm:$0xff] %v2421
                  %v2423 = vld [vmem:[%s2383 + $0x98] sm:$0xff]
                  %2424 = vst [vmem:[%s2384 + $0x138] sm:$0xff] %v2423
                  %v2425 = vld [vmem:[%s2383 + $0xa0] sm:$0xff]
                  %2426 = vst [vmem:[%s2384 + $0x168] sm:$0xff] %v2425
                  %v2427 = vld [vmem:[%s2383 + $0xa8] sm:$0xff]
                  %2428 = vst [vmem:[%s2384 + $0x170] sm:$0xff] %v2427
                  %v2429 = vld [vmem:[%s2383 + $0xb0] sm:$0xff]
                  %2430 = vst [vmem:[%s2384 + $0x178] sm:$0xff] %v2429
                  %v2431 = vld [vmem:[%s2383 + $0xb8] sm:$0xff]
                  %2432 = vst [vmem:[%s2384 + $0x180] sm:$0xff] %v2431
                  %s2433 = sadd.s32 1, %s2382
                  %p2434 = scmp.ge.s32.totalorder %s2433, %s2375
                  %s2435 = scalar_select %p2434, 0, %s2433
                  %s2436 = smul.u32 %s2435, 32
                  %s2437 = smul.u32 %s2435, 32
                  %s2438 = scalar_lea.vmem %s2246, %s2436 [#allocation8]
                  %s2439 = scalar_lea.vmem %s2263, %s2437
                $region187: #{_forward.1} parent=181 // loop_footer
                  %s2379 = sadd.s32 %s2377, 1
                $region188: #{_forward.1} parent=181 // loop_footer_branch
                  %2376 = sbr.rel target = $region184
                $region189: #{_forward.1} parent=181 // loop_exit
                  _
                %s2440 = sshrl.u32 %s2257, 2
                %s2441 = sand.u32 %s2257, 3
                %s2442 = smul.u32 %s2440, 4
                %s2443 = smul.u32 8, %s2442
                %s2444 = scalar_lea.vmem %s2246, %s2443 [#allocation8]
                %s2445 = smul.u32 8, %s2442
                %s2446 = scalar_lea.vmem %s2263, %s2445
                // While loop
                $region190: #{_forward.1} parent=181 // loop_pre_header
                  _
                $region191: #{_forward.1} parent=181 // loop_header
                  %s2448 = sphi 0, %s2450
                  %p2449 = scmp.ge.s32.totalorder %s2448, %s2441
                  %s2453 = sphi 0, %s2470
                  %s2454 = sphi %s2444, %s2473
                  %s2455 = sphi %s2446, %s2474
                $region192: #{_forward.1} parent=181 // loop_header_branch
                  %2452 = sbr.rel (%p2449) target = $region196
                $region193: #{_forward.1} parent=181 // loop_body
                  %v2456 = vld [vmem:[%s2454] sm:$0xff]
                  %2457 = vst [vmem:[%s2455] sm:$0xff] %v2456
                  %v2458 = vld [vmem:[%s2454 + $0x20] sm:$0xff]
                  %2459 = vst [vmem:[%s2455 + $0x48] sm:$0xff] %v2458
                  %v2460 = vld [vmem:[%s2454 + $0x40] sm:$0xff]
                  %2461 = vst [vmem:[%s2455 + $0x90] sm:$0xff] %v2460
                  %v2462 = vld [vmem:[%s2454 + $0x60] sm:$0xff]
                  %2463 = vst [vmem:[%s2455 + $0xd8] sm:$0xff] %v2462
                  %v2464 = vld [vmem:[%s2454 + $0x80] sm:$0xff]
                  %2465 = vst [vmem:[%s2455 + $0x120] sm:$0xff] %v2464
                  %v2466 = vld [vmem:[%s2454 + $0xa0] sm:$0xff]
                  %2467 = vst [vmem:[%s2455 + $0x168] sm:$0xff] %v2466
                  %s2468 = sadd.s32 1, %s2453
                  %p2469 = scmp.ge.s32.totalorder %s2468, %s2441
                  %s2470 = scalar_select %p2469, 0, %s2468
                  %s2471 = smul.u32 %s2470, 8
                  %s2472 = smul.u32 %s2470, 8
                  %s2473 = scalar_lea.vmem %s2444, %s2471 [#allocation8]
                  %s2474 = scalar_lea.vmem %s2446, %s2472
                $region194: #{_forward.1} parent=181 // loop_footer
                  %s2450 = sadd.s32 %s2448, 1
                $region195: #{_forward.1} parent=181 // loop_footer_branch
                  %2447 = sbr.rel target = $region191
                $region196: #{_forward.1} parent=181 // loop_exit
                  _
              $region182: #{_forward.1} parent=159 // pred_fallthru
                _
              // Predicated region
              $region197: #{_forward.1} parent=159 // pred_check
                _
              $region198: #{_forward.1} parent=159 // pred_check_branch
                %2476 = sbr.rel target = $region200
              $region199: #{_forward.1} parent=159 // pred_region
                _
              $region200: #{_forward.1} parent=159 // pred_fallthru
                _
            $region160: #{_forward.1} parent=155 // pred_fallthru
              _
            // Predicated region
            $region161: #{_forward.1} parent=155 // pred_check
              _
            $region162: #{_forward.1} parent=155 // pred_check_branch
              %2270 = sbr.rel target = $region164
            $region163: #{_forward.1} parent=155 // pred_region
              %s2272 = ssub.s32 256, 1
              %s2273 = sshrl.u32 %s2257, 2
              // While loop
              $region165: #{_forward.1} parent=163 // loop_pre_header
                _
              $region166: #{_forward.1} parent=163 // loop_header
                %s2275 = sphi 0, %s2277
                %p2276 = scmp.ge.s32.totalorder %s2275, %s2273
                %s2280 = sphi 0, %s2333
                %s2281 = sphi %s2246, %s2336
                %s2282 = sphi %s2263, %s2337
              $region167: #{_forward.1} parent=163 // loop_header_branch
                %2279 = sbr.rel (%p2276) target = $region171
              $region168: #{_forward.1} parent=163 // loop_body
                %v2283 = vld [vmem:[%s2281] sm:%s2272]
                %2284 = vst [vmem:[%s2282] sm:%s2272] %v2283
                %v2285 = vld [vmem:[%s2281 + $0x8] sm:%s2272]
                %2286 = vst [vmem:[%s2282 + $0x8] sm:%s2272] %v2285
                %v2287 = vld [vmem:[%s2281 + $0x10] sm:%s2272]
                %2288 = vst [vmem:[%s2282 + $0x10] sm:%s2272] %v2287
                %v2289 = vld [vmem:[%s2281 + $0x18] sm:%s2272]
                %2290 = vst [vmem:[%s2282 + $0x18] sm:%s2272] %v2289
                %v2291 = vld [vmem:[%s2281 + $0x20] sm:%s2272]
                %2292 = vst [vmem:[%s2282 + $0x48] sm:%s2272] %v2291
                %v2293 = vld [vmem:[%s2281 + $0x28] sm:%s2272]
                %2294 = vst [vmem:[%s2282 + $0x50] sm:%s2272] %v2293
                %v2295 = vld [vmem:[%s2281 + $0x30] sm:%s2272]
                %2296 = vst [vmem:[%s2282 + $0x58] sm:%s2272] %v2295
                %v2297 = vld [vmem:[%s2281 + $0x38] sm:%s2272]
                %2298 = vst [vmem:[%s2282 + $0x60] sm:%s2272] %v2297
                %v2299 = vld [vmem:[%s2281 + $0x40] sm:%s2272]
                %2300 = vst [vmem:[%s2282 + $0x90] sm:%s2272] %v2299
                %v2301 = vld [vmem:[%s2281 + $0x48] sm:%s2272]
                %2302 = vst [vmem:[%s2282 + $0x98] sm:%s2272] %v2301
                %v2303 = vld [vmem:[%s2281 + $0x50] sm:%s2272]
                %2304 = vst [vmem:[%s2282 + $0xa0] sm:%s2272] %v2303
                %v2305 = vld [vmem:[%s2281 + $0x58] sm:%s2272]
                %2306 = vst [vmem:[%s2282 + $0xa8] sm:%s2272] %v2305
                %v2307 = vld [vmem:[%s2281 + $0x60] sm:%s2272]
                %2308 = vst [vmem:[%s2282 + $0xd8] sm:%s2272] %v2307
                %v2309 = vld [vmem:[%s2281 + $0x68] sm:%s2272]
                %2310 = vst [vmem:[%s2282 + $0xe0] sm:%s2272] %v2309
                %v2311 = vld [vmem:[%s2281 + $0x70] sm:%s2272]
                %2312 = vst [vmem:[%s2282 + $0xe8] sm:%s2272] %v2311
                %v2313 = vld [vmem:[%s2281 + $0x78] sm:%s2272]
                %2314 = vst [vmem:[%s2282 + $0xf0] sm:%s2272] %v2313
                %v2315 = vld [vmem:[%s2281 + $0x80] sm:%s2272]
                %2316 = vst [vmem:[%s2282 + $0x120] sm:%s2272] %v2315
                %v2317 = vld [vmem:[%s2281 + $0x88] sm:%s2272]
                %2318 = vst [vmem:[%s2282 + $0x128] sm:%s2272] %v2317
                %v2319 = vld [vmem:[%s2281 + $0x90] sm:%s2272]
                %2320 = vst [vmem:[%s2282 + $0x130] sm:%s2272] %v2319
                %v2321 = vld [vmem:[%s2281 + $0x98] sm:%s2272]
                %2322 = vst [vmem:[%s2282 + $0x138] sm:%s2272] %v2321
                %v2323 = vld [vmem:[%s2281 + $0xa0] sm:%s2272]
                %2324 = vst [vmem:[%s2282 + $0x168] sm:%s2272] %v2323
                %v2325 = vld [vmem:[%s2281 + $0xa8] sm:%s2272]
                %2326 = vst [vmem:[%s2282 + $0x170] sm:%s2272] %v2325
                %v2327 = vld [vmem:[%s2281 + $0xb0] sm:%s2272]
                %2328 = vst [vmem:[%s2282 + $0x178] sm:%s2272] %v2327
                %v2329 = vld [vmem:[%s2281 + $0xb8] sm:%s2272]
                %2330 = vst [vmem:[%s2282 + $0x180] sm:%s2272] %v2329
                %s2331 = sadd.s32 1, %s2280
                %p2332 = scmp.ge.s32.totalorder %s2331, %s2273
                %s2333 = scalar_select %p2332, 0, %s2331
                %s2334 = smul.u32 %s2333, 32
                %s2335 = smul.u32 %s2333, 32
                %s2336 = scalar_lea.vmem %s2246, %s2334 [#allocation8]
                %s2337 = scalar_lea.vmem %s2263, %s2335
              $region169: #{_forward.1} parent=163 // loop_footer
                %s2277 = sadd.s32 %s2275, 1
              $region170: #{_forward.1} parent=163 // loop_footer_branch
                %2274 = sbr.rel target = $region166
              $region171: #{_forward.1} parent=163 // loop_exit
                _
              %s2338 = sshrl.u32 %s2257, 2
              %s2339 = sand.u32 %s2257, 3
              %s2340 = smul.u32 %s2338, 4
              %s2341 = smul.u32 8, %s2340
              %s2342 = scalar_lea.vmem %s2246, %s2341 [#allocation8]
              %s2343 = smul.u32 8, %s2340
              %s2344 = scalar_lea.vmem %s2263, %s2343
              // While loop
              $region172: #{_forward.1} parent=163 // loop_pre_header
                _
              $region173: #{_forward.1} parent=163 // loop_header
                %s2346 = sphi 0, %s2348
                %p2347 = scmp.ge.s32.totalorder %s2346, %s2339
                %s2351 = sphi 0, %s2368
                %s2352 = sphi %s2342, %s2371
                %s2353 = sphi %s2344, %s2372
              $region174: #{_forward.1} parent=163 // loop_header_branch
                %2350 = sbr.rel (%p2347) target = $region178
              $region175: #{_forward.1} parent=163 // loop_body
                %v2354 = vld [vmem:[%s2352] sm:%s2272]
                %2355 = vst [vmem:[%s2353] sm:%s2272] %v2354
                %v2356 = vld [vmem:[%s2352 + $0x20] sm:%s2272]
                %2357 = vst [vmem:[%s2353 + $0x48] sm:%s2272] %v2356
                %v2358 = vld [vmem:[%s2352 + $0x40] sm:%s2272]
                %2359 = vst [vmem:[%s2353 + $0x90] sm:%s2272] %v2358
                %v2360 = vld [vmem:[%s2352 + $0x60] sm:%s2272]
                %2361 = vst [vmem:[%s2353 + $0xd8] sm:%s2272] %v2360
                %v2362 = vld [vmem:[%s2352 + $0x80] sm:%s2272]
                %2363 = vst [vmem:[%s2353 + $0x120] sm:%s2272] %v2362
                %v2364 = vld [vmem:[%s2352 + $0xa0] sm:%s2272]
                %2365 = vst [vmem:[%s2353 + $0x168] sm:%s2272] %v2364
                %s2366 = sadd.s32 1, %s2351
                %p2367 = scmp.ge.s32.totalorder %s2366, %s2339
                %s2368 = scalar_select %p2367, 0, %s2366
                %s2369 = smul.u32 %s2368, 8
                %s2370 = smul.u32 %s2368, 8
                %s2371 = scalar_lea.vmem %s2342, %s2369 [#allocation8]
                %s2372 = scalar_lea.vmem %s2344, %s2370
              $region176: #{_forward.1} parent=163 // loop_footer
                %s2348 = sadd.s32 %s2346, 1
              $region177: #{_forward.1} parent=163 // loop_footer_branch
                %2345 = sbr.rel target = $region173
              $region178: #{_forward.1} parent=163 // loop_exit
                _
            $region164: #{_forward.1} parent=155 // pred_fallthru
              _
          $region156: #{_forward.1} parent=151 // pred_fallthru
            _
          %2477 = vnop
        $region152: #{_forward.1} parent=131 // pred_fallthru
          _
        // Predicated region
        $region201: #{_forward.1} parent=131 // pred_check
          %p2478 = pneg %p186
        $region202: #{_forward.1} parent=131 // pred_check_branch
          %2480 = sbr.rel (%p2478) target = $region204
        $region203: #{_forward.1} parent=131 // pred_region
          %s2481 = smul.u32 4, %s26
          %s2482 = ssub.s32 9, %s2481
          %p2483 = scmp.lt.s32.totalorder %s2482, 4
          %s2484 = scalar_select %p2483, %s2482, 4
          %s2485 = smul.u32 48, %s2484
          %p2486 = scmp.ne.s32.totalorder 0, %s2485
          %s2487 = smul.addr %s25, 54
          %s2488 = sadd.s32 %s2481, %s2487
          %s2489 = smul.addr %s2488, 8
          %s2490 = scalar_lea.vmem %s5, %s2489
          // Predicated region
          $region205: #{_forward.1} parent=203 // pred_check
            %p2491 = pneg %p2486
          $region206: #{_forward.1} parent=203 // pred_check_branch
            %2493 = sbr.rel (%p2491) target = $region208
          $region207: #{_forward.1} parent=203 // pred_region
            // Predicated region
            $region209: #{_forward.1} parent=207 // pred_check
              _
            $region210: #{_forward.1} parent=207 // pred_check_branch
              %2495 = sbr.rel (0) target = $region212
            $region211: #{_forward.1} parent=207 // pred_region
              // Predicated region
              $region231: #{_forward.1} parent=211 // pred_check
                _
              $region232: #{_forward.1} parent=211 // pred_check_branch
                %2601 = sbr.rel (0) target = $region234
              $region233: #{_forward.1} parent=211 // pred_region
                %s2602 = sshrl.u32 %s2484, 2
                // While loop
                $region235: #{_forward.1} parent=233 // loop_pre_header
                  _
                $region236: #{_forward.1} parent=233 // loop_header
                  %s2604 = sphi 0, %s2606
                  %p2605 = scmp.ge.s32.totalorder %s2604, %s2602
                  %s2609 = sphi 0, %s2662
                  %s2610 = sphi %s2250, %s2665
                  %s2611 = sphi %s2490, %s2666
                $region237: #{_forward.1} parent=233 // loop_header_branch
                  %2608 = sbr.rel (%p2605) target = $region241
                $region238: #{_forward.1} parent=233 // loop_body
                  %v2612 = vld [vmem:[%s2610] sm:$0xff]
                  %2613 = vst [vmem:[%s2611] sm:$0xff] %v2612
                  %v2614 = vld [vmem:[%s2610 + $0x8] sm:$0xff]
                  %2615 = vst [vmem:[%s2611 + $0x8] sm:$0xff] %v2614
                  %v2616 = vld [vmem:[%s2610 + $0x10] sm:$0xff]
                  %2617 = vst [vmem:[%s2611 + $0x10] sm:$0xff] %v2616
                  %v2618 = vld [vmem:[%s2610 + $0x18] sm:$0xff]
                  %2619 = vst [vmem:[%s2611 + $0x18] sm:$0xff] %v2618
                  %v2620 = vld [vmem:[%s2610 + $0x20] sm:$0xff]
                  %2621 = vst [vmem:[%s2611 + $0x48] sm:$0xff] %v2620
                  %v2622 = vld [vmem:[%s2610 + $0x28] sm:$0xff]
                  %2623 = vst [vmem:[%s2611 + $0x50] sm:$0xff] %v2622
                  %v2624 = vld [vmem:[%s2610 + $0x30] sm:$0xff]
                  %2625 = vst [vmem:[%s2611 + $0x58] sm:$0xff] %v2624
                  %v2626 = vld [vmem:[%s2610 + $0x38] sm:$0xff]
                  %2627 = vst [vmem:[%s2611 + $0x60] sm:$0xff] %v2626
                  %v2628 = vld [vmem:[%s2610 + $0x40] sm:$0xff]
                  %2629 = vst [vmem:[%s2611 + $0x90] sm:$0xff] %v2628
                  %v2630 = vld [vmem:[%s2610 + $0x48] sm:$0xff]
                  %2631 = vst [vmem:[%s2611 + $0x98] sm:$0xff] %v2630
                  %v2632 = vld [vmem:[%s2610 + $0x50] sm:$0xff]
                  %2633 = vst [vmem:[%s2611 + $0xa0] sm:$0xff] %v2632
                  %v2634 = vld [vmem:[%s2610 + $0x58] sm:$0xff]
                  %2635 = vst [vmem:[%s2611 + $0xa8] sm:$0xff] %v2634
                  %v2636 = vld [vmem:[%s2610 + $0x60] sm:$0xff]
                  %2637 = vst [vmem:[%s2611 + $0xd8] sm:$0xff] %v2636
                  %v2638 = vld [vmem:[%s2610 + $0x68] sm:$0xff]
                  %2639 = vst [vmem:[%s2611 + $0xe0] sm:$0xff] %v2638
                  %v2640 = vld [vmem:[%s2610 + $0x70] sm:$0xff]
                  %2641 = vst [vmem:[%s2611 + $0xe8] sm:$0xff] %v2640
                  %v2642 = vld [vmem:[%s2610 + $0x78] sm:$0xff]
                  %2643 = vst [vmem:[%s2611 + $0xf0] sm:$0xff] %v2642
                  %v2644 = vld [vmem:[%s2610 + $0x80] sm:$0xff]
                  %2645 = vst [vmem:[%s2611 + $0x120] sm:$0xff] %v2644
                  %v2646 = vld [vmem:[%s2610 + $0x88] sm:$0xff]
                  %2647 = vst [vmem:[%s2611 + $0x128] sm:$0xff] %v2646
                  %v2648 = vld [vmem:[%s2610 + $0x90] sm:$0xff]
                  %2649 = vst [vmem:[%s2611 + $0x130] sm:$0xff] %v2648
                  %v2650 = vld [vmem:[%s2610 + $0x98] sm:$0xff]
                  %2651 = vst [vmem:[%s2611 + $0x138] sm:$0xff] %v2650
                  %v2652 = vld [vmem:[%s2610 + $0xa0] sm:$0xff]
                  %2653 = vst [vmem:[%s2611 + $0x168] sm:$0xff] %v2652
                  %v2654 = vld [vmem:[%s2610 + $0xa8] sm:$0xff]
                  %2655 = vst [vmem:[%s2611 + $0x170] sm:$0xff] %v2654
                  %v2656 = vld [vmem:[%s2610 + $0xb0] sm:$0xff]
                  %2657 = vst [vmem:[%s2611 + $0x178] sm:$0xff] %v2656
                  %v2658 = vld [vmem:[%s2610 + $0xb8] sm:$0xff]
                  %2659 = vst [vmem:[%s2611 + $0x180] sm:$0xff] %v2658
                  %s2660 = sadd.s32 1, %s2609
                  %p2661 = scmp.ge.s32.totalorder %s2660, %s2602
                  %s2662 = scalar_select %p2661, 0, %s2660
                  %s2663 = smul.u32 %s2662, 32
                  %s2664 = smul.u32 %s2662, 32
                  %s2665 = scalar_lea.vmem %s2250, %s2663 [#allocation9]
                  %s2666 = scalar_lea.vmem %s2490, %s2664
                $region239: #{_forward.1} parent=233 // loop_footer
                  %s2606 = sadd.s32 %s2604, 1
                $region240: #{_forward.1} parent=233 // loop_footer_branch
                  %2603 = sbr.rel target = $region236
                $region241: #{_forward.1} parent=233 // loop_exit
                  _
                %s2667 = sshrl.u32 %s2484, 2
                %s2668 = sand.u32 %s2484, 3
                %s2669 = smul.u32 %s2667, 4
                %s2670 = smul.u32 8, %s2669
                %s2671 = scalar_lea.vmem %s2250, %s2670 [#allocation9]
                %s2672 = smul.u32 8, %s2669
                %s2673 = scalar_lea.vmem %s2490, %s2672
                // While loop
                $region242: #{_forward.1} parent=233 // loop_pre_header
                  _
                $region243: #{_forward.1} parent=233 // loop_header
                  %s2675 = sphi 0, %s2677
                  %p2676 = scmp.ge.s32.totalorder %s2675, %s2668
                  %s2680 = sphi 0, %s2697
                  %s2681 = sphi %s2671, %s2700
                  %s2682 = sphi %s2673, %s2701
                $region244: #{_forward.1} parent=233 // loop_header_branch
                  %2679 = sbr.rel (%p2676) target = $region248
                $region245: #{_forward.1} parent=233 // loop_body
                  %v2683 = vld [vmem:[%s2681] sm:$0xff]
                  %2684 = vst [vmem:[%s2682] sm:$0xff] %v2683
                  %v2685 = vld [vmem:[%s2681 + $0x20] sm:$0xff]
                  %2686 = vst [vmem:[%s2682 + $0x48] sm:$0xff] %v2685
                  %v2687 = vld [vmem:[%s2681 + $0x40] sm:$0xff]
                  %2688 = vst [vmem:[%s2682 + $0x90] sm:$0xff] %v2687
                  %v2689 = vld [vmem:[%s2681 + $0x60] sm:$0xff]
                  %2690 = vst [vmem:[%s2682 + $0xd8] sm:$0xff] %v2689
                  %v2691 = vld [vmem:[%s2681 + $0x80] sm:$0xff]
                  %2692 = vst [vmem:[%s2682 + $0x120] sm:$0xff] %v2691
                  %v2693 = vld [vmem:[%s2681 + $0xa0] sm:$0xff]
                  %2694 = vst [vmem:[%s2682 + $0x168] sm:$0xff] %v2693
                  %s2695 = sadd.s32 1, %s2680
                  %p2696 = scmp.ge.s32.totalorder %s2695, %s2668
                  %s2697 = scalar_select %p2696, 0, %s2695
                  %s2698 = smul.u32 %s2697, 8
                  %s2699 = smul.u32 %s2697, 8
                  %s2700 = scalar_lea.vmem %s2671, %s2698 [#allocation9]
                  %s2701 = scalar_lea.vmem %s2673, %s2699
                $region246: #{_forward.1} parent=233 // loop_footer
                  %s2677 = sadd.s32 %s2675, 1
                $region247: #{_forward.1} parent=233 // loop_footer_branch
                  %2674 = sbr.rel target = $region243
                $region248: #{_forward.1} parent=233 // loop_exit
                  _
              $region234: #{_forward.1} parent=211 // pred_fallthru
                _
              // Predicated region
              $region249: #{_forward.1} parent=211 // pred_check
                _
              $region250: #{_forward.1} parent=211 // pred_check_branch
                %2703 = sbr.rel target = $region252
              $region251: #{_forward.1} parent=211 // pred_region
                _
              $region252: #{_forward.1} parent=211 // pred_fallthru
                _
            $region212: #{_forward.1} parent=207 // pred_fallthru
              _
            // Predicated region
            $region213: #{_forward.1} parent=207 // pred_check
              _
            $region214: #{_forward.1} parent=207 // pred_check_branch
              %2497 = sbr.rel target = $region216
            $region215: #{_forward.1} parent=207 // pred_region
              %s2499 = ssub.s32 256, 1
              %s2500 = sshrl.u32 %s2484, 2
              // While loop
              $region217: #{_forward.1} parent=215 // loop_pre_header
                _
              $region218: #{_forward.1} parent=215 // loop_header
                %s2502 = sphi 0, %s2504
                %p2503 = scmp.ge.s32.totalorder %s2502, %s2500
                %s2507 = sphi 0, %s2560
                %s2508 = sphi %s2250, %s2563
                %s2509 = sphi %s2490, %s2564
              $region219: #{_forward.1} parent=215 // loop_header_branch
                %2506 = sbr.rel (%p2503) target = $region223
              $region220: #{_forward.1} parent=215 // loop_body
                %v2510 = vld [vmem:[%s2508] sm:%s2499]
                %2511 = vst [vmem:[%s2509] sm:%s2499] %v2510
                %v2512 = vld [vmem:[%s2508 + $0x8] sm:%s2499]
                %2513 = vst [vmem:[%s2509 + $0x8] sm:%s2499] %v2512
                %v2514 = vld [vmem:[%s2508 + $0x10] sm:%s2499]
                %2515 = vst [vmem:[%s2509 + $0x10] sm:%s2499] %v2514
                %v2516 = vld [vmem:[%s2508 + $0x18] sm:%s2499]
                %2517 = vst [vmem:[%s2509 + $0x18] sm:%s2499] %v2516
                %v2518 = vld [vmem:[%s2508 + $0x20] sm:%s2499]
                %2519 = vst [vmem:[%s2509 + $0x48] sm:%s2499] %v2518
                %v2520 = vld [vmem:[%s2508 + $0x28] sm:%s2499]
                %2521 = vst [vmem:[%s2509 + $0x50] sm:%s2499] %v2520
                %v2522 = vld [vmem:[%s2508 + $0x30] sm:%s2499]
                %2523 = vst [vmem:[%s2509 + $0x58] sm:%s2499] %v2522
                %v2524 = vld [vmem:[%s2508 + $0x38] sm:%s2499]
                %2525 = vst [vmem:[%s2509 + $0x60] sm:%s2499] %v2524
                %v2526 = vld [vmem:[%s2508 + $0x40] sm:%s2499]
                %2527 = vst [vmem:[%s2509 + $0x90] sm:%s2499] %v2526
                %v2528 = vld [vmem:[%s2508 + $0x48] sm:%s2499]
                %2529 = vst [vmem:[%s2509 + $0x98] sm:%s2499] %v2528
                %v2530 = vld [vmem:[%s2508 + $0x50] sm:%s2499]
                %2531 = vst [vmem:[%s2509 + $0xa0] sm:%s2499] %v2530
                %v2532 = vld [vmem:[%s2508 + $0x58] sm:%s2499]
                %2533 = vst [vmem:[%s2509 + $0xa8] sm:%s2499] %v2532
                %v2534 = vld [vmem:[%s2508 + $0x60] sm:%s2499]
                %2535 = vst [vmem:[%s2509 + $0xd8] sm:%s2499] %v2534
                %v2536 = vld [vmem:[%s2508 + $0x68] sm:%s2499]
                %2537 = vst [vmem:[%s2509 + $0xe0] sm:%s2499] %v2536
                %v2538 = vld [vmem:[%s2508 + $0x70] sm:%s2499]
                %2539 = vst [vmem:[%s2509 + $0xe8] sm:%s2499] %v2538
                %v2540 = vld [vmem:[%s2508 + $0x78] sm:%s2499]
                %2541 = vst [vmem:[%s2509 + $0xf0] sm:%s2499] %v2540
                %v2542 = vld [vmem:[%s2508 + $0x80] sm:%s2499]
                %2543 = vst [vmem:[%s2509 + $0x120] sm:%s2499] %v2542
                %v2544 = vld [vmem:[%s2508 + $0x88] sm:%s2499]
                %2545 = vst [vmem:[%s2509 + $0x128] sm:%s2499] %v2544
                %v2546 = vld [vmem:[%s2508 + $0x90] sm:%s2499]
                %2547 = vst [vmem:[%s2509 + $0x130] sm:%s2499] %v2546
                %v2548 = vld [vmem:[%s2508 + $0x98] sm:%s2499]
                %2549 = vst [vmem:[%s2509 + $0x138] sm:%s2499] %v2548
                %v2550 = vld [vmem:[%s2508 + $0xa0] sm:%s2499]
                %2551 = vst [vmem:[%s2509 + $0x168] sm:%s2499] %v2550
                %v2552 = vld [vmem:[%s2508 + $0xa8] sm:%s2499]
                %2553 = vst [vmem:[%s2509 + $0x170] sm:%s2499] %v2552
                %v2554 = vld [vmem:[%s2508 + $0xb0] sm:%s2499]
                %2555 = vst [vmem:[%s2509 + $0x178] sm:%s2499] %v2554
                %v2556 = vld [vmem:[%s2508 + $0xb8] sm:%s2499]
                %2557 = vst [vmem:[%s2509 + $0x180] sm:%s2499] %v2556
                %s2558 = sadd.s32 1, %s2507
                %p2559 = scmp.ge.s32.totalorder %s2558, %s2500
                %s2560 = scalar_select %p2559, 0, %s2558
                %s2561 = smul.u32 %s2560, 32
                %s2562 = smul.u32 %s2560, 32
                %s2563 = scalar_lea.vmem %s2250, %s2561 [#allocation9]
                %s2564 = scalar_lea.vmem %s2490, %s2562
              $region221: #{_forward.1} parent=215 // loop_footer
                %s2504 = sadd.s32 %s2502, 1
              $region222: #{_forward.1} parent=215 // loop_footer_branch
                %2501 = sbr.rel target = $region218
              $region223: #{_forward.1} parent=215 // loop_exit
                _
              %s2565 = sshrl.u32 %s2484, 2
              %s2566 = sand.u32 %s2484, 3
              %s2567 = smul.u32 %s2565, 4
              %s2568 = smul.u32 8, %s2567
              %s2569 = scalar_lea.vmem %s2250, %s2568 [#allocation9]
              %s2570 = smul.u32 8, %s2567
              %s2571 = scalar_lea.vmem %s2490, %s2570
              // While loop
              $region224: #{_forward.1} parent=215 // loop_pre_header
                _
              $region225: #{_forward.1} parent=215 // loop_header
                %s2573 = sphi 0, %s2575
                %p2574 = scmp.ge.s32.totalorder %s2573, %s2566
                %s2578 = sphi 0, %s2595
                %s2579 = sphi %s2569, %s2598
                %s2580 = sphi %s2571, %s2599
              $region226: #{_forward.1} parent=215 // loop_header_branch
                %2577 = sbr.rel (%p2574) target = $region230
              $region227: #{_forward.1} parent=215 // loop_body
                %v2581 = vld [vmem:[%s2579] sm:%s2499]
                %2582 = vst [vmem:[%s2580] sm:%s2499] %v2581
                %v2583 = vld [vmem:[%s2579 + $0x20] sm:%s2499]
                %2584 = vst [vmem:[%s2580 + $0x48] sm:%s2499] %v2583
                %v2585 = vld [vmem:[%s2579 + $0x40] sm:%s2499]
                %2586 = vst [vmem:[%s2580 + $0x90] sm:%s2499] %v2585
                %v2587 = vld [vmem:[%s2579 + $0x60] sm:%s2499]
                %2588 = vst [vmem:[%s2580 + $0xd8] sm:%s2499] %v2587
                %v2589 = vld [vmem:[%s2579 + $0x80] sm:%s2499]
                %2590 = vst [vmem:[%s2580 + $0x120] sm:%s2499] %v2589
                %v2591 = vld [vmem:[%s2579 + $0xa0] sm:%s2499]
                %2592 = vst [vmem:[%s2580 + $0x168] sm:%s2499] %v2591
                %s2593 = sadd.s32 1, %s2578
                %p2594 = scmp.ge.s32.totalorder %s2593, %s2566
                %s2595 = scalar_select %p2594, 0, %s2593
                %s2596 = smul.u32 %s2595, 8
                %s2597 = smul.u32 %s2595, 8
                %s2598 = scalar_lea.vmem %s2569, %s2596 [#allocation9]
                %s2599 = scalar_lea.vmem %s2571, %s2597
              $region228: #{_forward.1} parent=215 // loop_footer
                %s2575 = sadd.s32 %s2573, 1
              $region229: #{_forward.1} parent=215 // loop_footer_branch
                %2572 = sbr.rel target = $region225
              $region230: #{_forward.1} parent=215 // loop_exit
                _
            $region216: #{_forward.1} parent=207 // pred_fallthru
              _
          $region208: #{_forward.1} parent=203 // pred_fallthru
            _
          %2704 = vnop
        $region204: #{_forward.1} parent=131 // pred_fallthru
          _
      $region132: #{_forward.1} parent=5 // pred_fallthru
        _
      %p2705 = scmp.le.s32.totalorder 2, %s16
      // Predicated region
      $region253: #{_forward.1} parent=5 // pred_check
        %p2706 = pneg %p2705
      $region254: #{_forward.1} parent=5 // pred_check_branch
        %2708 = sbr.rel (%p2706) target = $region256
      $region255: #{_forward.1} parent=5 // pred_region
        %s2709 = ssub.s32 %s16, 2
        // Predicated region
        $region257: #{_forward.1} parent=255 // pred_check
          %p2710 = pneg %p164
        $region258: #{_forward.1} parent=255 // pred_check_branch
          %2712 = sbr.rel (%p2710) target = $region260
        $region259: #{_forward.1} parent=255 // pred_region
          %s2713 = sand.u32 %s149, 1
          %s2714 = sand.u32 %s149, 1
          %s2715 = smul.addr %s2714, 192
          %s2716 = scalar_lea.vmem [#allocation8], %s2715
        $region260: #{_forward.1} parent=255 // pred_fallthru
          _
        // Predicated region
        $region261: #{_forward.1} parent=255 // pred_check
          %p2717 = pneg %p192
        $region262: #{_forward.1} parent=255 // pred_check_branch
          %2719 = sbr.rel (%p2717) target = $region264
        $region263: #{_forward.1} parent=255 // pred_region
          %s2720 = sand.u32 %s177, 1
          %s2721 = sand.u32 %s177, 1
          %s2722 = smul.addr %s2721, 192
          %s2723 = scalar_lea.vmem [#allocation9], %s2722
        $region264: #{_forward.1} parent=255 // pred_fallthru
          _
      $region256: #{_forward.1} parent=5 // pred_fallthru
        _
    $region6: #{_forward.1} parent=1 // loop_footer
      %s20 = sadd.s32 1, %s16
    $region7: #{_forward.1} parent=1 // loop_footer_branch
      %15 = sbr.rel target = $region3
    $region8: #{_forward.1} parent=1 // loop_exit
      _
    %2724 = vsyncpa [#allocation3], 1
    %s2725 = scalar_lea.sflag [#allocation3], 1
    %2726 = vsyncpa %s2725, 1
    %2727 = vsyncpa [#allocation4], 1
    %s2728 = scalar_lea.sflag [#allocation4], 1
    %2729 = vsyncpa %s2728, 1

</llo_original>
